<compile_context>
chip_gen: v5e
topology: v5e:2x2
jax: 0.10.0
libtpu: 0.0.40
codegen_flags: <defaults>
</compile_context>

<pallas_src>
import functools

import jax
import jax.numpy as jnp
import numpy as np
from jax.experimental import pallas as pl
from jax.experimental.pallas import tpu as pltpu


# ----------------------------------------------------------------------------
# small helpers
# ----------------------------------------------------------------------------

def _ln(x, g, b, eps=1e-5):
    mu = jnp.mean(x, axis=-1, keepdims=True)
    var = jnp.mean((x - mu) ** 2, axis=-1, keepdims=True)
    return (x - mu) * jax.lax.rsqrt(var + eps) * g + b


# ---- trace-time constant matrices (numpy) ----------------------------------

def _interp_matrix(n_in, n_out):
    """(n_out, n_in) align_corners=True bilinear interpolation matrix."""
    if n_in == 1:
        return np.ones((n_out, n_in), np.float64)
    m = np.zeros((n_out, n_in), np.float64)
    for j in range(n_out):
        src = j * (n_in - 1) / (n_out - 1)
        i0 = min(int(np.floor(src)), n_in - 2)
        frac = src - i0
        m[j, i0] += 1.0 - frac
        m[j, i0 + 1] += frac
    return m


def _up2_right(H, W):
    """Right-multiply matrix R (H*W, 4*H*W): y_up = y_flat @ R implements a 2x
    bilinear (align_corners=True) upsample of a row-major flattened (H, W) map."""
    return np.kron(_interp_matrix(H, 2 * H), _interp_matrix(W, 2 * W)).T


def _shift_matrices(H, W):
    """(9, H*W, H*W) 0/1 matrices S_t: shifted_t = x_flat @ S_t gives the
    zero-padded 3x3 tap shifts (t = 3*ki + kj) of a flattened (H, W) map."""
    mats = np.zeros((9, H * W, H * W), np.float64)
    for ki in range(3):
        for kj in range(3):
            t = ki * 3 + kj
            di, dj = ki - 1, kj - 1
            for h in range(H):
                for w in range(W):
                    hs, ws = h + di, w + dj
                    if 0 <= hs < H and 0 <= ws < W:
                        mats[t, hs * W + ws, h * W + w] = 1.0
    return mats


def _block_diag(m, B):
    r, c = m.shape
    out = np.zeros((B * r, B * c), m.dtype)
    for b in range(B):
        out[b * r:(b + 1) * r, b * c:(b + 1) * c] = m
    return out


# ----------------------------------------------------------------------------
# kernel 1: patch embed + full transformer stack  (grid = (depth,))
# ----------------------------------------------------------------------------

def _vit_stack_kernel(patches_ref, pw_ref, pb_ref, pos_ref,
                      ln1g_ref, ln1b_ref, qkvw_ref, qkvb_ref,
                      outw_ref, outb_ref, ln2g_ref, ln2b_ref,
                      ff1w_ref, ff1b_ref, ff2w_ref, ff2b_ref,
                      o_ref, *, B, N, heads, dim_head, scale):
    layer = pl.program_id(0)

    # layer 0: patch embedding + positional embedding (emb_dropout = identity
    # in eval).  o_ref doubles as the VMEM-resident activation across layers.
    @pl.when(layer == 0)
    def _():
        emb = jnp.dot(patches_ref[...].astype(jnp.bfloat16), pw_ref[...],
                      preferred_element_type=jnp.float32)
        o_ref[...] = emb + pb_ref[...] + pos_ref[...]

    x = o_ref[...]                                        # (B*N, D) f32
    dh = dim_head

    # ---- attention (pre-LN): fused QKV matmul + fused out-proj matmul ----
    h = _ln(x, ln1g_ref[...], ln1b_ref[...])
    qkv = jnp.dot(h.astype(jnp.bfloat16), qkvw_ref[...],
                  preferred_element_type=jnp.float32) + qkvb_ref[...]
    hv_rows = []
    for b in range(B):                     # scores / A@V stay per (batch, head)
        qkv_b = qkv[b * N:(b + 1) * N, :]
        heads_out = []
        for hd in range(heads):
            q = qkv_b[:, hd * dh:(hd + 1) * dh]
            k = qkv_b[:, (heads + hd) * dh:(heads + hd + 1) * dh]
            v = qkv_b[:, (2 * heads + hd) * dh:(2 * heads + hd + 1) * dh]
            s = jax.lax.dot_general(
                q.astype(jnp.bfloat16), k.astype(jnp.bfloat16),
                (((1,), (1,)), ((), ())),
                preferred_element_type=jnp.float32) * scale
            s = s - jnp.max(s, axis=-1, keepdims=True)
            p = jnp.exp(s)
            p = p / jnp.sum(p, axis=-1, keepdims=True)    # exact softmax
            heads_out.append(jnp.dot(p.astype(jnp.bfloat16),
                                     v.astype(jnp.bfloat16),
                                     preferred_element_type=jnp.float32))
        hv_rows.append(jnp.concatenate(heads_out, axis=-1))   # (N, heads*dh)
    hv = jnp.concatenate(hv_rows, axis=0)                     # (B*N, heads*dh)
    x = x + jnp.dot(hv.astype(jnp.bfloat16), outw_ref[...],
                    preferred_element_type=jnp.float32) + outb_ref[...]

    # ---- MLP (pre-LN) ----
    h = _ln(x, ln2g_ref[...], ln2b_ref[...])
    h = jnp.dot(h.astype(jnp.bfloat16), ff1w_ref[...],
                preferred_element_type=jnp.float32) + ff1b_ref[...]
    # TODO(synk): PyTorch nn.GELU defaults to the exact erf form; tanh approx here.
    h = jax.nn.gelu(h, approximate=True)
    h = jnp.dot(h.astype(jnp.bfloat16), ff2w_ref[...],
                preferred_element_type=jnp.float32) + ff2b_ref[...]
    o_ref[...] = x + h


_LAYER_KEYS = ("ln1_g", "ln1_b", "qkv_w", "qkv_b", "out_w", "out_b",
               "ln2_g", "ln2_b", "ff1_w", "ff1_b", "ff2_w", "ff2_b")


def _const_spec(a):
    nd = a.ndim
    return pl.BlockSpec(a.shape, lambda l: (0,) * nd)


def _layer_spec(a):
    nd = a.ndim
    return pl.BlockSpec((None,) + tuple(a.shape[1:]),
                        lambda l: (l,) + (0,) * (nd - 1))


def pallas_vit_stack(patches, pos, params, *, B, N, heads, dim_head):
    D = params["patch_w"].shape[1]
    depth = params["qkv_w"].shape[0]
    const_inputs = (patches, params["patch_w"], params["patch_b"], pos)
    layer_inputs = tuple(params[k] for k in _LAYER_KEYS)

    kern = functools.partial(_vit_stack_kernel, B=B, N=N, heads=heads,
                             dim_head=dim_head, scale=dim_head ** -0.5)
    return pl.pallas_call(
        kern,
        out_shape=jax.ShapeDtypeStruct((B * N, D), jnp.float32),
        grid=(depth,),
        in_specs=[_const_spec(a) for a in const_inputs]
                 + [_layer_spec(a) for a in layer_inputs],
        out_specs=pl.BlockSpec((B * N, D), lambda l: (0, 0)),
        compiler_params=pltpu.CompilerParams(
            dimension_semantics=("arbitrary",)),
    )(*const_inputs, *layer_inputs)


# ----------------------------------------------------------------------------
# kernel 2: full decoder (no grid, single launch, VMEM-resident)
# ----------------------------------------------------------------------------

def _decoder_kernel(x_ref, eye_ref, sh1_ref, w1_ref, s1_ref, t1_ref, u1_ref,
                    sh2_ref, w2_ref, s2_ref, t2_ref, w3_ref, b3_ref, u23_ref,
                    o_ref, *, B, tokens):
    N = tokens

    # (B*N, D) tokens -> channel-major (D, B*N) feature map.  The per-batch
    # "transpose" ('b s c -> b c s' + view) is done as an identity matmul
    # (eye @ x_b^T via dot_general), which lowers cleanly to the MXU.
    fm = jnp.concatenate(
        [jax.lax.dot_general(
            eye_ref[...], x_ref[b * N:(b + 1) * N, :].astype(jnp.bfloat16),
            (((1,), (1,)), ((), ())), preferred_element_type=jnp.float32)
         for b in range(B)], axis=1)                      # (D, B*N) f32

    def conv3x3(feat, sh_ref, w_ref):
        # feat: (Cin, B*S); sh_ref: (9, B*S, B*S) 0/1 shift matrices (batch
        # block-diagonal); w_ref: (Cout, 9*Cin).  All 9 taps + both batch
        # elements collapse into one deep-K matmul.
        fb = feat.astype(jnp.bfloat16)
        x9 = jnp.concatenate(
            [jnp.dot(fb, sh_ref[t], preferred_element_type=jnp.float32)
             for t in range(9)], axis=0)                  # (9*Cin, B*S)
        return jnp.dot(w_ref[...], x9.astype(jnp.bfloat16),
                       preferred_element_type=jnp.float32)

    # stage 1: conv3x3(D -> D/4, no bias) + BN + ReLU + 2x bilinear up (matmul)
    y = conv3x3(fm, sh1_ref, w1_ref)
    y = jnp.maximum(y * s1_ref[...] + t1_ref[...], 0.0)
    y = jnp.dot(y.astype(jnp.bfloat16), u1_ref[...],
                preferred_element_type=jnp.float32)

    # stage 2: conv3x3(D/4 -> D/4, no bias) + BN + ReLU
    y = conv3x3(y, sh2_ref, w2_ref)
    y = jnp.maximum(y * s2_ref[...] + t2_ref[...], 0.0)

    # stage 3: [up2] -> conv1x1(+bias) -> [up2].  A 1x1 conv is pointwise and
    # the bilinear-up columns each sum to 1, so it commutes with the upsample;
    # both remaining upsamples are pre-composed into the single matrix u23.
    y = jnp.dot(w3_ref[...], y.astype(jnp.bfloat16),
                preferred_element_type=jnp.float32) + b3_ref[...]
    y = jnp.dot(y.astype(jnp.bfloat16), u23_ref[...],
                preferred_element_type=jnp.float32)       # (n_classes, B*S_out)

    s_out = u23_ref.shape[1] // B
    for b in range(B):                                    # lane-dense stores
        o_ref[b] = y[:, b * s_out:(b + 1) * s_out]


def pallas_decoder(x, params, *, B, hp, wp, n_classes):
    D = params["patch_w"].shape[1]
    s_out = (8 * hp) * (8 * wp)

    eye_d = jnp.eye(D, dtype=jnp.bfloat16)
    sh1 = jnp.asarray(
        np.stack([_block_diag(m, B) for m in _shift_matrices(hp, wp)]),
        jnp.bfloat16)
    sh2 = jnp.asarray(
        np.stack([_block_diag(m, B) for m in _shift_matrices(2 * hp, 2 * wp)]),
        jnp.bfloat16)
    u1 = jnp.asarray(_block_diag(_up2_right(hp, wp), B), jnp.bfloat16)
    u23 = jnp.asarray(
        _block_diag(_up2_right(2 * hp, 2 * wp) @ _up2_right(4 * hp, 4 * wp), B),
        jnp.bfloat16)

    kern = functools.partial(_decoder_kernel, B=B, tokens=hp * wp)
    # No grid: every (tiny) operand is whole-array resident in VMEM.
    return pl.pallas_call(
        kern,
        out_shape=jax.ShapeDtypeStruct((B, n_classes, s_out), jnp.float32),
    )(x, eye_d, sh1, params["conv1_w"], params["bn1_scale"], params["bn1_shift"],
      u1, sh2, params["conv2_w"], params["bn2_scale"], params["bn2_shift"],
      params["conv3_w"], params["conv3_b"], u23)


# ----------------------------------------------------------------------------
# forward pass
# ----------------------------------------------------------------------------

def setr_dsformer_forward(params, img, *, patch_size, heads, dim_head):
    B, C, H, W = img.shape
    P = patch_size
    hp, wp = H // P, W // P
    N = hp * wp
    n_classes = params["conv3_w"].shape[0]

    # Rearrange 'b c (h p1) (w p2) -> b (h w) (p1 p2 c)'; batch folded into M.
    patches = img.reshape(B, C, hp, P, wp, P).transpose(0, 2, 4, 3, 5, 1)
    patches = patches.reshape(B * N, P * P * C)
    pos = jnp.tile(params["pos_embedding"], (B, 1))        # (B*N, D)

    # 1 launch: patch embed + pos add + all transformer layers.
    x = pallas_vit_stack(patches, pos, params, B=B, N=N,
                         heads=heads, dim_head=dim_head)   # (B*N, D)

    # 1 launch: full decoder; output is NCHW-flattened (B, n_classes, H*W).
    y = pallas_decoder(x, params, B=B, hp=hp, wp=wp, n_classes=n_classes)
    return y.reshape(B, n_classes, 8 * hp, 8 * wp)


# ----------------------------------------------------------------------------
# deterministic synthetic parameters
# ----------------------------------------------------------------------------

def init_params(key, n_channels, n_classes, imgsize, dim, depth, heads,
                dim_head, mlp_dim):
    patch_num = imgsize // 8
    P = imgsize // patch_num
    num_patches = patch_num * patch_num
    patch_dim = n_channels * P * P
    d4 = dim // 4
    inner = heads * dim_head

    keys = iter(jax.random.split(key, 16))

    def nrm(shape, s=0.02, dtype=jnp.float32):
        return (jax.random.normal(next(keys), shape, jnp.float32) * s).astype(dtype)

    eps = 1e-5
    bn_s = float(1.0 / np.sqrt(1.0 + eps))   # eval BN folded from fresh stats

    params = {
        "patch_w": nrm((patch_dim, dim), dtype=jnp.bfloat16),
        "patch_b": jnp.zeros((1, dim), jnp.float32),
        "pos_embedding": nrm((num_patches, dim), 1.0),
        # transformer weights stacked on a leading depth axis (one pallas_call
        # with grid=(depth,) selects layer l via the BlockSpec index_map).
        "ln1_g": jnp.ones((depth, 1, dim), jnp.float32),
        "ln1_b": jnp.zeros((depth, 1, dim), jnp.float32),
        # fused qkv: columns ordered [q_h0..q_hH | k_h0..k_hH | v_h0..v_hH]
        "qkv_w": nrm((depth, dim, 3 * inner), dtype=jnp.bfloat16),
        "qkv_b": jnp.zeros((depth, 1, 3 * inner), jnp.float32),
        "out_w": nrm((depth, inner, dim), dtype=jnp.bfloat16),
        "out_b": jnp.zeros((depth, 1, dim), jnp.float32),
        "ln2_g": jnp.ones((depth, 1, dim), jnp.float32),
        "ln2_b": jnp.zeros((depth, 1, dim), jnp.float32),
        "ff1_w": nrm((depth, dim, mlp_dim), dtype=jnp.bfloat16),
        "ff1_b": jnp.zeros((depth, 1, mlp_dim), jnp.float32),
        "ff2_w": nrm((depth, mlp_dim, dim), dtype=jnp.bfloat16),
        "ff2_b": jnp.zeros((depth, 1, dim), jnp.float32),
        # decoder conv3x3 weights pre-laid-out as (Cout, 9*Cin); a PyTorch
        # (Cout,Cin,3,3) weight maps via w.permute(0,2,3,1).reshape(Cout,9*Cin)
        "conv1_w": nrm((d4, 9 * dim), dtype=jnp.bfloat16),
        "bn1_scale": jnp.full((d4, 1), bn_s, jnp.float32),
        "bn1_shift": jnp.zeros((d4, 1), jnp.float32),
        "conv2_w": nrm((d4, 9 * d4), dtype=jnp.bfloat16),
        "bn2_scale": jnp.full((d4, 1), bn_s, jnp.float32),
        "bn2_shift": jnp.zeros((d4, 1), jnp.float32),
        "conv3_w": nrm((n_classes, d4), dtype=jnp.bfloat16),
        "conv3_b": jnp.zeros((n_classes, 1), jnp.float32),
    }
    return params, P


# ----------------------------------------------------------------------------
# main
# ----------------------------------------------------------------------------

if __name__ == "__main__":
    # small config consistent with the module: imgsize=16 -> patch_num=2,
    # patch=8x8, num_patches=4; dim=32 -> decoder channels dim//4=8.
    B, C, IMG = 2, 4, 16
    N_CLASSES, DIM, DEPTH, HEADS, DIM_HEAD, MLP_DIM = 2, 32, 2, 2, 16, 64

    key = jax.random.PRNGKey(0)
    pkey, xkey = jax.random.split(key)
    params, P = init_params(pkey, C, N_CLASSES, IMG, DIM, DEPTH, HEADS,
                            DIM_HEAD, MLP_DIM)
    img = jax.random.normal(xkey, (B, C, IMG, IMG), jnp.float32)

    fwd = jax.jit(functools.partial(setr_dsformer_forward, patch_size=P,
                                    heads=HEADS, dim_head=DIM_HEAD))
    out = jax.block_until_ready(fwd(params, img))

    assert out.shape == (B, N_CLASSES, IMG, IMG), out.shape
    assert bool(jnp.all(jnp.isfinite(out)))
    print("KERNEL_OK")
</pallas_src>

<mosaic_0001>
module attributes {stable_mosaic.version = 11 : i64} {
  func.func @_vit_stack_kernel(%arg0: i32, %arg1: memref<8x256xf32, #tpu.memory_space<vmem>>, %arg2: memref<256x32xbf16, #tpu.memory_space<vmem>>, %arg3: memref<1x32xf32, #tpu.memory_space<vmem>>, %arg4: memref<8x32xf32, #tpu.memory_space<vmem>>, %arg5: memref<1x1x32xf32, #tpu.memory_space<vmem>>, %arg6: memref<1x1x32xf32, #tpu.memory_space<vmem>>, %arg7: memref<1x32x96xbf16, #tpu.memory_space<vmem>>, %arg8: memref<1x1x96xf32, #tpu.memory_space<vmem>>, %arg9: memref<1x32x32xbf16, #tpu.memory_space<vmem>>, %arg10: memref<1x1x32xf32, #tpu.memory_space<vmem>>, %arg11: memref<1x1x32xf32, #tpu.memory_space<vmem>>, %arg12: memref<1x1x32xf32, #tpu.memory_space<vmem>>, %arg13: memref<1x32x64xbf16, #tpu.memory_space<vmem>>, %arg14: memref<1x1x64xf32, #tpu.memory_space<vmem>>, %arg15: memref<1x64x32xbf16, #tpu.memory_space<vmem>>, %arg16: memref<1x1x32xf32, #tpu.memory_space<vmem>>, %arg17: memref<8x32xf32, #tpu.memory_space<vmem>>) attributes {dimension_semantics = [#tpu.dimension_semantics<arbitrary>], iteration_bounds = array<i64: 2>, scalar_prefetch = 0 : i64, scratch_operands = 0 : i64, tpu.core_type = #tpu.core_type<tc>, window_params = [{pipeline_mode = #tpu.pipeline_mode<synchronous>, transform_indices = @transform_0, window_bounds = array<i64: 8, 256>}, {pipeline_mode = #tpu.pipeline_mode<synchronous>, transform_indices = @transform_1, window_bounds = array<i64: 256, 32>}, {pipeline_mode = #tpu.pipeline_mode<synchronous>, transform_indices = @transform_2, window_bounds = array<i64: 1, 32>}, {pipeline_mode = #tpu.pipeline_mode<synchronous>, transform_indices = @transform_3, window_bounds = array<i64: 8, 32>}, {transform_indices = @transform_4, window_bounds = array<i64: 1, 1, 32>}, {transform_indices = @transform_5, window_bounds = array<i64: 1, 1, 32>}, {transform_indices = @transform_6, window_bounds = array<i64: 1, 32, 96>}, {transform_indices = @transform_7, window_bounds = array<i64: 1, 1, 96>}, {transform_indices = @transform_8, window_bounds = array<i64: 1, 32, 32>}, {transform_indices = @transform_9, window_bounds = array<i64: 1, 1, 32>}, {transform_indices = @transform_10, window_bounds = array<i64: 1, 1, 32>}, {transform_indices = @transform_11, window_bounds = array<i64: 1, 1, 32>}, {transform_indices = @transform_12, window_bounds = array<i64: 1, 32, 64>}, {transform_indices = @transform_13, window_bounds = array<i64: 1, 1, 64>}, {transform_indices = @transform_14, window_bounds = array<i64: 1, 64, 32>}, {transform_indices = @transform_15, window_bounds = array<i64: 1, 1, 32>}, {pipeline_mode = #tpu.pipeline_mode<synchronous>, transform_indices = @transform_16, window_bounds = array<i64: 8, 32>}]} {
    %c0_i32 = arith.constant 0 : i32
    %0 = arith.cmpi eq, %arg0, %c0_i32 : i32
    %1 = arith.extui %0 : i1 to i32
    %c0_i32_0 = arith.constant 0 : i32
    %2 = arith.cmpi ne, %1, %c0_i32_0 : i32
    scf.if %2 {
      %c0_77 = arith.constant 0 : index
      %c0_78 = arith.constant 0 : index
      %189 = vector.load %arg1[%c0_77, %c0_78] : memref<8x256xf32, #tpu.memory_space<vmem>>, vector<8x256xf32>
      %190 = arith.truncf %189 : vector<8x256xf32> to vector<8x256xbf16>
      %c0_79 = arith.constant 0 : index
      %c0_80 = arith.constant 0 : index
      %191 = vector.load %arg2[%c0_79, %c0_80] : memref<256x32xbf16, #tpu.memory_space<vmem>>, vector<256x32xbf16>
      %cst_81 = arith.constant dense<0.000000e+00> : vector<8x32xf32>
      %192 = tpu.matmul %190, %191, %cst_81 {dimension_numbers = #tpu.dot_dimension_numbers<[1], [0], [0], [1], [0, 0, 1, 1], [], []>} : vector<8x256xbf16>, vector<256x32xbf16>, vector<8x32xf32> -> vector<8x32xf32>
      %c0_82 = arith.constant 0 : index
      %c0_83 = arith.constant 0 : index
      %193 = vector.load %arg3[%c0_82, %c0_83] : memref<1x32xf32, #tpu.memory_space<vmem>>, vector<1x32xf32>
      %194 = vector.broadcast %193 : vector<1x32xf32> to vector<8x32xf32>
      %195 = arith.addf %192, %194 : vector<8x32xf32>
      %c0_84 = arith.constant 0 : index
      %c0_85 = arith.constant 0 : index
      %196 = vector.load %arg4[%c0_84, %c0_85] : memref<8x32xf32, #tpu.memory_space<vmem>>, vector<8x32xf32>
      %197 = arith.addf %195, %196 : vector<8x32xf32>
      %c0_86 = arith.constant 0 : index
      %c0_87 = arith.constant 0 : index
      %198 = vector.load %arg17[%c0_86, %c0_87] : memref<8x32xf32, #tpu.memory_space<vmem>>, vector<8x32xf32>
      tpu.vector_store %arg17[%c0_86, %c0_87], %197 {strides = array<i32>} : memref<8x32xf32, #tpu.memory_space<vmem>>, vector<8x32xf32>,
    } else {
    }
    %c0 = arith.constant 0 : index
    %c0_1 = arith.constant 0 : index
    %3 = vector.load %arg17[%c0, %c0_1] : memref<8x32xf32, #tpu.memory_space<vmem>>, vector<8x32xf32>
    %c0_2 = arith.constant 0 : index
    %c0_3 = arith.constant 0 : index
    %c0_4 = arith.constant 0 : index
    %4 = vector.load %arg5[%c0_2, %c0_3, %c0_4] : memref<1x1x32xf32, #tpu.memory_space<vmem>>, vector<1x1x32xf32>
    %5 = vector.shape_cast %4 : vector<1x1x32xf32> to vector<1x32xf32>
    %c0_5 = arith.constant 0 : index
    %c0_6 = arith.constant 0 : index
    %c0_7 = arith.constant 0 : index
    %6 = vector.load %arg6[%c0_5, %c0_6, %c0_7] : memref<1x1x32xf32, #tpu.memory_space<vmem>>, vector<1x1x32xf32>
    %7 = vector.shape_cast %6 : vector<1x1x32xf32> to vector<1x32xf32>
    %cst = arith.constant dense<0.000000e+00> : vector<8xf32>
    %8 = vector.multi_reduction <add>, %3, %cst [1] : vector<8x32xf32> to vector<8xf32>
    %9 = vector.shape_cast %8 : vector<8xf32> to vector<8x1xf32>
    %cst_8 = arith.constant 3.200000e+01 : f32
    %10 = vector.broadcast %cst_8 : f32 to vector<8x1xf32>
    %11 = arith.divf %9, %10 : vector<8x1xf32>
    %12 = vector.broadcast %11 : vector<8x1xf32> to vector<8x32xf32>
    %13 = arith.subf %3, %12 : vector<8x32xf32>
    %14 = arith.mulf %13, %13 : vector<8x32xf32>
    %cst_9 = arith.constant dense<0.000000e+00> : vector<8xf32>
    %15 = vector.multi_reduction <add>, %14, %cst_9 [1] : vector<8x32xf32> to vector<8xf32>
    %16 = vector.shape_cast %15 : vector<8xf32> to vector<8x1xf32>
    %cst_10 = arith.constant 3.200000e+01 : f32
    %17 = vector.broadcast %cst_10 : f32 to vector<8x1xf32>
    %18 = arith.divf %16, %17 : vector<8x1xf32>
    %19 = vector.broadcast %11 : vector<8x1xf32> to vector<8x32xf32>
    %20 = arith.subf %3, %19 : vector<8x32xf32>
    %cst_11 = arith.constant 9.99999974E-6 : f32
    %21 = vector.broadcast %cst_11 : f32 to vector<8x1xf32>
    %22 = arith.addf %18, %21 : vector<8x1xf32>
    %23 = math.rsqrt %22 : vector<8x1xf32>
    %24 = vector.broadcast %23 : vector<8x1xf32> to vector<8x32xf32>
    %25 = arith.mulf %20, %24 : vector<8x32xf32>
    %26 = vector.broadcast %5 : vector<1x32xf32> to vector<8x32xf32>
    %27 = arith.mulf %25, %26 : vector<8x32xf32>
    %28 = vector.broadcast %7 : vector<1x32xf32> to vector<8x32xf32>
    %29 = arith.addf %27, %28 : vector<8x32xf32>
    %30 = arith.truncf %29 : vector<8x32xf32> to vector<8x32xbf16>
    %c0_12 = arith.constant 0 : index
    %c0_13 = arith.constant 0 : index
    %c0_14 = arith.constant 0 : index
    %31 = vector.load %arg7[%c0_12, %c0_13, %c0_14] : memref<1x32x96xbf16, #tpu.memory_space<vmem>>, vector<1x32x96xbf16>
    %32 = vector.shape_cast %31 : vector<1x32x96xbf16> to vector<32x96xbf16>
    %cst_15 = arith.constant dense<0.000000e+00> : vector<8x96xf32>
    %33 = tpu.matmul %30, %32, %cst_15 {dimension_numbers = #tpu.dot_dimension_numbers<[1], [0], [0], [1], [0, 0, 1, 1], [], []>} : vector<8x32xbf16>, vector<32x96xbf16>, vector<8x96xf32> -> vector<8x96xf32>
    %c0_16 = arith.constant 0 : index
    %c0_17 = arith.constant 0 : index
    %c0_18 = arith.constant 0 : index
    %34 = vector.load %arg8[%c0_16, %c0_17, %c0_18] : memref<1x1x96xf32, #tpu.memory_space<vmem>>, vector<1x1x96xf32>
    %35 = vector.shape_cast %34 : vector<1x1x96xf32> to vector<1x96xf32>
    %36 = vector.broadcast %35 : vector<1x96xf32> to vector<8x96xf32>
    %37 = arith.addf %33, %36 : vector<8x96xf32>
    %38 = vector.extract_strided_slice %37 {offsets = [0, 0], sizes = [4, 96], strides = [1, 1]} : vector<8x96xf32> to vector<4x96xf32>
    %39 = vector.extract_strided_slice %38 {offsets = [0, 0], sizes = [4, 16], strides = [1, 1]} : vector<4x96xf32> to vector<4x16xf32>
    %40 = vector.extract_strided_slice %38 {offsets = [0, 32], sizes = [4, 16], strides = [1, 1]} : vector<4x96xf32> to vector<4x16xf32>
    %41 = vector.extract_strided_slice %38 {offsets = [0, 64], sizes = [4, 16], strides = [1, 1]} : vector<4x96xf32> to vector<4x16xf32>
    %42 = arith.truncf %39 : vector<4x16xf32> to vector<4x16xbf16>
    %43 = arith.truncf %40 : vector<4x16xf32> to vector<4x16xbf16>
    %cst_19 = arith.constant dense<0.000000e+00> : vector<4x4xf32>
    %44 = tpu.matmul %42, %43, %cst_19 {dimension_numbers = #tpu.dot_dimension_numbers<[1], [1], [0], [0], [0, 0, 1, 0], [], []>} : vector<4x16xbf16>, vector<4x16xbf16>, vector<4x4xf32> -> vector<4x4xf32>
    %cst_20 = arith.constant 2.500000e-01 : f32
    %45 = vector.broadcast %cst_20 : f32 to vector<4x4xf32>
    %46 = arith.mulf %44, %45 : vector<4x4xf32>
    %cst_21 = arith.constant dense<0xFF800000> : vector<4xf32>
    %47 = vector.multi_reduction <maximumf>, %46, %cst_21 [1] : vector<4x4xf32> to vector<4xf32>
    %48 = vector.shape_cast %47 : vector<4xf32> to vector<4x1xf32>
    %49 = vector.broadcast %48 : vector<4x1xf32> to vector<4x4xf32>
    %50 = arith.subf %46, %49 : vector<4x4xf32>
    %51 = math.exp %50 : vector<4x4xf32>
    %cst_22 = arith.constant dense<0.000000e+00> : vector<4xf32>
    %52 = vector.multi_reduction <add>, %51, %cst_22 [1] : vector<4x4xf32> to vector<4xf32>
    %53 = vector.shape_cast %52 : vector<4xf32> to vector<4x1xf32>
    %54 = vector.broadcast %53 : vector<4x1xf32> to vector<4x4xf32>
    %55 = arith.divf %51, %54 : vector<4x4xf32>
    %56 = arith.truncf %55 : vector<4x4xf32> to vector<4x4xbf16>
    %57 = arith.truncf %41 : vector<4x16xf32> to vector<4x16xbf16>
    %cst_23 = arith.constant dense<0.000000e+00> : vector<4x16xf32>
    %58 = tpu.matmul %56, %57, %cst_23 {dimension_numbers = #tpu.dot_dimension_numbers<[1], [0], [0], [1], [0, 0, 1, 1], [], []>} : vector<4x4xbf16>, vector<4x16xbf16>, vector<4x16xf32> -> vector<4x16xf32>
    %59 = vector.extract_strided_slice %38 {offsets = [0, 16], sizes = [4, 16], strides = [1, 1]} : vector<4x96xf32> to vector<4x16xf32>
    %60 = vector.extract_strided_slice %38 {offsets = [0, 48], sizes = [4, 16], strides = [1, 1]} : vector<4x96xf32> to vector<4x16xf32>
    %61 = vector.extract_strided_slice %38 {offsets = [0, 80], sizes = [4, 16], strides = [1, 1]} : vector<4x96xf32> to vector<4x16xf32>
    %62 = arith.truncf %59 : vector<4x16xf32> to vector<4x16xbf16>
    %63 = arith.truncf %60 : vector<4x16xf32> to vector<4x16xbf16>
    %cst_24 = arith.constant dense<0.000000e+00> : vector<4x4xf32>
    %64 = tpu.matmul %62, %63, %cst_24 {dimension_numbers = #tpu.dot_dimension_numbers<[1], [1], [0], [0], [0, 0, 1, 0], [], []>} : vector<4x16xbf16>, vector<4x16xbf16>, vector<4x4xf32> -> vector<4x4xf32>
    %cst_25 = arith.constant 2.500000e-01 : f32
    %65 = vector.broadcast %cst_25 : f32 to vector<4x4xf32>
    %66 = arith.mulf %64, %65 : vector<4x4xf32>
    %cst_26 = arith.constant dense<0xFF800000> : vector<4xf32>
    %67 = vector.multi_reduction <maximumf>, %66, %cst_26 [1] : vector<4x4xf32> to vector<4xf32>
    %68 = vector.shape_cast %67 : vector<4xf32> to vector<4x1xf32>
    %69 = vector.broadcast %68 : vector<4x1xf32> to vector<4x4xf32>
    %70 = arith.subf %66, %69 : vector<4x4xf32>
    %71 = math.exp %70 : vector<4x4xf32>
    %cst_27 = arith.constant dense<0.000000e+00> : vector<4xf32>
    %72 = vector.multi_reduction <add>, %71, %cst_27 [1] : vector<4x4xf32> to vector<4xf32>
    %73 = vector.shape_cast %72 : vector<4xf32> to vector<4x1xf32>
    %74 = vector.broadcast %73 : vector<4x1xf32> to vector<4x4xf32>
    %75 = arith.divf %71, %74 : vector<4x4xf32>
    %76 = arith.truncf %75 : vector<4x4xf32> to vector<4x4xbf16>
    %77 = arith.truncf %61 : vector<4x16xf32> to vector<4x16xbf16>
    %cst_28 = arith.constant dense<0.000000e+00> : vector<4x16xf32>
    %78 = tpu.matmul %76, %77, %cst_28 {dimension_numbers = #tpu.dot_dimension_numbers<[1], [0], [0], [1], [0, 0, 1, 1], [], []>} : vector<4x4xbf16>, vector<4x16xbf16>, vector<4x16xf32> -> vector<4x16xf32>
    %79 = tpu.concatenate %58, %78 in 1 : vector<4x16xf32>, vector<4x16xf32> -> vector<4x32xf32>
    %80 = vector.extract_strided_slice %37 {offsets = [4, 0], sizes = [4, 96], strides = [1, 1]} : vector<8x96xf32> to vector<4x96xf32>
    %81 = vector.extract_strided_slice %80 {offsets = [0, 0], sizes = [4, 16], strides = [1, 1]} : vector<4x96xf32> to vector<4x16xf32>
    %82 = vector.extract_strided_slice %80 {offsets = [0, 32], sizes = [4, 16], strides = [1, 1]} : vector<4x96xf32> to vector<4x16xf32>
    %83 = vector.extract_strided_slice %80 {offsets = [0, 64], sizes = [4, 16], strides = [1, 1]} : vector<4x96xf32> to vector<4x16xf32>
    %84 = arith.truncf %81 : vector<4x16xf32> to vector<4x16xbf16>
    %85 = arith.truncf %82 : vector<4x16xf32> to vector<4x16xbf16>
    %cst_29 = arith.constant dense<0.000000e+00> : vector<4x4xf32>
    %86 = tpu.matmul %84, %85, %cst_29 {dimension_numbers = #tpu.dot_dimension_numbers<[1], [1], [0], [0], [0, 0, 1, 0], [], []>} : vector<4x16xbf16>, vector<4x16xbf16>, vector<4x4xf32> -> vector<4x4xf32>
    %cst_30 = arith.constant 2.500000e-01 : f32
    %87 = vector.broadcast %cst_30 : f32 to vector<4x4xf32>
    %88 = arith.mulf %86, %87 : vector<4x4xf32>
    %cst_31 = arith.constant dense<0xFF800000> : vector<4xf32>
    %89 = vector.multi_reduction <maximumf>, %88, %cst_31 [1] : vector<4x4xf32> to vector<4xf32>
    %90 = vector.shape_cast %89 : vector<4xf32> to vector<4x1xf32>
    %91 = vector.broadcast %90 : vector<4x1xf32> to vector<4x4xf32>
    %92 = arith.subf %88, %91 : vector<4x4xf32>
    %93 = math.exp %92 : vector<4x4xf32>
    %cst_32 = arith.constant dense<0.000000e+00> : vector<4xf32>
    %94 = vector.multi_reduction <add>, %93, %cst_32 [1] : vector<4x4xf32> to vector<4xf32>
    %95 = vector.shape_cast %94 : vector<4xf32> to vector<4x1xf32>
    %96 = vector.broadcast %95 : vector<4x1xf32> to vector<4x4xf32>
    %97 = arith.divf %93, %96 : vector<4x4xf32>
    %98 = arith.truncf %97 : vector<4x4xf32> to vector<4x4xbf16>
    %99 = arith.truncf %83 : vector<4x16xf32> to vector<4x16xbf16>
    %cst_33 = arith.constant dense<0.000000e+00> : vector<4x16xf32>
    %100 = tpu.matmul %98, %99, %cst_33 {dimension_numbers = #tpu.dot_dimension_numbers<[1], [0], [0], [1], [0, 0, 1, 1], [], []>} : vector<4x4xbf16>, vector<4x16xbf16>, vector<4x16xf32> -> vector<4x16xf32>
    %101 = vector.extract_strided_slice %80 {offsets = [0, 16], sizes = [4, 16], strides = [1, 1]} : vector<4x96xf32> to vector<4x16xf32>
    %102 = vector.extract_strided_slice %80 {offsets = [0, 48], sizes = [4, 16], strides = [1, 1]} : vector<4x96xf32> to vector<4x16xf32>
    %103 = vector.extract_strided_slice %80 {offsets = [0, 80], sizes = [4, 16], strides = [1, 1]} : vector<4x96xf32> to vector<4x16xf32>
    %104 = arith.truncf %101 : vector<4x16xf32> to vector<4x16xbf16>
    %105 = arith.truncf %102 : vector<4x16xf32> to vector<4x16xbf16>
    %cst_34 = arith.constant dense<0.000000e+00> : vector<4x4xf32>
    %106 = tpu.matmul %104, %105, %cst_34 {dimension_numbers = #tpu.dot_dimension_numbers<[1], [1], [0], [0], [0, 0, 1, 0], [], []>} : vector<4x16xbf16>, vector<4x16xbf16>, vector<4x4xf32> -> vector<4x4xf32>
    %cst_35 = arith.constant 2.500000e-01 : f32
    %107 = vector.broadcast %cst_35 : f32 to vector<4x4xf32>
    %108 = arith.mulf %106, %107 : vector<4x4xf32>
    %cst_36 = arith.constant dense<0xFF800000> : vector<4xf32>
    %109 = vector.multi_reduction <maximumf>, %108, %cst_36 [1] : vector<4x4xf32> to vector<4xf32>
    %110 = vector.shape_cast %109 : vector<4xf32> to vector<4x1xf32>
    %111 = vector.broadcast %110 : vector<4x1xf32> to vector<4x4xf32>
    %112 = arith.subf %108, %111 : vector<4x4xf32>
    %113 = math.exp %112 : vector<4x4xf32>
    %cst_37 = arith.constant dense<0.000000e+00> : vector<4xf32>
    %114 = vector.multi_reduction <add>, %113, %cst_37 [1] : vector<4x4xf32> to vector<4xf32>
    %115 = vector.shape_cast %114 : vector<4xf32> to vector<4x1xf32>
    %116 = vector.broadcast %115 : vector<4x1xf32> to vector<4x4xf32>
    %117 = arith.divf %113, %116 : vector<4x4xf32>
    %118 = arith.truncf %117 : vector<4x4xf32> to vector<4x4xbf16>
    %119 = arith.truncf %103 : vector<4x16xf32> to vector<4x16xbf16>
    %cst_38 = arith.constant dense<0.000000e+00> : vector<4x16xf32>
    %120 = tpu.matmul %118, %119, %cst_38 {dimension_numbers = #tpu.dot_dimension_numbers<[1], [0], [0], [1], [0, 0, 1, 1], [], []>} : vector<4x4xbf16>, vector<4x16xbf16>, vector<4x16xf32> -> vector<4x16xf32>
    %121 = tpu.concatenate %100, %120 in 1 : vector<4x16xf32>, vector<4x16xf32> -> vector<4x32xf32>
    %122 = tpu.concatenate %79, %121 in 0 : vector<4x32xf32>, vector<4x32xf32> -> vector<8x32xf32>
    %123 = arith.truncf %122 : vector<8x32xf32> to vector<8x32xbf16>
    %c0_39 = arith.constant 0 : index
    %c0_40 = arith.constant 0 : index
    %c0_41 = arith.constant 0 : index
    %124 = vector.load %arg9[%c0_39, %c0_40, %c0_41] : memref<1x32x32xbf16, #tpu.memory_space<vmem>>, vector<1x32x32xbf16>
    %125 = vector.shape_cast %124 : vector<1x32x32xbf16> to vector<32x32xbf16>
    %cst_42 = arith.constant dense<0.000000e+00> : vector<8x32xf32>
    %126 = tpu.matmul %123, %125, %cst_42 {dimension_numbers = #tpu.dot_dimension_numbers<[1], [0], [0], [1], [0, 0, 1, 1], [], []>} : vector<8x32xbf16>, vector<32x32xbf16>, vector<8x32xf32> -> vector<8x32xf32>
    %127 = arith.addf %3, %126 : vector<8x32xf32>
    %c0_43 = arith.constant 0 : index
    %c0_44 = arith.constant 0 : index
    %c0_45 = arith.constant 0 : index
    %128 = vector.load %arg10[%c0_43, %c0_44, %c0_45] : memref<1x1x32xf32, #tpu.memory_space<vmem>>, vector<1x1x32xf32>
    %129 = vector.shape_cast %128 : vector<1x1x32xf32> to vector<1x32xf32>
    %130 = vector.broadcast %129 : vector<1x32xf32> to vector<8x32xf32>
    %131 = arith.addf %127, %130 : vector<8x32xf32>
    %c0_46 = arith.constant 0 : index
    %c0_47 = arith.constant 0 : index
    %c0_48 = arith.constant 0 : index
    %132 = vector.load %arg11[%c0_46, %c0_47, %c0_48] : memref<1x1x32xf32, #tpu.memory_space<vmem>>, vector<1x1x32xf32>
    %133 = vector.shape_cast %132 : vector<1x1x32xf32> to vector<1x32xf32>
    %c0_49 = arith.constant 0 : index
    %c0_50 = arith.constant 0 : index
    %c0_51 = arith.constant 0 : index
    %134 = vector.load %arg12[%c0_49, %c0_50, %c0_51] : memref<1x1x32xf32, #tpu.memory_space<vmem>>, vector<1x1x32xf32>
    %135 = vector.shape_cast %134 : vector<1x1x32xf32> to vector<1x32xf32>
    %cst_52 = arith.constant dense<0.000000e+00> : vector<8xf32>
    %136 = vector.multi_reduction <add>, %131, %cst_52 [1] : vector<8x32xf32> to vector<8xf32>
    %137 = vector.shape_cast %136 : vector<8xf32> to vector<8x1xf32>
    %cst_53 = arith.constant 3.200000e+01 : f32
    %138 = vector.broadcast %cst_53 : f32 to vector<8x1xf32>
    %139 = arith.divf %137, %138 : vector<8x1xf32>
    %140 = vector.broadcast %139 : vector<8x1xf32> to vector<8x32xf32>
    %141 = arith.subf %131, %140 : vector<8x32xf32>
    %142 = arith.mulf %141, %141 : vector<8x32xf32>
    %cst_54 = arith.constant dense<0.000000e+00> : vector<8xf32>
    %143 = vector.multi_reduction <add>, %142, %cst_54 [1] : vector<8x32xf32> to vector<8xf32>
    %144 = vector.shape_cast %143 : vector<8xf32> to vector<8x1xf32>
    %cst_55 = arith.constant 3.200000e+01 : f32
    %145 = vector.broadcast %cst_55 : f32 to vector<8x1xf32>
    %146 = arith.divf %144, %145 : vector<8x1xf32>
    %147 = vector.broadcast %139 : vector<8x1xf32> to vector<8x32xf32>
    %148 = arith.subf %131, %147 : vector<8x32xf32>
    %cst_56 = arith.constant 9.99999974E-6 : f32
    %149 = vector.broadcast %cst_56 : f32 to vector<8x1xf32>
    %150 = arith.addf %146, %149 : vector<8x1xf32>
    %151 = math.rsqrt %150 : vector<8x1xf32>
    %152 = vector.broadcast %151 : vector<8x1xf32> to vector<8x32xf32>
    %153 = arith.mulf %148, %152 : vector<8x32xf32>
    %154 = vector.broadcast %133 : vector<1x32xf32> to vector<8x32xf32>
    %155 = arith.mulf %153, %154 : vector<8x32xf32>
    %156 = vector.broadcast %135 : vector<1x32xf32> to vector<8x32xf32>
    %157 = arith.addf %155, %156 : vector<8x32xf32>
    %158 = arith.truncf %157 : vector<8x32xf32> to vector<8x32xbf16>
    %c0_57 = arith.constant 0 : index
    %c0_58 = arith.constant 0 : index
    %c0_59 = arith.constant 0 : index
    %159 = vector.load %arg13[%c0_57, %c0_58, %c0_59] : memref<1x32x64xbf16, #tpu.memory_space<vmem>>, vector<1x32x64xbf16>
    %160 = vector.shape_cast %159 : vector<1x32x64xbf16> to vector<32x64xbf16>
    %cst_60 = arith.constant dense<0.000000e+00> : vector<8x64xf32>
    %161 = tpu.matmul %158, %160, %cst_60 {dimension_numbers = #tpu.dot_dimension_numbers<[1], [0], [0], [1], [0, 0, 1, 1], [], []>} : vector<8x32xbf16>, vector<32x64xbf16>, vector<8x64xf32> -> vector<8x64xf32>
    %c0_61 = arith.constant 0 : index
    %c0_62 = arith.constant 0 : index
    %c0_63 = arith.constant 0 : index
    %162 = vector.load %arg14[%c0_61, %c0_62, %c0_63] : memref<1x1x64xf32, #tpu.memory_space<vmem>>, vector<1x1x64xf32>
    %163 = vector.shape_cast %162 : vector<1x1x64xf32> to vector<1x64xf32>
    %164 = vector.broadcast %163 : vector<1x64xf32> to vector<8x64xf32>
    %165 = arith.addf %161, %164 : vector<8x64xf32>
    %166 = arith.mulf %165, %165 : vector<8x64xf32>
    %167 = arith.mulf %165, %166 : vector<8x64xf32>
    %cst_64 = arith.constant 4.471500e-02 : f32
    %168 = vector.broadcast %cst_64 : f32 to vector<8x64xf32>
    %169 = arith.mulf %168, %167 : vector<8x64xf32>
    %170 = arith.addf %165, %169 : vector<8x64xf32>
    %cst_65 = arith.constant 0.797884583 : f32
    %171 = vector.broadcast %cst_65 : f32 to vector<8x64xf32>
    %172 = arith.mulf %171, %170 : vector<8x64xf32>
    %173 = math.tanh %172 : vector<8x64xf32>
    %cst_66 = arith.constant 1.000000e+00 : f32
    %174 = vector.broadcast %cst_66 : f32 to vector<8x64xf32>
    %175 = arith.addf %174, %173 : vector<8x64xf32>
    %cst_67 = arith.constant 5.000000e-01 : f32
    %176 = vector.broadcast %cst_67 : f32 to vector<8x64xf32>
    %177 = arith.mulf %176, %175 : vector<8x64xf32>
    %178 = arith.mulf %165, %177 : vector<8x64xf32>
    %179 = arith.truncf %178 : vector<8x64xf32> to vector<8x64xbf16>
    %c0_68 = arith.constant 0 : index
    %c0_69 = arith.constant 0 : index
    %c0_70 = arith.constant 0 : index
    %180 = vector.load %arg15[%c0_68, %c0_69, %c0_70] : memref<1x64x32xbf16, #tpu.memory_space<vmem>>, vector<1x64x32xbf16>
    %181 = vector.shape_cast %180 : vector<1x64x32xbf16> to vector<64x32xbf16>
    %cst_71 = arith.constant dense<0.000000e+00> : vector<8x32xf32>
    %182 = tpu.matmul %179, %181, %cst_71 {dimension_numbers = #tpu.dot_dimension_numbers<[1], [0], [0], [1], [0, 0, 1, 1], [], []>} : vector<8x64xbf16>, vector<64x32xbf16>, vector<8x32xf32> -> vector<8x32xf32>
    %c0_72 = arith.constant 0 : index
    %c0_73 = arith.constant 0 : index
    %c0_74 = arith.constant 0 : index
    %183 = vector.load %arg16[%c0_72, %c0_73, %c0_74] : memref<1x1x32xf32, #tpu.memory_space<vmem>>, vector<1x1x32xf32>
    %184 = vector.shape_cast %183 : vector<1x1x32xf32> to vector<1x32xf32>
    %185 = vector.broadcast %184 : vector<1x32xf32> to vector<8x32xf32>
    %186 = arith.addf %182, %185 : vector<8x32xf32>
    %187 = arith.addf %131, %186 : vector<8x32xf32>
    %c0_75 = arith.constant 0 : index
    %c0_76 = arith.constant 0 : index
    %188 = vector.load %arg17[%c0_75, %c0_76] : memref<8x32xf32, #tpu.memory_space<vmem>>, vector<8x32xf32>
    tpu.vector_store %arg17[%c0_75, %c0_76], %187 {strides = array<i32>} : memref<8x32xf32, #tpu.memory_space<vmem>>, vector<8x32xf32>,
    return
  }
  func.func @transform_0(%arg0: i32) -> (i32, i32) {
    %c0_i32 = arith.constant 0 : i32
    %c0_i32_0 = arith.constant 0 : i32
    %c0_i32_1 = arith.constant 0 : i32
    return %c0_i32, %c0_i32_0 : i32, i32
  }
  func.func @transform_1(%arg0: i32) -> (i32, i32) {
    %c0_i32 = arith.constant 0 : i32
    %c0_i32_0 = arith.constant 0 : i32
    %c0_i32_1 = arith.constant 0 : i32
    return %c0_i32, %c0_i32_0 : i32, i32
  }
  func.func @transform_2(%arg0: i32) -> (i32, i32) {
    %c0_i32 = arith.constant 0 : i32
    %c0_i32_0 = arith.constant 0 : i32
    %c0_i32_1 = arith.constant 0 : i32
    return %c0_i32, %c0_i32_0 : i32, i32
  }
  func.func @transform_3(%arg0: i32) -> (i32, i32) {
    %c0_i32 = arith.constant 0 : i32
    %c0_i32_0 = arith.constant 0 : i32
    %c0_i32_1 = arith.constant 0 : i32
    return %c0_i32, %c0_i32_0 : i32, i32
  }
  func.func @transform_4(%arg0: i32) -> (i32, i32, i32) {
    %c0_i32 = arith.constant 0 : i32
    %c0_i32_0 = arith.constant 0 : i32
    %c0_i32_1 = arith.constant 0 : i32
    return %arg0, %c0_i32, %c0_i32_0 : i32, i32, i32
  }
  func.func @transform_5(%arg0: i32) -> (i32, i32, i32) {
    %c0_i32 = arith.constant 0 : i32
    %c0_i32_0 = arith.constant 0 : i32
    %c0_i32_1 = arith.constant 0 : i32
    return %arg0, %c0_i32, %c0_i32_0 : i32, i32, i32
  }
  func.func @transform_6(%arg0: i32) -> (i32, i32, i32) {
    %c0_i32 = arith.constant 0 : i32
    %c0_i32_0 = arith.constant 0 : i32
    %c0_i32_1 = arith.constant 0 : i32
    return %arg0, %c0_i32, %c0_i32_0 : i32, i32, i32
  }
  func.func @transform_7(%arg0: i32) -> (i32, i32, i32) {
    %c0_i32 = arith.constant 0 : i32
    %c0_i32_0 = arith.constant 0 : i32
    %c0_i32_1 = arith.constant 0 : i32
    return %arg0, %c0_i32, %c0_i32_0 : i32, i32, i32
  }
  func.func @transform_8(%arg0: i32) -> (i32, i32, i32) {
    %c0_i32 = arith.constant 0 : i32
    %c0_i32_0 = arith.constant 0 : i32
    %c0_i32_1 = arith.constant 0 : i32
    return %arg0, %c0_i32, %c0_i32_0 : i32, i32, i32
  }
  func.func @transform_9(%arg0: i32) -> (i32, i32, i32) {
    %c0_i32 = arith.constant 0 : i32
    %c0_i32_0 = arith.constant 0 : i32
    %c0_i32_1 = arith.constant 0 : i32
    return %arg0, %c0_i32, %c0_i32_0 : i32, i32, i32
  }
  func.func @transform_10(%arg0: i32) -> (i32, i32, i32) {
    %c0_i32 = arith.constant 0 : i32
    %c0_i32_0 = arith.constant 0 : i32
    %c0_i32_1 = arith.constant 0 : i32
    return %arg0, %c0_i32, %c0_i32_0 : i32, i32, i32
  }
  func.func @transform_11(%arg0: i32) -> (i32, i32, i32) {
    %c0_i32 = arith.constant 0 : i32
    %c0_i32_0 = arith.constant 0 : i32
    %c0_i32_1 = arith.constant 0 : i32
    return %arg0, %c0_i32, %c0_i32_0 : i32, i32, i32
  }
  func.func @transform_12(%arg0: i32) -> (i32, i32, i32) {
    %c0_i32 = arith.constant 0 : i32
    %c0_i32_0 = arith.constant 0 : i32
    %c0_i32_1 = arith.constant 0 : i32
    return %arg0, %c0_i32, %c0_i32_0 : i32, i32, i32
  }
  func.func @transform_13(%arg0: i32) -> (i32, i32, i32) {
    %c0_i32 = arith.constant 0 : i32
    %c0_i32_0 = arith.constant 0 : i32
    %c0_i32_1 = arith.constant 0 : i32
    return %arg0, %c0_i32, %c0_i32_0 : i32, i32, i32
  }
  func.func @transform_14(%arg0: i32) -> (i32, i32, i32) {
    %c0_i32 = arith.constant 0 : i32
    %c0_i32_0 = arith.constant 0 : i32
    %c0_i32_1 = arith.constant 0 : i32
    return %arg0, %c0_i32, %c0_i32_0 : i32, i32, i32
  }
  func.func @transform_15(%arg0: i32) -> (i32, i32, i32) {
    %c0_i32 = arith.constant 0 : i32
    %c0_i32_0 = arith.constant 0 : i32
    %c0_i32_1 = arith.constant 0 : i32
    return %arg0, %c0_i32, %c0_i32_0 : i32, i32, i32
  }
  func.func @transform_16(%arg0: i32) -> (i32, i32) {
    %c0_i32 = arith.constant 0 : i32
    %c0_i32_0 = arith.constant 0 : i32
    %c0_i32_1 = arith.constant 0 : i32
    return %c0_i32, %c0_i32_0 : i32, i32
  }
}

module attributes {stable_mosaic.version = 11 : i64} {
  func.func @_decoder_kernel(%arg0: memref<8x32xf32, #tpu.memory_space<vmem>>, %arg1: memref<32x32xbf16, #tpu.memory_space<vmem>>, %arg2: memref<9x8x8xbf16, #tpu.memory_space<vmem>>, %arg3: memref<8x288xbf16, #tpu.memory_space<vmem>>, %arg4: memref<8x1xf32, #tpu.memory_space<vmem>>, %arg5: memref<8x1xf32, #tpu.memory_space<vmem>>, %arg6: memref<8x32xbf16, #tpu.memory_space<vmem>>, %arg7: memref<9x32x32xbf16, #tpu.memory_space<vmem>>, %arg8: memref<8x72xbf16, #tpu.memory_space<vmem>>, %arg9: memref<8x1xf32, #tpu.memory_space<vmem>>, %arg10: memref<8x1xf32, #tpu.memory_space<vmem>>, %arg11: memref<2x8xbf16, #tpu.memory_space<vmem>>, %arg12: memref<2x1xf32, #tpu.memory_space<vmem>>, %arg13: memref<32x512xbf16, #tpu.memory_space<vmem>>, %arg14: memref<2x2x256xf32, #tpu.memory_space<vmem>>) attributes {dimension_semantics = [], scalar_prefetch = 0 : i64, scratch_operands = 0 : i64, tpu.core_type = #tpu.core_type<tc>} {
    %c0 = arith.constant 0 : index
    %c0_0 = arith.constant 0 : index
    %0 = vector.load %arg1[%c0, %c0_0] : memref<32x32xbf16, #tpu.memory_space<vmem>>, vector<32x32xbf16>
    %c0_1 = arith.constant 0 : index
    %c0_2 = arith.constant 0 : index
    %1 = vector.load %arg0[%c0_1, %c0_2] : memref<8x32xf32, #tpu.memory_space<vmem>>, vector<4x32xf32>
    %2 = arith.truncf %1 : vector<4x32xf32> to vector<4x32xbf16>
    %cst = arith.constant dense<0.000000e+00> : vector<32x4xf32>
    %3 = tpu.matmul %0, %2, %cst {dimension_numbers = #tpu.dot_dimension_numbers<[1], [1], [0], [0], [0, 0, 1, 0], [], []>} : vector<32x32xbf16>, vector<4x32xbf16>, vector<32x4xf32> -> vector<32x4xf32>
    %c0_3 = arith.constant 0 : index
    %c0_4 = arith.constant 0 : index
    %4 = vector.load %arg1[%c0_3, %c0_4] : memref<32x32xbf16, #tpu.memory_space<vmem>>, vector<32x32xbf16>
    %c4 = arith.constant 4 : index
    %c0_5 = arith.constant 0 : index
    %5 = vector.load %arg0[%c4, %c0_5] : memref<8x32xf32, #tpu.memory_space<vmem>>, vector<4x32xf32>
    %6 = arith.truncf %5 : vector<4x32xf32> to vector<4x32xbf16>
    %cst_6 = arith.constant dense<0.000000e+00> : vector<32x4xf32>
    %7 = tpu.matmul %4, %6, %cst_6 {dimension_numbers = #tpu.dot_dimension_numbers<[1], [1], [0], [0], [0, 0, 1, 0], [], []>} : vector<32x32xbf16>, vector<4x32xbf16>, vector<32x4xf32> -> vector<32x4xf32>
    %8 = tpu.concatenate %3, %7 in 1 : vector<32x4xf32>, vector<32x4xf32> -> vector<32x8xf32>
    %9 = arith.truncf %8 : vector<32x8xf32> to vector<32x8xbf16>
    %c0_7 = arith.constant 0 : index
    %c0_8 = arith.constant 0 : index
    %c0_9 = arith.constant 0 : index
    %10 = vector.load %arg2[%c0_7, %c0_8, %c0_9] : memref<9x8x8xbf16, #tpu.memory_space<vmem>>, vector<1x8x8xbf16>
    %11 = vector.shape_cast %10 : vector<1x8x8xbf16> to vector<8x8xbf16>
    %cst_10 = arith.constant dense<0.000000e+00> : vector<32x8xf32>
    %12 = tpu.matmul %9, %11, %cst_10 {dimension_numbers = #tpu.dot_dimension_numbers<[1], [0], [0], [1], [0, 0, 1, 1], [], []>} : vector<32x8xbf16>, vector<8x8xbf16>, vector<32x8xf32> -> vector<32x8xf32>
    %c1 = arith.constant 1 : index
    %c0_11 = arith.constant 0 : index
    %c0_12 = arith.constant 0 : index
    %13 = vector.load %arg2[%c1, %c0_11, %c0_12] : memref<9x8x8xbf16, #tpu.memory_space<vmem>>, vector<1x8x8xbf16>
    %14 = vector.shape_cast %13 : vector<1x8x8xbf16> to vector<8x8xbf16>
    %cst_13 = arith.constant dense<0.000000e+00> : vector<32x8xf32>
    %15 = tpu.matmul %9, %14, %cst_13 {dimension_numbers = #tpu.dot_dimension_numbers<[1], [0], [0], [1], [0, 0, 1, 1], [], []>} : vector<32x8xbf16>, vector<8x8xbf16>, vector<32x8xf32> -> vector<32x8xf32>
    %c2 = arith.constant 2 : index
    %c0_14 = arith.constant 0 : index
    %c0_15 = arith.constant 0 : index
    %16 = vector.load %arg2[%c2, %c0_14, %c0_15] : memref<9x8x8xbf16, #tpu.memory_space<vmem>>, vector<1x8x8xbf16>
    %17 = vector.shape_cast %16 : vector<1x8x8xbf16> to vector<8x8xbf16>
    %cst_16 = arith.constant dense<0.000000e+00> : vector<32x8xf32>
    %18 = tpu.matmul %9, %17, %cst_16 {dimension_numbers = #tpu.dot_dimension_numbers<[1], [0], [0], [1], [0, 0, 1, 1], [], []>} : vector<32x8xbf16>, vector<8x8xbf16>, vector<32x8xf32> -> vector<32x8xf32>
    %c3 = arith.constant 3 : index
    %c0_17 = arith.constant 0 : index
    %c0_18 = arith.constant 0 : index
    %19 = vector.load %arg2[%c3, %c0_17, %c0_18] : memref<9x8x8xbf16, #tpu.memory_space<vmem>>, vector<1x8x8xbf16>
    %20 = vector.shape_cast %19 : vector<1x8x8xbf16> to vector<8x8xbf16>
    %cst_19 = arith.constant dense<0.000000e+00> : vector<32x8xf32>
    %21 = tpu.matmul %9, %20, %cst_19 {dimension_numbers = #tpu.dot_dimension_numbers<[1], [0], [0], [1], [0, 0, 1, 1], [], []>} : vector<32x8xbf16>, vector<8x8xbf16>, vector<32x8xf32> -> vector<32x8xf32>
    %c4_20 = arith.constant 4 : index
    %c0_21 = arith.constant 0 : index
    %c0_22 = arith.constant 0 : index
    %22 = vector.load %arg2[%c4_20, %c0_21, %c0_22] : memref<9x8x8xbf16, #tpu.memory_space<vmem>>, vector<1x8x8xbf16>
    %23 = vector.shape_cast %22 : vector<1x8x8xbf16> to vector<8x8xbf16>
    %cst_23 = arith.constant dense<0.000000e+00> : vector<32x8xf32>
    %24 = tpu.matmul %9, %23, %cst_23 {dimension_numbers = #tpu.dot_dimension_numbers<[1], [0], [0], [1], [0, 0, 1, 1], [], []>} : vector<32x8xbf16>, vector<8x8xbf16>, vector<32x8xf32> -> vector<32x8xf32>
    %c5 = arith.constant 5 : index
    %c0_24 = arith.constant 0 : index
    %c0_25 = arith.constant 0 : index
    %25 = vector.load %arg2[%c5, %c0_24, %c0_25] : memref<9x8x8xbf16, #tpu.memory_space<vmem>>, vector<1x8x8xbf16>
    %26 = vector.shape_cast %25 : vector<1x8x8xbf16> to vector<8x8xbf16>
    %cst_26 = arith.constant dense<0.000000e+00> : vector<32x8xf32>
    %27 = tpu.matmul %9, %26, %cst_26 {dimension_numbers = #tpu.dot_dimension_numbers<[1], [0], [0], [1], [0, 0, 1, 1], [], []>} : vector<32x8xbf16>, vector<8x8xbf16>, vector<32x8xf32> -> vector<32x8xf32>
    %c6 = arith.constant 6 : index
    %c0_27 = arith.constant 0 : index
    %c0_28 = arith.constant 0 : index
    %28 = vector.load %arg2[%c6, %c0_27, %c0_28] : memref<9x8x8xbf16, #tpu.memory_space<vmem>>, vector<1x8x8xbf16>
    %29 = vector.shape_cast %28 : vector<1x8x8xbf16> to vector<8x8xbf16>
    %cst_29 = arith.constant dense<0.000000e+00> : vector<32x8xf32>
    %30 = tpu.matmul %9, %29, %cst_29 {dimension_numbers = #tpu.dot_dimension_numbers<[1], [0], [0], [1], [0, 0, 1, 1], [], []>} : vector<32x8xbf16>, vector<8x8xbf16>, vector<32x8xf32> -> vector<32x8xf32>
    %c7 = arith.constant 7 : index
    %c0_30 = arith.constant 0 : index
    %c0_31 = arith.constant 0 : index
    %31 = vector.load %arg2[%c7, %c0_30, %c0_31] : memref<9x8x8xbf16, #tpu.memory_space<vmem>>, vector<1x8x8xbf16>
    %32 = vector.shape_cast %31 : vector<1x8x8xbf16> to vector<8x8xbf16>
    %cst_32 = arith.constant dense<0.000000e+00> : vector<32x8xf32>
    %33 = tpu.matmul %9, %32, %cst_32 {dimension_numbers = #tpu.dot_dimension_numbers<[1], [0], [0], [1], [0, 0, 1, 1], [], []>} : vector<32x8xbf16>, vector<8x8xbf16>, vector<32x8xf32> -> vector<32x8xf32>
    %c8 = arith.constant 8 : index
    %c0_33 = arith.constant 0 : index
    %c0_34 = arith.constant 0 : index
    %34 = vector.load %arg2[%c8, %c0_33, %c0_34] : memref<9x8x8xbf16, #tpu.memory_space<vmem>>, vector<1x8x8xbf16>
    %35 = vector.shape_cast %34 : vector<1x8x8xbf16> to vector<8x8xbf16>
    %cst_35 = arith.constant dense<0.000000e+00> : vector<32x8xf32>
    %36 = tpu.matmul %9, %35, %cst_35 {dimension_numbers = #tpu.dot_dimension_numbers<[1], [0], [0], [1], [0, 0, 1, 1], [], []>} : vector<32x8xbf16>, vector<8x8xbf16>, vector<32x8xf32> -> vector<32x8xf32>
    %37 = tpu.concatenate %12, %15, %18, %21, %24, %27, %30, %33, %36 in 0 : vector<32x8xf32>, vector<32x8xf32>, vector<32x8xf32>, vector<32x8xf32>, vector<32x8xf32>, vector<32x8xf32>, vector<32x8xf32>, vector<32x8xf32>, vector<32x8xf32> -> vector<288x8xf32>
    %c0_36 = arith.constant 0 : index
    %c0_37 = arith.constant 0 : index
    %38 = vector.load %arg3[%c0_36, %c0_37] : memref<8x288xbf16, #tpu.memory_space<vmem>>, vector<8x288xbf16>
    %39 = arith.truncf %37 : vector<288x8xf32> to vector<288x8xbf16>
    %cst_38 = arith.constant dense<0.000000e+00> : vector<8x8xf32>
    %40 = tpu.matmul %38, %39, %cst_38 {dimension_numbers = #tpu.dot_dimension_numbers<[1], [0], [0], [1], [0, 0, 1, 1], [], []>} : vector<8x288xbf16>, vector<288x8xbf16>, vector<8x8xf32> -> vector<8x8xf32>
    %c0_39 = arith.constant 0 : index
    %c0_40 = arith.constant 0 : index
    %41 = vector.load %arg4[%c0_39, %c0_40] : memref<8x1xf32, #tpu.memory_space<vmem>>, vector<8x1xf32>
    %42 = vector.broadcast %41 : vector<8x1xf32> to vector<8x8xf32>
    %43 = arith.mulf %40, %42 : vector<8x8xf32>
    %c0_41 = arith.constant 0 : index
    %c0_42 = arith.constant 0 : index
    %44 = vector.load %arg5[%c0_41, %c0_42] : memref<8x1xf32, #tpu.memory_space<vmem>>, vector<8x1xf32>
    %45 = vector.broadcast %44 : vector<8x1xf32> to vector<8x8xf32>
    %46 = arith.addf %43, %45 : vector<8x8xf32>
    %cst_43 = arith.constant 0.000000e+00 : f32
    %47 = vector.broadcast %cst_43 : f32 to vector<8x8xf32>
    %48 = arith.maximumf %46, %47 : vector<8x8xf32>
    %49 = arith.truncf %48 : vector<8x8xf32> to vector<8x8xbf16>
    %c0_44 = arith.constant 0 : index
    %c0_45 = arith.constant 0 : index
    %50 = vector.load %arg6[%c0_44, %c0_45] : memref<8x32xbf16, #tpu.memory_space<vmem>>, vector<8x32xbf16>
    %cst_46 = arith.constant dense<0.000000e+00> : vector<8x32xf32>
    %51 = tpu.matmul %49, %50, %cst_46 {dimension_numbers = #tpu.dot_dimension_numbers<[1], [0], [0], [1], [0, 0, 1, 1], [], []>} : vector<8x8xbf16>, vector<8x32xbf16>, vector<8x32xf32> -> vector<8x32xf32>
    %52 = arith.truncf %51 : vector<8x32xf32> to vector<8x32xbf16>
    %c0_47 = arith.constant 0 : index
    %c0_48 = arith.constant 0 : index
    %c0_49 = arith.constant 0 : index
    %53 = vector.load %arg7[%c0_47, %c0_48, %c0_49] : memref<9x32x32xbf16, #tpu.memory_space<vmem>>, vector<1x32x32xbf16>
    %54 = vector.shape_cast %53 : vector<1x32x32xbf16> to vector<32x32xbf16>
    %cst_50 = arith.constant dense<0.000000e+00> : vector<8x32xf32>
    %55 = tpu.matmul %52, %54, %cst_50 {dimension_numbers = #tpu.dot_dimension_numbers<[1], [0], [0], [1], [0, 0, 1, 1], [], []>} : vector<8x32xbf16>, vector<32x32xbf16>, vector<8x32xf32> -> vector<8x32xf32>
    %c1_51 = arith.constant 1 : index
    %c0_52 = arith.constant 0 : index
    %c0_53 = arith.constant 0 : index
    %56 = vector.load %arg7[%c1_51, %c0_52, %c0_53] : memref<9x32x32xbf16, #tpu.memory_space<vmem>>, vector<1x32x32xbf16>
    %57 = vector.shape_cast %56 : vector<1x32x32xbf16> to vector<32x32xbf16>
    %cst_54 = arith.constant dense<0.000000e+00> : vector<8x32xf32>
    %58 = tpu.matmul %52, %57, %cst_54 {dimension_numbers = #tpu.dot_dimension_numbers<[1], [0], [0], [1], [0, 0, 1, 1], [], []>} : vector<8x32xbf16>, vector<32x32xbf16>, vector<8x32xf32> -> vector<8x32xf32>
    %c2_55 = arith.constant 2 : index
    %c0_56 = arith.constant 0 : index
    %c0_57 = arith.constant 0 : index
    %59 = vector.load %arg7[%c2_55, %c0_56, %c0_57] : memref<9x32x32xbf16, #tpu.memory_space<vmem>>, vector<1x32x32xbf16>
    %60 = vector.shape_cast %59 : vector<1x32x32xbf16> to vector<32x32xbf16>
    %cst_58 = arith.constant dense<0.000000e+00> : vector<8x32xf32>
    %61 = tpu.matmul %52, %60, %cst_58 {dimension_numbers = #tpu.dot_dimension_numbers<[1], [0], [0], [1], [0, 0, 1, 1], [], []>} : vector<8x32xbf16>, vector<32x32xbf16>, vector<8x32xf32> -> vector<8x32xf32>
    %c3_59 = arith.constant 3 : index
    %c0_60 = arith.constant 0 : index
    %c0_61 = arith.constant 0 : index
    %62 = vector.load %arg7[%c3_59, %c0_60, %c0_61] : memref<9x32x32xbf16, #tpu.memory_space<vmem>>, vector<1x32x32xbf16>
    %63 = vector.shape_cast %62 : vector<1x32x32xbf16> to vector<32x32xbf16>
    %cst_62 = arith.constant dense<0.000000e+00> : vector<8x32xf32>
    %64 = tpu.matmul %52, %63, %cst_62 {dimension_numbers = #tpu.dot_dimension_numbers<[1], [0], [0], [1], [0, 0, 1, 1], [], []>} : vector<8x32xbf16>, vector<32x32xbf16>, vector<8x32xf32> -> vector<8x32xf32>
    %c4_63 = arith.constant 4 : index
    %c0_64 = arith.constant 0 : index
    %c0_65 = arith.constant 0 : index
    %65 = vector.load %arg7[%c4_63, %c0_64, %c0_65] : memref<9x32x32xbf16, #tpu.memory_space<vmem>>, vector<1x32x32xbf16>
    %66 = vector.shape_cast %65 : vector<1x32x32xbf16> to vector<32x32xbf16>
    %cst_66 = arith.constant dense<0.000000e+00> : vector<8x32xf32>
    %67 = tpu.matmul %52, %66, %cst_66 {dimension_numbers = #tpu.dot_dimension_numbers<[1], [0], [0], [1], [0, 0, 1, 1], [], []>} : vector<8x32xbf16>, vector<32x32xbf16>, vector<8x32xf32> -> vector<8x32xf32>
    %c5_67 = arith.constant 5 : index
    %c0_68 = arith.constant 0 : index
    %c0_69 = arith.constant 0 : index
    %68 = vector.load %arg7[%c5_67, %c0_68, %c0_69] : memref<9x32x32xbf16, #tpu.memory_space<vmem>>, vector<1x32x32xbf16>
    %69 = vector.shape_cast %68 : vector<1x32x32xbf16> to vector<32x32xbf16>
    %cst_70 = arith.constant dense<0.000000e+00> : vector<8x32xf32>
    %70 = tpu.matmul %52, %69, %cst_70 {dimension_numbers = #tpu.dot_dimension_numbers<[1], [0], [0], [1], [0, 0, 1, 1], [], []>} : vector<8x32xbf16>, vector<32x32xbf16>, vector<8x32xf32> -> vector<8x32xf32>
    %c6_71 = arith.constant 6 : index
    %c0_72 = arith.constant 0 : index
    %c0_73 = arith.constant 0 : index
    %71 = vector.load %arg7[%c6_71, %c0_72, %c0_73] : memref<9x32x32xbf16, #tpu.memory_space<vmem>>, vector<1x32x32xbf16>
    %72 = vector.shape_cast %71 : vector<1x32x32xbf16> to vector<32x32xbf16>
    %cst_74 = arith.constant dense<0.000000e+00> : vector<8x32xf32>
    %73 = tpu.matmul %52, %72, %cst_74 {dimension_numbers = #tpu.dot_dimension_numbers<[1], [0], [0], [1], [0, 0, 1, 1], [], []>} : vector<8x32xbf16>, vector<32x32xbf16>, vector<8x32xf32> -> vector<8x32xf32>
    %c7_75 = arith.constant 7 : index
    %c0_76 = arith.constant 0 : index
    %c0_77 = arith.constant 0 : index
    %74 = vector.load %arg7[%c7_75, %c0_76, %c0_77] : memref<9x32x32xbf16, #tpu.memory_space<vmem>>, vector<1x32x32xbf16>
    %75 = vector.shape_cast %74 : vector<1x32x32xbf16> to vector<32x32xbf16>
    %cst_78 = arith.constant dense<0.000000e+00> : vector<8x32xf32>
    %76 = tpu.matmul %52, %75, %cst_78 {dimension_numbers = #tpu.dot_dimension_numbers<[1], [0], [0], [1], [0, 0, 1, 1], [], []>} : vector<8x32xbf16>, vector<32x32xbf16>, vector<8x32xf32> -> vector<8x32xf32>
    %c8_79 = arith.constant 8 : index
    %c0_80 = arith.constant 0 : index
    %c0_81 = arith.constant 0 : index
    %77 = vector.load %arg7[%c8_79, %c0_80, %c0_81] : memref<9x32x32xbf16, #tpu.memory_space<vmem>>, vector<1x32x32xbf16>
    %78 = vector.shape_cast %77 : vector<1x32x32xbf16> to vector<32x32xbf16>
    %cst_82 = arith.constant dense<0.000000e+00> : vector<8x32xf32>
    %79 = tpu.matmul %52, %78, %cst_82 {dimension_numbers = #tpu.dot_dimension_numbers<[1], [0], [0], [1], [0, 0, 1, 1], [], []>} : vector<8x32xbf16>, vector<32x32xbf16>, vector<8x32xf32> -> vector<8x32xf32>
    %80 = tpu.concatenate %55, %58, %61, %64, %67, %70, %73, %76, %79 in 0 : vector<8x32xf32>, vector<8x32xf32>, vector<8x32xf32>, vector<8x32xf32>, vector<8x32xf32>, vector<8x32xf32>, vector<8x32xf32>, vector<8x32xf32>, vector<8x32xf32> -> vector<72x32xf32>
    %c0_83 = arith.constant 0 : index
    %c0_84 = arith.constant 0 : index
    %81 = vector.load %arg8[%c0_83, %c0_84] : memref<8x72xbf16, #tpu.memory_space<vmem>>, vector<8x72xbf16>
    %82 = arith.truncf %80 : vector<72x32xf32> to vector<72x32xbf16>
    %cst_85 = arith.constant dense<0.000000e+00> : vector<8x32xf32>
    %83 = tpu.matmul %81, %82, %cst_85 {dimension_numbers = #tpu.dot_dimension_numbers<[1], [0], [0], [1], [0, 0, 1, 1], [], []>} : vector<8x72xbf16>, vector<72x32xbf16>, vector<8x32xf32> -> vector<8x32xf32>
    %c0_86 = arith.constant 0 : index
    %c0_87 = arith.constant 0 : index
    %84 = vector.load %arg9[%c0_86, %c0_87] : memref<8x1xf32, #tpu.memory_space<vmem>>, vector<8x1xf32>
    %85 = vector.broadcast %84 : vector<8x1xf32> to vector<8x32xf32>
    %86 = arith.mulf %83, %85 : vector<8x32xf32>
    %c0_88 = arith.constant 0 : index
    %c0_89 = arith.constant 0 : index
    %87 = vector.load %arg10[%c0_88, %c0_89] : memref<8x1xf32, #tpu.memory_space<vmem>>, vector<8x1xf32>
    %88 = vector.broadcast %87 : vector<8x1xf32> to vector<8x32xf32>
    %89 = arith.addf %86, %88 : vector<8x32xf32>
    %cst_90 = arith.constant 0.000000e+00 : f32
    %90 = vector.broadcast %cst_90 : f32 to vector<8x32xf32>
    %91 = arith.maximumf %89, %90 : vector<8x32xf32>
    %c0_91 = arith.constant 0 : index
    %c0_92 = arith.constant 0 : index
    %92 = vector.load %arg11[%c0_91, %c0_92] : memref<2x8xbf16, #tpu.memory_space<vmem>>, vector<2x8xbf16>
    %93 = arith.truncf %91 : vector<8x32xf32> to vector<8x32xbf16>
    %cst_93 = arith.constant dense<0.000000e+00> : vector<2x32xf32>
    %94 = tpu.matmul %92, %93, %cst_93 {dimension_numbers = #tpu.dot_dimension_numbers<[1], [0], [0], [1], [0, 0, 1, 1], [], []>} : vector<2x8xbf16>, vector<8x32xbf16>, vector<2x32xf32> -> vector<2x32xf32>
    %c0_94 = arith.constant 0 : index
    %c0_95 = arith.constant 0 : index
    %95 = vector.load %arg12[%c0_94, %c0_95] : memref<2x1xf32, #tpu.memory_space<vmem>>, vector<2x1xf32>
    %96 = vector.broadcast %95 : vector<2x1xf32> to vector<2x32xf32>
    %97 = arith.addf %94, %96 : vector<2x32xf32>
    %98 = arith.truncf %97 : vector<2x32xf32> to vector<2x32xbf16>
    %c0_96 = arith.constant 0 : index
    %c0_97 = arith.constant 0 : index
    %99 = vector.load %arg13[%c0_96, %c0_97] : memref<32x512xbf16, #tpu.memory_space<vmem>>, vector<32x512xbf16>
    %cst_98 = arith.constant dense<0.000000e+00> : vector<2x512xf32>
    %100 = tpu.matmul %98, %99, %cst_98 {dimension_numbers = #tpu.dot_dimension_numbers<[1], [0], [0], [1], [0, 0, 1, 1], [], []>} : vector<2x32xbf16>, vector<32x512xbf16>, vector<2x512xf32> -> vector<2x512xf32>
    %101 = vector.extract_strided_slice %100 {offsets = [0, 0], sizes = [2, 256], strides = [1, 1]} : vector<2x512xf32> to vector<2x256xf32>
    %c0_99 = arith.constant 0 : index
    %c0_100 = arith.constant 0 : index
    %c0_101 = arith.constant 0 : index
    %102 = vector.load %arg14[%c0_99, %c0_100, %c0_101] : memref<2x2x256xf32, #tpu.memory_space<vmem>>, vector<1x2x256xf32>
    %103 = vector.shape_cast %102 : vector<1x2x256xf32> to vector<2x256xf32>
    %104 = vector.shape_cast %101 : vector<2x256xf32> to vector<1x2x256xf32>
    tpu.vector_store %arg14[%c0_99, %c0_100, %c0_101], %104 {strides = array<i32>} : memref<2x2x256xf32, #tpu.memory_space<vmem>>, vector<1x2x256xf32>,
    %105 = vector.extract_strided_slice %100 {offsets = [0, 256], sizes = [2, 256], strides = [1, 1]} : vector<2x512xf32> to vector<2x256xf32>
    %c1_102 = arith.constant 1 : index
    %c0_103 = arith.constant 0 : index
    %c0_104 = arith.constant 0 : index
    %106 = vector.load %arg14[%c1_102, %c0_103, %c0_104] : memref<2x2x256xf32, #tpu.memory_space<vmem>>, vector<1x2x256xf32>
    %107 = vector.shape_cast %106 : vector<1x2x256xf32> to vector<2x256xf32>
    %108 = vector.shape_cast %105 : vector<2x256xf32> to vector<1x2x256xf32>
    tpu.vector_store %arg14[%c1_102, %c0_103, %c0_104], %108 {strides = array<i32>} : memref<2x2x256xf32, #tpu.memory_space<vmem>>, vector<1x2x256xf32>,
    return
  }
}

</mosaic_0001>

<llo_original>
// kernel: setr_dsformer_forward.2
$region0: #{setr_dsformer_forward.2}
  #allocation0 [shape = 'u32[]', space=smem, size = 0x4, offset = 0x4, fixed_abs, tag = 'smem constant byte address 0x4 - core index']
  #allocation1 [shape = 'u32[72,128]{1,0:T(1,128)}', space=vmem, size = 0x9000, scoped, tag = 'internal scratch']
  %s0 = inlined_call_operand.vmem [shape: f32[8,256], index: 0, kind: input, shape index: {}]
  %s1 = inlined_call_operand.vmem [shape: bf16[256,32], index: 1, kind: input, shape index: {}]
  %s2 = inlined_call_operand.vmem [shape: f32[1,32], index: 2, kind: input, shape index: {}]
  %s3 = inlined_call_operand.vmem [shape: f32[8,32], index: 3, kind: input, shape index: {}]
  %s4 = inlined_call_operand.vmem [shape: f32[2,1,32], index: 4, kind: input, shape index: {}]
  %s5 = inlined_call_operand.vmem [shape: f32[2,1,32], index: 5, kind: input, shape index: {}]
  %s6 = inlined_call_operand.vmem [shape: bf16[2,32,96], index: 6, kind: input, shape index: {}]
  %s7 = inlined_call_operand.vmem [shape: f32[2,1,96], index: 7, kind: input, shape index: {}]
  %s8 = inlined_call_operand.vmem [shape: bf16[2,32,32], index: 8, kind: input, shape index: {}]
  %s9 = inlined_call_operand.vmem [shape: f32[2,1,32], index: 9, kind: input, shape index: {}]
  %s10 = inlined_call_operand.vmem [shape: f32[2,1,32], index: 10, kind: input, shape index: {}]
  %s11 = inlined_call_operand.vmem [shape: f32[2,1,32], index: 11, kind: input, shape index: {}]
  %s12 = inlined_call_operand.vmem [shape: bf16[2,32,64], index: 12, kind: input, shape index: {}]
  %s13 = inlined_call_operand.vmem [shape: f32[2,1,64], index: 13, kind: input, shape index: {}]
  %s14 = inlined_call_operand.vmem [shape: bf16[2,64,32], index: 14, kind: input, shape index: {}]
  %s15 = inlined_call_operand.vmem [shape: f32[2,1,32], index: 15, kind: input, shape index: {}]
  %s16 = inlined_call_operand.vmem [shape: f32[8,32], index: 16, kind: output, shape index: {}]
  %s17 = sld [smem:[#allocation0]]
  $region101: #{setr_dsformer_forward.2} parent=0
    _
  %s19 = ssub.s32 1, %s17
  %s20 = scalar_select 0, %s19, %s17
  loop: start=0, step=1, limit=4
  $region2: #{setr_dsformer_forward.2} parent=0 // loop_pre_header
    _
  $region3: #{setr_dsformer_forward.2} parent=0 // loop_header
    %s22 = sphi 0, %s26
    %p23 = scmp.ge.s32.totalorder %s22, 4
    %s30 = sphi 0, %s30
    %s32 = sphi 0, %s30
    %s33 = sphi 0, %s32
    %s47 = sphi 0, %s33
    %s51 = sphi 0, %s51
    %s53 = sphi 0, %s51
    %s54 = sphi 0, %s53
    %s68 = sphi 0, %s54
    %s72 = sphi 0, %s72
    %s74 = sphi 0, %s72
    %s75 = sphi 0, %s74
    %s89 = sphi 0, %s75
    %s93 = sphi 0, %s93
    %s95 = sphi 0, %s93
    %s96 = sphi 0, %s95
    %s110 = sphi 0, %s96
    %s116 = sphi 0, %s118
    %s119 = sphi 0, %s116
    %s120 = sphi 0, %s119
    %s136 = sphi 0, %s120
    %s142 = sphi 0, %s144
    %s145 = sphi 0, %s142
    %s146 = sphi 0, %s145
    %s162 = sphi 0, %s146
    %s168 = sphi 0, %s170
    %s171 = sphi 0, %s168
    %s172 = sphi 0, %s171
    %s188 = sphi 0, %s172
    %s194 = sphi 0, %s196
    %s197 = sphi 0, %s194
    %s198 = sphi 0, %s197
    %s214 = sphi 0, %s198
    %s220 = sphi 0, %s222
    %s223 = sphi 0, %s220
    %s224 = sphi 0, %s223
    %s240 = sphi 0, %s224
    %s246 = sphi 0, %s248
    %s249 = sphi 0, %s246
    %s250 = sphi 0, %s249
    %s266 = sphi 0, %s250
    %s272 = sphi 0, %s274
    %s275 = sphi 0, %s272
    %s276 = sphi 0, %s275
    %s292 = sphi 0, %s276
    %s298 = sphi 0, %s300
    %s301 = sphi 0, %s298
    %s302 = sphi 0, %s301
    %s318 = sphi 0, %s302
    %s324 = sphi 0, %s326
    %s327 = sphi 0, %s324
    %s328 = sphi 0, %s327
    %s344 = sphi 0, %s328
    %s350 = sphi 0, %s352
    %s353 = sphi 0, %s350
    %s354 = sphi 0, %s353
    %s370 = sphi 0, %s354
    %s376 = sphi 0, %s378
    %s379 = sphi 0, %s376
    %s380 = sphi 0, %s379
    %s396 = sphi 0, %s380
    %s402 = sphi 0, %s404
    %s405 = sphi 0, %s402
    %s406 = sphi 0, %s405
    %s422 = sphi 0, %s406
    %s426 = sphi 0, %s426
    %s428 = sphi 0, %s426
    %s429 = sphi 0, %s428
    %s443 = sphi 0, %s429
  $region4: #{setr_dsformer_forward.2} parent=0 // loop_header_branch
    %25 = sbr.rel (%p23) target = $region8
  $region5: #{setr_dsformer_forward.2} parent=0 // loop_body
    %s27 = ssub.s32 %s22, 1
    %s28 = ssub.s32 %s22, 2
    %s29 = sadd.s32 %s22, 1
    %s31 = sadd.s32 %s30, 1
    %p34 = scmp.eq.s32.totalorder %s22, 1
    %p35 = scmp.ne.s32.totalorder %s30, %s32
    %p36 = scmp.eq.s32.totalorder %s22, 0
    %p37 = por %p35, %p36
    %p38 = scmp.ne.s32.totalorder %s30, %s32
    %p39 = scmp.eq.s32.totalorder %s27, 1
    %p40 = por %p38, %p39
    %p41 = scmp.ne.s32.totalorder %s32, %s33
    %p42 = scmp.eq.s32.totalorder %s27, 0
    %p43 = por %p41, %p42
    %p44 = scmp.ne.s32.totalorder %s32, %s33
    %p45 = scmp.eq.s32.totalorder %s28, 1
    %p46 = por %p44, %p45
    %p48 = scmp.ne.s32.totalorder %s33, %s47
    %p49 = scmp.eq.s32.totalorder %s28, 0
    %p50 = por %p48, %p49
    %s52 = sadd.s32 %s51, 1
    %p55 = scmp.eq.s32.totalorder %s22, 1
    %p56 = scmp.ne.s32.totalorder %s51, %s53
    %p57 = scmp.eq.s32.totalorder %s22, 0
    %p58 = por %p56, %p57
    %p59 = scmp.ne.s32.totalorder %s51, %s53
    %p60 = scmp.eq.s32.totalorder %s27, 1
    %p61 = por %p59, %p60
    %p62 = scmp.ne.s32.totalorder %s53, %s54
    %p63 = scmp.eq.s32.totalorder %s27, 0
    %p64 = por %p62, %p63
    %p65 = scmp.ne.s32.totalorder %s53, %s54
    %p66 = scmp.eq.s32.totalorder %s28, 1
    %p67 = por %p65, %p66
    %p69 = scmp.ne.s32.totalorder %s54, %s68
    %p70 = scmp.eq.s32.totalorder %s28, 0
    %p71 = por %p69, %p70
    %s73 = sadd.s32 %s72, 1
    %p76 = scmp.eq.s32.totalorder %s22, 1
    %p77 = scmp.ne.s32.totalorder %s72, %s74
    %p78 = scmp.eq.s32.totalorder %s22, 0
    %p79 = por %p77, %p78
    %p80 = scmp.ne.s32.totalorder %s72, %s74
    %p81 = scmp.eq.s32.totalorder %s27, 1
    %p82 = por %p80, %p81
    %p83 = scmp.ne.s32.totalorder %s74, %s75
    %p84 = scmp.eq.s32.totalorder %s27, 0
    %p85 = por %p83, %p84
    %p86 = scmp.ne.s32.totalorder %s74, %s75
    %p87 = scmp.eq.s32.totalorder %s28, 1
    %p88 = por %p86, %p87
    %p90 = scmp.ne.s32.totalorder %s75, %s89
    %p91 = scmp.eq.s32.totalorder %s28, 0
    %p92 = por %p90, %p91
    %s94 = sadd.s32 %s93, 1
    %p97 = scmp.eq.s32.totalorder %s22, 1
    %p98 = scmp.ne.s32.totalorder %s93, %s95
    %p99 = scmp.eq.s32.totalorder %s22, 0
    %p100 = por %p98, %p99
    %p101 = scmp.ne.s32.totalorder %s93, %s95
    %p102 = scmp.eq.s32.totalorder %s27, 1
    %p103 = por %p101, %p102
    %p104 = scmp.ne.s32.totalorder %s95, %s96
    %p105 = scmp.eq.s32.totalorder %s27, 0
    %p106 = por %p104, %p105
    %p107 = scmp.ne.s32.totalorder %s95, %s96
    %p108 = scmp.eq.s32.totalorder %s28, 1
    %p109 = por %p107, %p108
    %p111 = scmp.ne.s32.totalorder %s96, %s110
    %p112 = scmp.eq.s32.totalorder %s28, 0
    %p113 = por %p111, %p112
    %s114 = ssub.s32 %s22, %s29
    %p115 = scmp.eq.s32.totalorder %s114, 0
    %s117 = sadd.s32 %s116, 1
    %s118 = scalar_select %p115, %s116, %s117
    %p121 = pneg %p115
    %p122 = scmp.eq.s32.totalorder %s22, 1
    %p123 = por %p121, %p122
    %p124 = scmp.ne.s32.totalorder %s116, %s119
    %p125 = scmp.eq.s32.totalorder %s22, 0
    %p126 = por %p124, %p125
    %p127 = scmp.ne.s32.totalorder %s116, %s119
    %p128 = scmp.eq.s32.totalorder %s27, 1
    %p129 = por %p127, %p128
    %p130 = scmp.ne.s32.totalorder %s119, %s120
    %p131 = scmp.eq.s32.totalorder %s27, 0
    %p132 = por %p130, %p131
    %p133 = scmp.ne.s32.totalorder %s119, %s120
    %p134 = scmp.eq.s32.totalorder %s28, 1
    %p135 = por %p133, %p134
    %p137 = scmp.ne.s32.totalorder %s120, %s136
    %p138 = scmp.eq.s32.totalorder %s28, 0
    %p139 = por %p137, %p138
    %s140 = ssub.s32 %s22, %s29
    %p141 = scmp.eq.s32.totalorder %s140, 0
    %s143 = sadd.s32 %s142, 1
    %s144 = scalar_select %p141, %s142, %s143
    %p147 = pneg %p141
    %p148 = scmp.eq.s32.totalorder %s22, 1
    %p149 = por %p147, %p148
    %p150 = scmp.ne.s32.totalorder %s142, %s145
    %p151 = scmp.eq.s32.totalorder %s22, 0
    %p152 = por %p150, %p151
    %p153 = scmp.ne.s32.totalorder %s142, %s145
    %p154 = scmp.eq.s32.totalorder %s27, 1
    %p155 = por %p153, %p154
    %p156 = scmp.ne.s32.totalorder %s145, %s146
    %p157 = scmp.eq.s32.totalorder %s27, 0
    %p158 = por %p156, %p157
    %p159 = scmp.ne.s32.totalorder %s145, %s146
    %p160 = scmp.eq.s32.totalorder %s28, 1
    %p161 = por %p159, %p160
    %p163 = scmp.ne.s32.totalorder %s146, %s162
    %p164 = scmp.eq.s32.totalorder %s28, 0
    %p165 = por %p163, %p164
    %s166 = ssub.s32 %s22, %s29
    %p167 = scmp.eq.s32.totalorder %s166, 0
    %s169 = sadd.s32 %s168, 1
    %s170 = scalar_select %p167, %s168, %s169
    %p173 = pneg %p167
    %p174 = scmp.eq.s32.totalorder %s22, 1
    %p175 = por %p173, %p174
    %p176 = scmp.ne.s32.totalorder %s168, %s171
    %p177 = scmp.eq.s32.totalorder %s22, 0
    %p178 = por %p176, %p177
    %p179 = scmp.ne.s32.totalorder %s168, %s171
    %p180 = scmp.eq.s32.totalorder %s27, 1
    %p181 = por %p179, %p180
    %p182 = scmp.ne.s32.totalorder %s171, %s172
    %p183 = scmp.eq.s32.totalorder %s27, 0
    %p184 = por %p182, %p183
    %p185 = scmp.ne.s32.totalorder %s171, %s172
    %p186 = scmp.eq.s32.totalorder %s28, 1
    %p187 = por %p185, %p186
    %p189 = scmp.ne.s32.totalorder %s172, %s188
    %p190 = scmp.eq.s32.totalorder %s28, 0
    %p191 = por %p189, %p190
    %s192 = ssub.s32 %s22, %s29
    %p193 = scmp.eq.s32.totalorder %s192, 0
    %s195 = sadd.s32 %s194, 1
    %s196 = scalar_select %p193, %s194, %s195
    %p199 = pneg %p193
    %p200 = scmp.eq.s32.totalorder %s22, 1
    %p201 = por %p199, %p200
    %p202 = scmp.ne.s32.totalorder %s194, %s197
    %p203 = scmp.eq.s32.totalorder %s22, 0
    %p204 = por %p202, %p203
    %p205 = scmp.ne.s32.totalorder %s194, %s197
    %p206 = scmp.eq.s32.totalorder %s27, 1
    %p207 = por %p205, %p206
    %p208 = scmp.ne.s32.totalorder %s197, %s198
    %p209 = scmp.eq.s32.totalorder %s27, 0
    %p210 = por %p208, %p209
    %p211 = scmp.ne.s32.totalorder %s197, %s198
    %p212 = scmp.eq.s32.totalorder %s28, 1
    %p213 = por %p211, %p212
    %p215 = scmp.ne.s32.totalorder %s198, %s214
    %p216 = scmp.eq.s32.totalorder %s28, 0
    %p217 = por %p215, %p216
    %s218 = ssub.s32 %s22, %s29
    %p219 = scmp.eq.s32.totalorder %s218, 0
    %s221 = sadd.s32 %s220, 1
    %s222 = scalar_select %p219, %s220, %s221
    %p225 = pneg %p219
    %p226 = scmp.eq.s32.totalorder %s22, 1
    %p227 = por %p225, %p226
    %p228 = scmp.ne.s32.totalorder %s220, %s223
    %p229 = scmp.eq.s32.totalorder %s22, 0
    %p230 = por %p228, %p229
    %p231 = scmp.ne.s32.totalorder %s220, %s223
    %p232 = scmp.eq.s32.totalorder %s27, 1
    %p233 = por %p231, %p232
    %p234 = scmp.ne.s32.totalorder %s223, %s224
    %p235 = scmp.eq.s32.totalorder %s27, 0
    %p236 = por %p234, %p235
    %p237 = scmp.ne.s32.totalorder %s223, %s224
    %p238 = scmp.eq.s32.totalorder %s28, 1
    %p239 = por %p237, %p238
    %p241 = scmp.ne.s32.totalorder %s224, %s240
    %p242 = scmp.eq.s32.totalorder %s28, 0
    %p243 = por %p241, %p242
    %s244 = ssub.s32 %s22, %s29
    %p245 = scmp.eq.s32.totalorder %s244, 0
    %s247 = sadd.s32 %s246, 1
    %s248 = scalar_select %p245, %s246, %s247
    %p251 = pneg %p245
    %p252 = scmp.eq.s32.totalorder %s22, 1
    %p253 = por %p251, %p252
    %p254 = scmp.ne.s32.totalorder %s246, %s249
    %p255 = scmp.eq.s32.totalorder %s22, 0
    %p256 = por %p254, %p255
    %p257 = scmp.ne.s32.totalorder %s246, %s249
    %p258 = scmp.eq.s32.totalorder %s27, 1
    %p259 = por %p257, %p258
    %p260 = scmp.ne.s32.totalorder %s249, %s250
    %p261 = scmp.eq.s32.totalorder %s27, 0
    %p262 = por %p260, %p261
    %p263 = scmp.ne.s32.totalorder %s249, %s250
    %p264 = scmp.eq.s32.totalorder %s28, 1
    %p265 = por %p263, %p264
    %p267 = scmp.ne.s32.totalorder %s250, %s266
    %p268 = scmp.eq.s32.totalorder %s28, 0
    %p269 = por %p267, %p268
    %s270 = ssub.s32 %s22, %s29
    %p271 = scmp.eq.s32.totalorder %s270, 0
    %s273 = sadd.s32 %s272, 1
    %s274 = scalar_select %p271, %s272, %s273
    %p277 = pneg %p271
    %p278 = scmp.eq.s32.totalorder %s22, 1
    %p279 = por %p277, %p278
    %p280 = scmp.ne.s32.totalorder %s272, %s275
    %p281 = scmp.eq.s32.totalorder %s22, 0
    %p282 = por %p280, %p281
    %p283 = scmp.ne.s32.totalorder %s272, %s275
    %p284 = scmp.eq.s32.totalorder %s27, 1
    %p285 = por %p283, %p284
    %p286 = scmp.ne.s32.totalorder %s275, %s276
    %p287 = scmp.eq.s32.totalorder %s27, 0
    %p288 = por %p286, %p287
    %p289 = scmp.ne.s32.totalorder %s275, %s276
    %p290 = scmp.eq.s32.totalorder %s28, 1
    %p291 = por %p289, %p290
    %p293 = scmp.ne.s32.totalorder %s276, %s292
    %p294 = scmp.eq.s32.totalorder %s28, 0
    %p295 = por %p293, %p294
    %s296 = ssub.s32 %s22, %s29
    %p297 = scmp.eq.s32.totalorder %s296, 0
    %s299 = sadd.s32 %s298, 1
    %s300 = scalar_select %p297, %s298, %s299
    %p303 = pneg %p297
    %p304 = scmp.eq.s32.totalorder %s22, 1
    %p305 = por %p303, %p304
    %p306 = scmp.ne.s32.totalorder %s298, %s301
    %p307 = scmp.eq.s32.totalorder %s22, 0
    %p308 = por %p306, %p307
    %p309 = scmp.ne.s32.totalorder %s298, %s301
    %p310 = scmp.eq.s32.totalorder %s27, 1
    %p311 = por %p309, %p310
    %p312 = scmp.ne.s32.totalorder %s301, %s302
    %p313 = scmp.eq.s32.totalorder %s27, 0
    %p314 = por %p312, %p313
    %p315 = scmp.ne.s32.totalorder %s301, %s302
    %p316 = scmp.eq.s32.totalorder %s28, 1
    %p317 = por %p315, %p316
    %p319 = scmp.ne.s32.totalorder %s302, %s318
    %p320 = scmp.eq.s32.totalorder %s28, 0
    %p321 = por %p319, %p320
    %s322 = ssub.s32 %s22, %s29
    %p323 = scmp.eq.s32.totalorder %s322, 0
    %s325 = sadd.s32 %s324, 1
    %s326 = scalar_select %p323, %s324, %s325
    %p329 = pneg %p323
    %p330 = scmp.eq.s32.totalorder %s22, 1
    %p331 = por %p329, %p330
    %p332 = scmp.ne.s32.totalorder %s324, %s327
    %p333 = scmp.eq.s32.totalorder %s22, 0
    %p334 = por %p332, %p333
    %p335 = scmp.ne.s32.totalorder %s324, %s327
    %p336 = scmp.eq.s32.totalorder %s27, 1
    %p337 = por %p335, %p336
    %p338 = scmp.ne.s32.totalorder %s327, %s328
    %p339 = scmp.eq.s32.totalorder %s27, 0
    %p340 = por %p338, %p339
    %p341 = scmp.ne.s32.totalorder %s327, %s328
    %p342 = scmp.eq.s32.totalorder %s28, 1
    %p343 = por %p341, %p342
    %p345 = scmp.ne.s32.totalorder %s328, %s344
    %p346 = scmp.eq.s32.totalorder %s28, 0
    %p347 = por %p345, %p346
    %s348 = ssub.s32 %s22, %s29
    %p349 = scmp.eq.s32.totalorder %s348, 0
    %s351 = sadd.s32 %s350, 1
    %s352 = scalar_select %p349, %s350, %s351
    %p355 = pneg %p349
    %p356 = scmp.eq.s32.totalorder %s22, 1
    %p357 = por %p355, %p356
    %p358 = scmp.ne.s32.totalorder %s350, %s353
    %p359 = scmp.eq.s32.totalorder %s22, 0
    %p360 = por %p358, %p359
    %p361 = scmp.ne.s32.totalorder %s350, %s353
    %p362 = scmp.eq.s32.totalorder %s27, 1
    %p363 = por %p361, %p362
    %p364 = scmp.ne.s32.totalorder %s353, %s354
    %p365 = scmp.eq.s32.totalorder %s27, 0
    %p366 = por %p364, %p365
    %p367 = scmp.ne.s32.totalorder %s353, %s354
    %p368 = scmp.eq.s32.totalorder %s28, 1
    %p369 = por %p367, %p368
    %p371 = scmp.ne.s32.totalorder %s354, %s370
    %p372 = scmp.eq.s32.totalorder %s28, 0
    %p373 = por %p371, %p372
    %s374 = ssub.s32 %s22, %s29
    %p375 = scmp.eq.s32.totalorder %s374, 0
    %s377 = sadd.s32 %s376, 1
    %s378 = scalar_select %p375, %s376, %s377
    %p381 = pneg %p375
    %p382 = scmp.eq.s32.totalorder %s22, 1
    %p383 = por %p381, %p382
    %p384 = scmp.ne.s32.totalorder %s376, %s379
    %p385 = scmp.eq.s32.totalorder %s22, 0
    %p386 = por %p384, %p385
    %p387 = scmp.ne.s32.totalorder %s376, %s379
    %p388 = scmp.eq.s32.totalorder %s27, 1
    %p389 = por %p387, %p388
    %p390 = scmp.ne.s32.totalorder %s379, %s380
    %p391 = scmp.eq.s32.totalorder %s27, 0
    %p392 = por %p390, %p391
    %p393 = scmp.ne.s32.totalorder %s379, %s380
    %p394 = scmp.eq.s32.totalorder %s28, 1
    %p395 = por %p393, %p394
    %p397 = scmp.ne.s32.totalorder %s380, %s396
    %p398 = scmp.eq.s32.totalorder %s28, 0
    %p399 = por %p397, %p398
    %s400 = ssub.s32 %s22, %s29
    %p401 = scmp.eq.s32.totalorder %s400, 0
    %s403 = sadd.s32 %s402, 1
    %s404 = scalar_select %p401, %s402, %s403
    %p407 = pneg %p401
    %p408 = scmp.eq.s32.totalorder %s22, 1
    %p409 = por %p407, %p408
    %p410 = scmp.ne.s32.totalorder %s402, %s405
    %p411 = scmp.eq.s32.totalorder %s22, 0
    %p412 = por %p410, %p411
    %p413 = scmp.ne.s32.totalorder %s402, %s405
    %p414 = scmp.eq.s32.totalorder %s27, 1
    %p415 = por %p413, %p414
    %p416 = scmp.ne.s32.totalorder %s405, %s406
    %p417 = scmp.eq.s32.totalorder %s27, 0
    %p418 = por %p416, %p417
    %p419 = scmp.ne.s32.totalorder %s405, %s406
    %p420 = scmp.eq.s32.totalorder %s28, 1
    %p421 = por %p419, %p420
    %p423 = scmp.ne.s32.totalorder %s406, %s422
    %p424 = scmp.eq.s32.totalorder %s28, 0
    %p425 = por %p423, %p424
    %s427 = sadd.s32 %s426, 1
    %p430 = scmp.eq.s32.totalorder %s22, 1
    %p431 = scmp.ne.s32.totalorder %s426, %s428
    %p432 = scmp.eq.s32.totalorder %s22, 0
    %p433 = por %p431, %p432
    %p434 = scmp.ne.s32.totalorder %s426, %s428
    %p435 = scmp.eq.s32.totalorder %s27, 1
    %p436 = por %p434, %p435
    %p437 = scmp.ne.s32.totalorder %s428, %s429
    %p438 = scmp.eq.s32.totalorder %s27, 0
    %p439 = por %p437, %p438
    %p440 = scmp.ne.s32.totalorder %s428, %s429
    %p441 = scmp.eq.s32.totalorder %s28, 1
    %p442 = por %p440, %p441
    %p444 = scmp.ne.s32.totalorder %s429, %s443
    %p445 = scmp.eq.s32.totalorder %s28, 0
    %p446 = por %p444, %p445
    %p447 = scmp.le.s32.totalorder 1, %s22
    %p448 = scmp.lt.s32.totalorder %s22, 3
    %p449 = pnand %p447, %p448
    %p450 = pneg %p449
    // Predicated region
    $region9: #{setr_dsformer_forward.2} parent=5 // pred_check
      _
    $region10: #{setr_dsformer_forward.2} parent=5 // pred_check_branch
      %452 = sbr.rel (%p449) target = $region12
    $region11: #{setr_dsformer_forward.2} parent=5 // pred_region
      %s453 = ssub.s32 %s22, 1
      // Predicated region
      $region13: #{setr_dsformer_forward.2} parent=11 // pred_check
        %p454 = pneg %p43
      $region14: #{setr_dsformer_forward.2} parent=11 // pred_check_branch
        %456 = sbr.rel (%p454) target = $region16
      $region15: #{setr_dsformer_forward.2} parent=11 // pred_region
        _
      $region16: #{setr_dsformer_forward.2} parent=11 // pred_fallthru
        _
      // Predicated region
      $region17: #{setr_dsformer_forward.2} parent=11 // pred_check
        %p457 = pneg %p64
      $region18: #{setr_dsformer_forward.2} parent=11 // pred_check_branch
        %459 = sbr.rel (%p457) target = $region20
      $region19: #{setr_dsformer_forward.2} parent=11 // pred_region
        _
      $region20: #{setr_dsformer_forward.2} parent=11 // pred_fallthru
        _
      // Predicated region
      $region21: #{setr_dsformer_forward.2} parent=11 // pred_check
        %p460 = pneg %p85
      $region22: #{setr_dsformer_forward.2} parent=11 // pred_check_branch
        %462 = sbr.rel (%p460) target = $region24
      $region23: #{setr_dsformer_forward.2} parent=11 // pred_region
        _
      $region24: #{setr_dsformer_forward.2} parent=11 // pred_fallthru
        _
      // Predicated region
      $region25: #{setr_dsformer_forward.2} parent=11 // pred_check
        %p463 = pneg %p106
      $region26: #{setr_dsformer_forward.2} parent=11 // pred_check_branch
        %465 = sbr.rel (%p463) target = $region28
      $region27: #{setr_dsformer_forward.2} parent=11 // pred_region
        _
      $region28: #{setr_dsformer_forward.2} parent=11 // pred_fallthru
        _
    $region12: #{setr_dsformer_forward.2} parent=5 // pred_fallthru
      _
    %p466 = scmp.lt.s32.totalorder %s22, 2
    // Predicated region
    $region29: #{setr_dsformer_forward.2} parent=5 // pred_check
      %p467 = pneg %p466
    $region30: #{setr_dsformer_forward.2} parent=5 // pred_check_branch
      %469 = sbr.rel (%p467) target = $region32
    $region31: #{setr_dsformer_forward.2} parent=5 // pred_region
      // Predicated region
      $region33: #{setr_dsformer_forward.2} parent=31 // pred_check
        %p470 = pneg %p126
      $region34: #{setr_dsformer_forward.2} parent=31 // pred_check_branch
        %472 = sbr.rel (%p470) target = $region36
      $region35: #{setr_dsformer_forward.2} parent=31 // pred_region
        %p473 = scmp.lt.s32.totalorder %s22, 1
        %s474 = scalar_select %p473, %s22, 1
        %s475 = scalar_lea.vmem %s4, %s474
      $region36: #{setr_dsformer_forward.2} parent=31 // pred_fallthru
        _
      // Predicated region
      $region37: #{setr_dsformer_forward.2} parent=31 // pred_check
        %p476 = pneg %p152
      $region38: #{setr_dsformer_forward.2} parent=31 // pred_check_branch
        %478 = sbr.rel (%p476) target = $region40
      $region39: #{setr_dsformer_forward.2} parent=31 // pred_region
        %p479 = scmp.lt.s32.totalorder %s22, 1
        %s480 = scalar_select %p479, %s22, 1
        %s481 = scalar_lea.vmem %s5, %s480
      $region40: #{setr_dsformer_forward.2} parent=31 // pred_fallthru
        _
      // Predicated region
      $region41: #{setr_dsformer_forward.2} parent=31 // pred_check
        %p482 = pneg %p178
      $region42: #{setr_dsformer_forward.2} parent=31 // pred_check_branch
        %484 = sbr.rel (%p482) target = $region44
      $region43: #{setr_dsformer_forward.2} parent=31 // pred_region
        %p485 = scmp.lt.s32.totalorder %s22, 1
        %s486 = scalar_select %p485, %s22, 1
        %s487 = smul.addr %s486, 4
        %s488 = smul.addr %s487, 4
        %s489 = scalar_lea.vmem %s6, %s488
      $region44: #{setr_dsformer_forward.2} parent=31 // pred_fallthru
        _
      // Predicated region
      $region45: #{setr_dsformer_forward.2} parent=31 // pred_check
        %p490 = pneg %p204
      $region46: #{setr_dsformer_forward.2} parent=31 // pred_check_branch
        %492 = sbr.rel (%p490) target = $region48
      $region47: #{setr_dsformer_forward.2} parent=31 // pred_region
        %p493 = scmp.lt.s32.totalorder %s22, 1
        %s494 = scalar_select %p493, %s22, 1
        %s495 = scalar_lea.vmem %s7, %s494
      $region48: #{setr_dsformer_forward.2} parent=31 // pred_fallthru
        _
      // Predicated region
      $region49: #{setr_dsformer_forward.2} parent=31 // pred_check
        %p496 = pneg %p230
      $region50: #{setr_dsformer_forward.2} parent=31 // pred_check_branch
        %498 = sbr.rel (%p496) target = $region52
      $region51: #{setr_dsformer_forward.2} parent=31 // pred_region
        %p499 = scmp.lt.s32.totalorder %s22, 1
        %s500 = scalar_select %p499, %s22, 1
        %s501 = smul.addr %s500, 4
        %s502 = smul.addr %s501, 4
        %s503 = scalar_lea.vmem %s8, %s502
      $region52: #{setr_dsformer_forward.2} parent=31 // pred_fallthru
        _
      // Predicated region
      $region53: #{setr_dsformer_forward.2} parent=31 // pred_check
        %p504 = pneg %p256
      $region54: #{setr_dsformer_forward.2} parent=31 // pred_check_branch
        %506 = sbr.rel (%p504) target = $region56
      $region55: #{setr_dsformer_forward.2} parent=31 // pred_region
        %p507 = scmp.lt.s32.totalorder %s22, 1
        %s508 = scalar_select %p507, %s22, 1
        %s509 = scalar_lea.vmem %s9, %s508
      $region56: #{setr_dsformer_forward.2} parent=31 // pred_fallthru
        _
      // Predicated region
      $region57: #{setr_dsformer_forward.2} parent=31 // pred_check
        %p510 = pneg %p282
      $region58: #{setr_dsformer_forward.2} parent=31 // pred_check_branch
        %512 = sbr.rel (%p510) target = $region60
      $region59: #{setr_dsformer_forward.2} parent=31 // pred_region
        %p513 = scmp.lt.s32.totalorder %s22, 1
        %s514 = scalar_select %p513, %s22, 1
        %s515 = scalar_lea.vmem %s10, %s514
      $region60: #{setr_dsformer_forward.2} parent=31 // pred_fallthru
        _
      // Predicated region
      $region61: #{setr_dsformer_forward.2} parent=31 // pred_check
        %p516 = pneg %p308
      $region62: #{setr_dsformer_forward.2} parent=31 // pred_check_branch
        %518 = sbr.rel (%p516) target = $region64
      $region63: #{setr_dsformer_forward.2} parent=31 // pred_region
        %p519 = scmp.lt.s32.totalorder %s22, 1
        %s520 = scalar_select %p519, %s22, 1
        %s521 = scalar_lea.vmem %s11, %s520
      $region64: #{setr_dsformer_forward.2} parent=31 // pred_fallthru
        _
      // Predicated region
      $region65: #{setr_dsformer_forward.2} parent=31 // pred_check
        %p522 = pneg %p334
      $region66: #{setr_dsformer_forward.2} parent=31 // pred_check_branch
        %524 = sbr.rel (%p522) target = $region68
      $region67: #{setr_dsformer_forward.2} parent=31 // pred_region
        %p525 = scmp.lt.s32.totalorder %s22, 1
        %s526 = scalar_select %p525, %s22, 1
        %s527 = smul.addr %s526, 4
        %s528 = smul.addr %s527, 4
        %s529 = scalar_lea.vmem %s12, %s528
      $region68: #{setr_dsformer_forward.2} parent=31 // pred_fallthru
        _
      // Predicated region
      $region69: #{setr_dsformer_forward.2} parent=31 // pred_check
        %p530 = pneg %p360
      $region70: #{setr_dsformer_forward.2} parent=31 // pred_check_branch
        %532 = sbr.rel (%p530) target = $region72
      $region71: #{setr_dsformer_forward.2} parent=31 // pred_region
        %p533 = scmp.lt.s32.totalorder %s22, 1
        %s534 = scalar_select %p533, %s22, 1
        %s535 = scalar_lea.vmem %s13, %s534
      $region72: #{setr_dsformer_forward.2} parent=31 // pred_fallthru
        _
      // Predicated region
      $region73: #{setr_dsformer_forward.2} parent=31 // pred_check
        %p536 = pneg %p386
      $region74: #{setr_dsformer_forward.2} parent=31 // pred_check_branch
        %538 = sbr.rel (%p536) target = $region76
      $region75: #{setr_dsformer_forward.2} parent=31 // pred_region
        %p539 = scmp.lt.s32.totalorder %s22, 1
        %s540 = scalar_select %p539, %s22, 1
        %s541 = smul.addr %s540, 8
        %s542 = smul.addr %s541, 4
        %s543 = scalar_lea.vmem %s14, %s542
      $region76: #{setr_dsformer_forward.2} parent=31 // pred_fallthru
        _
      // Predicated region
      $region77: #{setr_dsformer_forward.2} parent=31 // pred_check
        %p544 = pneg %p412
      $region78: #{setr_dsformer_forward.2} parent=31 // pred_check_branch
        %546 = sbr.rel (%p544) target = $region80
      $region79: #{setr_dsformer_forward.2} parent=31 // pred_region
        %p547 = scmp.lt.s32.totalorder %s22, 1
        %s548 = scalar_select %p547, %s22, 1
        %s549 = scalar_lea.vmem %s15, %s548
      $region80: #{setr_dsformer_forward.2} parent=31 // pred_fallthru
        _
    $region32: #{setr_dsformer_forward.2} parent=5 // pred_fallthru
      _
    %p550 = scmp.le.s32.totalorder 1, %s22
    %p551 = scmp.lt.s32.totalorder %s22, 3
    %p552 = pnand %p550, %p551
    %p553 = pneg %p552
    // Predicated region
    $region81: #{setr_dsformer_forward.2} parent=5 // pred_check
      _
    $region82: #{setr_dsformer_forward.2} parent=5 // pred_check_branch
      %555 = sbr.rel (%p552) target = $region84
    $region83: #{setr_dsformer_forward.2} parent=5 // pred_region
      %s556 = ssub.s32 %s22, 1
      %p557 = pneg %p43
      %p558 = pneg %p40
      %p559 = pneg %p64
      %p560 = pneg %p61
      %p561 = pneg %p85
      %p562 = pneg %p82
      %p563 = pneg %p106
      %p564 = pneg %p103
      %p565 = scmp.lt.s32.totalorder %s27, 1
      %s566 = scalar_select %p565, %s27, 1
      %s567 = scalar_lea.vmem %s4, %s566
      %p568 = pneg %p132
      %p569 = pneg %p129
      %p570 = scmp.lt.s32.totalorder %s27, 1
      %s571 = scalar_select %p570, %s27, 1
      %s572 = scalar_lea.vmem %s5, %s571
      %p573 = pneg %p158
      %p574 = pneg %p155
      %p575 = scmp.lt.s32.totalorder %s27, 1
      %s576 = scalar_select %p575, %s27, 1
      %s577 = smul.addr %s576, 4
      %s578 = smul.addr %s577, 4
      %s579 = scalar_lea.vmem %s6, %s578
      %p580 = pneg %p184
      %p581 = pneg %p181
      %p582 = scmp.lt.s32.totalorder %s27, 1
      %s583 = scalar_select %p582, %s27, 1
      %s584 = scalar_lea.vmem %s7, %s583
      %p585 = pneg %p210
      %p586 = pneg %p207
      %p587 = scmp.lt.s32.totalorder %s27, 1
      %s588 = scalar_select %p587, %s27, 1
      %s589 = smul.addr %s588, 4
      %s590 = smul.addr %s589, 4
      %s591 = scalar_lea.vmem %s8, %s590
      %p592 = pneg %p236
      %p593 = pneg %p233
      %p594 = scmp.lt.s32.totalorder %s27, 1
      %s595 = scalar_select %p594, %s27, 1
      %s596 = scalar_lea.vmem %s9, %s595
      %p597 = pneg %p262
      %p598 = pneg %p259
      %p599 = scmp.lt.s32.totalorder %s27, 1
      %s600 = scalar_select %p599, %s27, 1
      %s601 = scalar_lea.vmem %s10, %s600
      %p602 = pneg %p288
      %p603 = pneg %p285
      %p604 = scmp.lt.s32.totalorder %s27, 1
      %s605 = scalar_select %p604, %s27, 1
      %s606 = scalar_lea.vmem %s11, %s605
      %p607 = pneg %p314
      %p608 = pneg %p311
      %p609 = scmp.lt.s32.totalorder %s27, 1
      %s610 = scalar_select %p609, %s27, 1
      %s611 = smul.addr %s610, 4
      %s612 = smul.addr %s611, 4
      %s613 = scalar_lea.vmem %s12, %s612
      %p614 = pneg %p340
      %p615 = pneg %p337
      %p616 = scmp.lt.s32.totalorder %s27, 1
      %s617 = scalar_select %p616, %s27, 1
      %s618 = scalar_lea.vmem %s13, %s617
      %p619 = pneg %p366
      %p620 = pneg %p363
      %p621 = scmp.lt.s32.totalorder %s27, 1
      %s622 = scalar_select %p621, %s27, 1
      %s623 = smul.addr %s622, 8
      %s624 = smul.addr %s623, 4
      %s625 = scalar_lea.vmem %s14, %s624
      %p626 = pneg %p392
      %p627 = pneg %p389
      %p628 = scmp.lt.s32.totalorder %s27, 1
      %s629 = scalar_select %p628, %s27, 1
      %s630 = scalar_lea.vmem %s15, %s629
      %p631 = pneg %p418
      %p632 = pneg %p415
      %p633 = pneg %p439
      %p634 = pneg %p436
      %p635 = scmp.lt.s32.totalorder %s27, 1
      %s636 = scalar_select %p635, %s27, 1
      %s637 = scalar_lea.vmem %s4, %s636
      %p638 = scmp.lt.s32.totalorder %s27, 1
      %s639 = scalar_select %p638, %s27, 1
      %s640 = scalar_lea.vmem %s5, %s639
      %p641 = scmp.lt.s32.totalorder %s27, 1
      %s642 = scalar_select %p641, %s27, 1
      %s643 = smul.addr %s642, 4
      %s644 = smul.addr %s643, 4
      %s645 = scalar_lea.vmem %s6, %s644
      %p646 = scmp.lt.s32.totalorder %s27, 1
      %s647 = scalar_select %p646, %s27, 1
      %s648 = scalar_lea.vmem %s7, %s647
      %p649 = scmp.lt.s32.totalorder %s27, 1
      %s650 = scalar_select %p649, %s27, 1
      %s651 = smul.addr %s650, 4
      %s652 = smul.addr %s651, 4
      %s653 = scalar_lea.vmem %s8, %s652
      %p654 = scmp.lt.s32.totalorder %s27, 1
      %s655 = scalar_select %p654, %s27, 1
      %s656 = scalar_lea.vmem %s9, %s655
      %p657 = scmp.lt.s32.totalorder %s27, 1
      %s658 = scalar_select %p657, %s27, 1
      %s659 = scalar_lea.vmem %s10, %s658
      %p660 = scmp.lt.s32.totalorder %s27, 1
      %s661 = scalar_select %p660, %s27, 1
      %s662 = scalar_lea.vmem %s11, %s661
      %p663 = scmp.lt.s32.totalorder %s27, 1
      %s664 = scalar_select %p663, %s27, 1
      %s665 = smul.addr %s664, 4
      %s666 = smul.addr %s665, 4
      %s667 = scalar_lea.vmem %s12, %s666
      %p668 = scmp.lt.s32.totalorder %s27, 1
      %s669 = scalar_select %p668, %s27, 1
      %s670 = scalar_lea.vmem %s13, %s669
      %p671 = scmp.lt.s32.totalorder %s27, 1
      %s672 = scalar_select %p671, %s27, 1
      %s673 = smul.addr %s672, 8
      %s674 = smul.addr %s673, 4
      %s675 = scalar_lea.vmem %s14, %s674
      %p676 = scmp.lt.s32.totalorder %s27, 1
      %s677 = scalar_select %p676, %s27, 1
      %s678 = scalar_lea.vmem %s15, %s677
      %p680 = scmp.eq.s32.totalorder %s27, 0
      // Predicated region
      $region85: #{setr_dsformer_forward.2} parent=83 // pred_check
        %p681 = pneg %p680
      $region86: #{setr_dsformer_forward.2} parent=83 // pred_check_branch
        %683 = sbr.rel (%p681) target = $region88
      $region87: #{setr_dsformer_forward.2} parent=83 // pred_region
        %v684 = vld [vmem:[%s0] sm:$0xff]
        %v685 = vld [vmem:[%s0 + $0x8] sm:$0xff]
        %v686 = vpack.c.bf16 %v684, %v684
        %v687 = vpack.c.bf16 %v685, %v685
        %v688 = vld [vmem:[%s1] sm:$0xf]
        %v689 = vld [vmem:[%s1 + $0x4] sm:$0xf]
        %v690 = vld [vmem:[%s1 + $0x8] sm:$0xf]
        %v691 = vld [vmem:[%s1 + $0xc] sm:$0xf]
        %v692 = vld [vmem:[%s1 + $0x10] sm:$0xf]
        %v693 = vld [vmem:[%s1 + $0x14] sm:$0xf]
        %v694 = vld [vmem:[%s1 + $0x18] sm:$0xf]
        %v695 = vld [vmem:[%s1 + $0x1c] sm:$0xf]
        %v696 = vld [vmem:[%s1 + $0x20] sm:$0xf]
        %v697 = vld [vmem:[%s1 + $0x24] sm:$0xf]
        %v698 = vld [vmem:[%s1 + $0x28] sm:$0xf]
        %v699 = vld [vmem:[%s1 + $0x2c] sm:$0xf]
        %v700 = vld [vmem:[%s1 + $0x30] sm:$0xf]
        %v701 = vld [vmem:[%s1 + $0x34] sm:$0xf]
        %v702 = vld [vmem:[%s1 + $0x38] sm:$0xf]
        %v703 = vld [vmem:[%s1 + $0x3c] sm:$0xf]
        %v704 = vld [vmem:[%s1 + $0x40] sm:$0xf]
        %v705 = vld [vmem:[%s1 + $0x44] sm:$0xf]
        %v706 = vld [vmem:[%s1 + $0x48] sm:$0xf]
        %v707 = vld [vmem:[%s1 + $0x4c] sm:$0xf]
        %v708 = vld [vmem:[%s1 + $0x50] sm:$0xf]
        %v709 = vld [vmem:[%s1 + $0x54] sm:$0xf]
        %v710 = vld [vmem:[%s1 + $0x58] sm:$0xf]
        %v711 = vld [vmem:[%s1 + $0x5c] sm:$0xf]
        %v712 = vld [vmem:[%s1 + $0x60] sm:$0xf]
        %v713 = vld [vmem:[%s1 + $0x64] sm:$0xf]
        %v714 = vld [vmem:[%s1 + $0x68] sm:$0xf]
        %v715 = vld [vmem:[%s1 + $0x6c] sm:$0xf]
        %v716 = vld [vmem:[%s1 + $0x70] sm:$0xf]
        %v717 = vld [vmem:[%s1 + $0x74] sm:$0xf]
        %v718 = vld [vmem:[%s1 + $0x78] sm:$0xf]
        %v719 = vld [vmem:[%s1 + $0x7c] sm:$0xf]
        %v720 = vld [vmem:[%s2] sm:$0x1]
        %v722 = vperm.slane %v720, 0
        %v756 = vunpack.c.l.b16 %v688
        %v757 = vunpack.c.l.b16 %v689
        %v758 = vunpack.c.l.b16 %v690
        %v759 = vunpack.c.l.b16 %v691
        %v760 = vunpack.c.l.b16 %v692
        %v761 = vunpack.c.l.b16 %v693
        %v762 = vunpack.c.l.b16 %v694
        %v763 = vunpack.c.l.b16 %v695
        %v764 = vunpack.c.l.b16 %v696
        %v765 = vunpack.c.l.b16 %v697
        %v766 = vunpack.c.l.b16 %v698
        %v767 = vunpack.c.l.b16 %v699
        %v768 = vunpack.c.l.b16 %v700
        %v769 = vunpack.c.l.b16 %v701
        %v770 = vunpack.c.l.b16 %v702
        %v771 = vunpack.c.l.b16 %v703
        %v772 = vunpack.c.l.b16 %v704
        %v773 = vunpack.c.l.b16 %v705
        %v774 = vunpack.c.l.b16 %v706
        %v775 = vunpack.c.l.b16 %v707
        %v776 = vunpack.c.l.b16 %v708
        %v777 = vunpack.c.l.b16 %v709
        %v778 = vunpack.c.l.b16 %v710
        %v779 = vunpack.c.l.b16 %v711
        %v780 = vunpack.c.l.b16 %v712
        %v781 = vunpack.c.l.b16 %v713
        %v782 = vunpack.c.l.b16 %v714
        %v783 = vunpack.c.l.b16 %v715
        %v784 = vunpack.c.l.b16 %v716
        %v785 = vunpack.c.l.b16 %v717
        %v786 = vunpack.c.l.b16 %v718
        %v787 = vunpack.c.l.b16 %v719
        %v788 = vpack.c.b16 %v757, %v756
        %v789 = vpack.c.b16 %v759, %v758
        %v790 = vpack.c.b16 %v761, %v760
        %v791 = vpack.c.b16 %v763, %v762
        %v792 = vpack.c.b16 %v765, %v764
        %v793 = vpack.c.b16 %v767, %v766
        %v794 = vpack.c.b16 %v769, %v768
        %v795 = vpack.c.b16 %v771, %v770
        %v796 = vpack.c.b16 %v773, %v772
        %v797 = vpack.c.b16 %v775, %v774
        %v798 = vpack.c.b16 %v777, %v776
        %v799 = vpack.c.b16 %v779, %v778
        %v800 = vpack.c.b16 %v781, %v780
        %v801 = vpack.c.b16 %v783, %v782
        %v802 = vpack.c.b16 %v785, %v784
        %v803 = vpack.c.b16 %v787, %v786
        %820 = vmatpush.bf16.msra.mxu0 %v795
        %821 = vmatpush.bf16.msra.mxu0 %v794
        %822 = vmatpush.bf16.msra.mxu0 %v793
        %823 = vmatpush.bf16.msra.mxu0 %v792
        %824 = vmatpush.bf16.msra.mxu0 %v791
        %825 = vmatpush.bf16.msra.mxu0 %v790
        %826 = vmatpush.bf16.msra.mxu0 %v789
        %827 = vmatpush.bf16.msra.mxu0 %v788
        %828 = vmatmul.bf16.gmra.mxu0 %v686
        %v829 = vpop.f32.mrf.mxu0
        %v830 = vadd.f32 %v722, %v829
        %v831 = vpop.f32.mrf.mxu0
        %832 = vdwg.mxu0
        %833 = vmatpush.bf16.msra.mxu0 %v803
        %834 = vmatpush.bf16.msra.mxu0 %v802
        %835 = vmatpush.bf16.msra.mxu0 %v801
        %836 = vmatpush.bf16.msra.mxu0 %v800
        %837 = vmatpush.bf16.msra.mxu0 %v799
        %838 = vmatpush.bf16.msra.mxu0 %v798
        %839 = vmatpush.bf16.msra.mxu0 %v797
        %840 = vmatpush.bf16.msra.mxu0 %v796
        %841 = vmatmul.bf16.gmra.mxu0 %v687
        %v842 = vpop.f32.mrf.mxu0
        %v843 = vadd.f32 %v830, %v842
        %v844 = vpop.f32.mrf.mxu0
        %845 = vdwg.mxu0
        %v846 = vld [vmem:[%s3] sm:$0xff]
        %v847 = vadd.f32 %v843, %v846
        %vm848 = vcmask 261120
        %849 = vst.msk [vmem:[%s16] sm:$0xff] %vm848, %v847
      $region88: #{setr_dsformer_forward.2} parent=83 // pred_fallthru
        _
      %v850 = vld [vmem:[%s16] sm:$0xff]
      %v851 = vld [vmem:[%s637] sm:$0x1]
      %v852 = vld [vmem:[%s640] sm:$0x1]
      %vm853 = vcmask 261120
      %v854 = vsel %vm853, %v850, 0.0
      %855 = vadd.xlane.f32.xlu0 %v854
      %v856 = vpop.xlane.xlu0 %855
      %v857 = vrcp.pop 32.0
      %v858 = vmul.f32 32.0, %v857
      %v859 = vsub.f32 1.0, %v858
      %v860 = vmul.f32 %v857, %v859
      %v861 = vadd.f32 %v857, %v860
      %vm862 = vweird.f32 %v857
      %v863 = vsel %vm862, %v857, %v861
      %v864 = vmul.f32 %v856, %v863
      %v865 = vsub.f32 %v850, %v864
      %v866 = vmul.f32 %v865, %v865
      %v867 = vsel %vm853, %v866, 0.0
      %868 = vadd.xlane.f32.xlu0 %v867
      %v869 = vpop.xlane.xlu0 %868
      %v870 = vmul.f32 %v869, %v863
      %v871 = vadd.f32 %v870, 1e-05
      %v872 = vrsqrt.pop %v871
      %v873 = vmul.f32 %v872, %v871
      %v874 = vmul.f32 %v873, %v872
      %v875 = vmul.f32 0.5, %v874
      %v876 = vsub.f32 1.5, %v875
      %v877 = vmul.f32 %v872, %v876
      %vm878 = vweird.f32 %v871
      %vm879 = vweird.f32 %v872
      %vm880 = vmor %vm878, %vm879
      %v881 = vsel %vm880, %v872, %v877
      %v882 = vmul.f32 %v865, %v881
      %v884 = vperm.slane %v851, 0
      %v886 = vmul.f32 %v882, %v884
      %v888 = vperm.slane %v852, 0
      %v890 = vadd.f32 %v886, %v888
      %v891 = vpack.c.bf16 %v890, %v890
      %v892 = vld [vmem:[%s645] sm:$0xf]
      %v893 = vld [vmem:[%s645 + $0x4] sm:$0xf]
      %v894 = vld [vmem:[%s645 + $0x8] sm:$0xf]
      %v895 = vld [vmem:[%s645 + $0xc] sm:$0xf]
      %v896 = vld [vmem:[%s648] sm:$0x1]
      %v898 = vperm.slane %v896, 0
      %v904 = vunpack.c.l.b16 %v892
      %v905 = vunpack.c.l.b16 %v893
      %v906 = vunpack.c.l.b16 %v894
      %v907 = vunpack.c.l.b16 %v895
      %v908 = vpack.c.b16 %v905, %v904
      %v909 = vpack.c.b16 %v907, %v906
      %v913 = vsel %vm853, %v891, 0
      %915 = vmatpush.bf16.msra.mxu0 0
      %916 = vmatpush.bf16.msra.mxu0 0
      %917 = vmatpush.bf16.msra.mxu0 0
      %918 = vmatpush.bf16.msra.mxu0 0
      %919 = vmatpush.bf16.msra.mxu0 0
      %920 = vmatpush.bf16.msra.mxu0 0
      %921 = vmatpush.bf16.msra.mxu0 %v909
      %922 = vmatpush.bf16.msra.mxu0 %v908
      %923 = vmatmul.bf16.gmra.mxu0 %v913
      %v924 = vpop.f32.mrf.mxu0
      %v925 = vadd.f32 %v898, %v924
      %v926 = vpop.f32.mrf.mxu0
      %927 = vdwg.mxu0
      %v928 = vpack.c.bf16 %v925, %v925
      %930 = vrot.lane.b32.xlu0 %v928, 96
      %v931 = vpop.permute.xlu0 %930
      %vm932 = vcmask 130048
      %v934 = vsel %vm932, %v928, 0
      %v937 = vsel %vm932, %v931, 0
      %939 = vmatpush.bf16.xpose.msra.mxu0 0
      %940 = vmatpush.bf16.xpose.msra.mxu0 0
      %941 = vmatpush.bf16.xpose.msra.mxu0 0
      %942 = vmatpush.bf16.xpose.msra.mxu0 0
      %943 = vmatpush.bf16.xpose.msra.mxu0 0
      %944 = vmatpush.bf16.xpose.msra.mxu0 0
      %945 = vmatpush.bf16.xpose.msra.mxu0 0
      %946 = vmatpush.bf16.xpose.msra.mxu0 %v937
      %947 = vmatmul.bf16.gmra.mxu0 %v934
      %v948 = vpop.f32.mrf.mxu0
      %v949 = vadd.f32 0.0, %v948
      %v950 = vpop.f32.mrf.mxu0
      %951 = vdwg.mxu0
      %v952 = vmul.f32 %v949, 0.25
      %vm953 = vcmask 27648
      %v954 = vsel %vm953, %v952, -inf
      %955 = vmax.xlane.f32.xlu0 %v954
      %v956 = vpop.xlane.xlu0 %955
      %v957 = vsub.f32 %v952, %v956
      %v958 = vmul.f32 %v957, 1.442695
      %v959 = vpow.pop %v958
      %v960 = vsel %vm953, %v959, 0.0
      %961 = vadd.xlane.f32.xlu0 %v960
      %v962 = vpop.xlane.xlu0 %961
      %v963 = vrcp.pop %v962
      %v964 = vmul.f32 %v962, %v963
      %v965 = vsub.f32 1.0, %v964
      %v966 = vmul.f32 %v963, %v965
      %v967 = vadd.f32 %v963, %v966
      %vm968 = vweird.f32 %v962
      %vm969 = vweird.f32 %v963
      %vm970 = vmor %vm968, %vm969
      %v971 = vsel %vm970, %v963, %v967
      %v972 = vand.u32 2147483647, %v962
      %vm973 = vcmp.eq.f32.partialorder %v972, 8.507059e+37
      %v974 = vand.u32 %v962, 2147483648
      %v975 = vor.u32 1.1754944e-38, %v974
      %v976 = vsel %vm973, %v975, %v971
      %v977 = vmul.f32 %v959, %v976
      %v978 = vpack.c.bf16 %v977, %v977
      %979 = vrot.lane.b32.xlu0 %v928, 64
      %v980 = vpop.permute.xlu0 %979
      %vm981 = vcmask 31744
      %v983 = vsel %vm981, %v978, 0
      %vm985 = vcmask 1041408
      %v987 = vsel %vm985, %v980, 0
      %989 = vmatpush.bf16.msra.mxu0 0
      %990 = vmatpush.bf16.msra.mxu0 0
      %991 = vmatpush.bf16.msra.mxu0 0
      %992 = vmatpush.bf16.msra.mxu0 0
      %993 = vmatpush.bf16.msra.mxu0 0
      %994 = vmatpush.bf16.msra.mxu0 0
      %995 = vmatpush.bf16.msra.mxu0 0
      %996 = vmatpush.bf16.msra.mxu0 %v987
      %997 = vmatmul.bf16.gmra.mxu0 %v983
      %v998 = vpop.f32.mrf.mxu0
      %v999 = vadd.f32 0.0, %v998
      %v1000 = vpop.f32.mrf.mxu0
      %1001 = vdwg.mxu0
      %1002 = vrot.lane.b32.xlu0 %v928, 112
      %v1003 = vpop.permute.xlu0 %1002
      %1004 = vrot.lane.b32.xlu0 %v928, 80
      %v1005 = vpop.permute.xlu0 %1004
      %v1007 = vsel %vm932, %v1003, 0
      %v1010 = vsel %vm932, %v1005, 0
      %1012 = vmatpush.bf16.xpose.msra.mxu0 0
      %1013 = vmatpush.bf16.xpose.msra.mxu0 0
      %1014 = vmatpush.bf16.xpose.msra.mxu0 0
      %1015 = vmatpush.bf16.xpose.msra.mxu0 0
      %1016 = vmatpush.bf16.xpose.msra.mxu0 0
      %1017 = vmatpush.bf16.xpose.msra.mxu0 0
      %1018 = vmatpush.bf16.xpose.msra.mxu0 0
      %1019 = vmatpush.bf16.xpose.msra.mxu0 %v1010
      %1020 = vmatmul.bf16.gmra.mxu0 %v1007
      %v1021 = vpop.f32.mrf.mxu0
      %v1022 = vadd.f32 0.0, %v1021
      %v1023 = vpop.f32.mrf.mxu0
      %1024 = vdwg.mxu0
      %v1025 = vmul.f32 %v1022, 0.25
      %v1026 = vsel %vm953, %v1025, -inf
      %1027 = vmax.xlane.f32.xlu0 %v1026
      %v1028 = vpop.xlane.xlu0 %1027
      %v1029 = vsub.f32 %v1025, %v1028
      %v1030 = vmul.f32 %v1029, 1.442695
      %v1031 = vpow.pop %v1030
      %v1032 = vsel %vm953, %v1031, 0.0
      %1033 = vadd.xlane.f32.xlu0 %v1032
      %v1034 = vpop.xlane.xlu0 %1033
      %v1035 = vrcp.pop %v1034
      %v1036 = vmul.f32 %v1034, %v1035
      %v1037 = vsub.f32 1.0, %v1036
      %v1038 = vmul.f32 %v1035, %v1037
      %v1039 = vadd.f32 %v1035, %v1038
      %vm1040 = vweird.f32 %v1034
      %vm1041 = vweird.f32 %v1035
      %vm1042 = vmor %vm1040, %vm1041
      %v1043 = vsel %vm1042, %v1035, %v1039
      %v1044 = vand.u32 2147483647, %v1034
      %vm1045 = vcmp.eq.f32.partialorder %v1044, 8.507059e+37
      %v1046 = vand.u32 %v1034, 2147483648
      %v1047 = vor.u32 1.1754944e-38, %v1046
      %v1048 = vsel %vm1045, %v1047, %v1043
      %v1049 = vmul.f32 %v1031, %v1048
      %v1050 = vpack.c.bf16 %v1049, %v1049
      %1051 = vrot.lane.b32.xlu0 %v928, 48
      %v1052 = vpop.permute.xlu0 %1051
      %v1054 = vsel %vm981, %v1050, 0
      %v1057 = vsel %vm985, %v1052, 0
      %1059 = vmatpush.bf16.msra.mxu0 0
      %1060 = vmatpush.bf16.msra.mxu0 0
      %1061 = vmatpush.bf16.msra.mxu0 0
      %1062 = vmatpush.bf16.msra.mxu0 0
      %1063 = vmatpush.bf16.msra.mxu0 0
      %1064 = vmatpush.bf16.msra.mxu0 0
      %1065 = vmatpush.bf16.msra.mxu0 0
      %1066 = vmatpush.bf16.msra.mxu0 %v1057
      %1067 = vmatmul.bf16.gmra.mxu0 %v1054
      %v1068 = vpop.f32.mrf.mxu0
      %v1069 = vadd.f32 0.0, %v1068
      %v1070 = vpop.f32.mrf.mxu0
      %1071 = vdwg.mxu0
      %1073 = vrot.lane.b32.xlu0 %v1069, 16
      %v1074 = vpop.permute.xlu0 %1073
      %v1076 = vsel %vm932, %v999, %v1074
      %v1077 = vrot.slane %v928, 2
      %1078 = vrot.lane.b32.xlu0 %v1077, 96
      %v1079 = vpop.permute.xlu0 %1078
      %v1081 = vsel %vm932, %v1077, 0
      %v1084 = vsel %vm932, %v1079, 0
      %1086 = vmatpush.bf16.xpose.msra.mxu0 0
      %1087 = vmatpush.bf16.xpose.msra.mxu0 0
      %1088 = vmatpush.bf16.xpose.msra.mxu0 0
      %1089 = vmatpush.bf16.xpose.msra.mxu0 0
      %1090 = vmatpush.bf16.xpose.msra.mxu0 0
      %1091 = vmatpush.bf16.xpose.msra.mxu0 0
      %1092 = vmatpush.bf16.xpose.msra.mxu0 0
      %1093 = vmatpush.bf16.xpose.msra.mxu0 %v1084
      %1094 = vmatmul.bf16.gmra.mxu0 %v1081
      %v1095 = vpop.f32.mrf.mxu0
      %v1096 = vadd.f32 0.0, %v1095
      %v1097 = vpop.f32.mrf.mxu0
      %1098 = vdwg.mxu0
      %v1099 = vmul.f32 %v1096, 0.25
      %v1100 = vsel %vm953, %v1099, -inf
      %1101 = vmax.xlane.f32.xlu0 %v1100
      %v1102 = vpop.xlane.xlu0 %1101
      %v1103 = vsub.f32 %v1099, %v1102
      %v1104 = vmul.f32 %v1103, 1.442695
      %v1105 = vpow.pop %v1104
      %v1106 = vsel %vm953, %v1105, 0.0
      %1107 = vadd.xlane.f32.xlu0 %v1106
      %v1108 = vpop.xlane.xlu0 %1107
      %v1109 = vrcp.pop %v1108
      %v1110 = vmul.f32 %v1108, %v1109
      %v1111 = vsub.f32 1.0, %v1110
      %v1112 = vmul.f32 %v1109, %v1111
      %v1113 = vadd.f32 %v1109, %v1112
      %vm1114 = vweird.f32 %v1108
      %vm1115 = vweird.f32 %v1109
      %vm1116 = vmor %vm1114, %vm1115
      %v1117 = vsel %vm1116, %v1109, %v1113
      %v1118 = vand.u32 2147483647, %v1108
      %vm1119 = vcmp.eq.f32.partialorder %v1118, 8.507059e+37
      %v1120 = vand.u32 %v1108, 2147483648
      %v1121 = vor.u32 1.1754944e-38, %v1120
      %v1122 = vsel %vm1119, %v1121, %v1117
      %v1123 = vmul.f32 %v1105, %v1122
      %v1124 = vpack.c.bf16 %v1123, %v1123
      %1125 = vrot.lane.b32.xlu0 %v1077, 64
      %v1126 = vpop.permute.xlu0 %1125
      %v1128 = vsel %vm981, %v1124, 0
      %v1131 = vsel %vm985, %v1126, 0
      %1133 = vmatpush.bf16.msra.mxu0 0
      %1134 = vmatpush.bf16.msra.mxu0 0
      %1135 = vmatpush.bf16.msra.mxu0 0
      %1136 = vmatpush.bf16.msra.mxu0 0
      %1137 = vmatpush.bf16.msra.mxu0 0
      %1138 = vmatpush.bf16.msra.mxu0 0
      %1139 = vmatpush.bf16.msra.mxu0 0
      %1140 = vmatpush.bf16.msra.mxu0 %v1131
      %1141 = vmatmul.bf16.gmra.mxu0 %v1128
      %v1142 = vpop.f32.mrf.mxu0
      %v1143 = vadd.f32 0.0, %v1142
      %v1144 = vpop.f32.mrf.mxu0
      %1145 = vdwg.mxu0
      %1146 = vrot.lane.b32.xlu0 %v1077, 112
      %v1147 = vpop.permute.xlu0 %1146
      %1148 = vrot.lane.b32.xlu0 %v1077, 80
      %v1149 = vpop.permute.xlu0 %1148
      %v1151 = vsel %vm932, %v1147, 0
      %v1154 = vsel %vm932, %v1149, 0
      %1156 = vmatpush.bf16.xpose.msra.mxu0 0
      %1157 = vmatpush.bf16.xpose.msra.mxu0 0
      %1158 = vmatpush.bf16.xpose.msra.mxu0 0
      %1159 = vmatpush.bf16.xpose.msra.mxu0 0
      %1160 = vmatpush.bf16.xpose.msra.mxu0 0
      %1161 = vmatpush.bf16.xpose.msra.mxu0 0
      %1162 = vmatpush.bf16.xpose.msra.mxu0 0
      %1163 = vmatpush.bf16.xpose.msra.mxu0 %v1154
      %1164 = vmatmul.bf16.gmra.mxu0 %v1151
      %v1165 = vpop.f32.mrf.mxu0
      %v1166 = vadd.f32 0.0, %v1165
      %v1167 = vpop.f32.mrf.mxu0
      %1168 = vdwg.mxu0
      %v1169 = vmul.f32 %v1166, 0.25
      %v1170 = vsel %vm953, %v1169, -inf
      %1171 = vmax.xlane.f32.xlu0 %v1170
      %v1172 = vpop.xlane.xlu0 %1171
      %v1173 = vsub.f32 %v1169, %v1172
      %v1174 = vmul.f32 %v1173, 1.442695
      %v1175 = vpow.pop %v1174
      %v1176 = vsel %vm953, %v1175, 0.0
      %1177 = vadd.xlane.f32.xlu0 %v1176
      %v1178 = vpop.xlane.xlu0 %1177
      %v1179 = vrcp.pop %v1178
      %v1180 = vmul.f32 %v1178, %v1179
      %v1181 = vsub.f32 1.0, %v1180
      %v1182 = vmul.f32 %v1179, %v1181
      %v1183 = vadd.f32 %v1179, %v1182
      %vm1184 = vweird.f32 %v1178
      %vm1185 = vweird.f32 %v1179
      %vm1186 = vmor %vm1184, %vm1185
      %v1187 = vsel %vm1186, %v1179, %v1183
      %v1188 = vand.u32 2147483647, %v1178
      %vm1189 = vcmp.eq.f32.partialorder %v1188, 8.507059e+37
      %v1190 = vand.u32 %v1178, 2147483648
      %v1191 = vor.u32 1.1754944e-38, %v1190
      %v1192 = vsel %vm1189, %v1191, %v1187
      %v1193 = vmul.f32 %v1175, %v1192
      %v1194 = vpack.c.bf16 %v1193, %v1193
      %1195 = vrot.lane.b32.xlu0 %v1077, 48
      %v1196 = vpop.permute.xlu0 %1195
      %v1198 = vsel %vm981, %v1194, 0
      %v1201 = vsel %vm985, %v1196, 0
      %1203 = vmatpush.bf16.msra.mxu0 0
      %1204 = vmatpush.bf16.msra.mxu0 0
      %1205 = vmatpush.bf16.msra.mxu0 0
      %1206 = vmatpush.bf16.msra.mxu0 0
      %1207 = vmatpush.bf16.msra.mxu0 0
      %1208 = vmatpush.bf16.msra.mxu0 0
      %1209 = vmatpush.bf16.msra.mxu0 0
      %1210 = vmatpush.bf16.msra.mxu0 %v1201
      %1211 = vmatmul.bf16.gmra.mxu0 %v1198
      %v1212 = vpop.f32.mrf.mxu0
      %v1213 = vadd.f32 0.0, %v1212
      %v1214 = vpop.f32.mrf.mxu0
      %1215 = vdwg.mxu0
      %1217 = vrot.lane.b32.xlu0 %v1213, 16
      %v1218 = vpop.permute.xlu0 %1217
      %v1220 = vsel %vm932, %v1143, %v1218
      %v1222 = vrot.slane %v1220, 4
      %vm1224 = vcmask 1043456
      %v1225 = vsel %vm1224, %v1076, %v1222
      %v1226 = vpack.c.bf16 %v1225, %v1225
      %v1227 = vld [vmem:[%s653] sm:$0xf]
      %v1228 = vld [vmem:[%s653 + $0x4] sm:$0xf]
      %v1229 = vld [vmem:[%s653 + $0x8] sm:$0xf]
      %v1230 = vld [vmem:[%s653 + $0xc] sm:$0xf]
      %v1235 = vunpack.c.l.b16 %v1227
      %v1236 = vunpack.c.l.b16 %v1228
      %v1237 = vunpack.c.l.b16 %v1229
      %v1238 = vunpack.c.l.b16 %v1230
      %v1239 = vpack.c.b16 %v1236, %v1235
      %v1240 = vpack.c.b16 %v1238, %v1237
      %v1244 = vsel %vm853, %v1226, 0
      %1246 = vmatpush.bf16.msra.mxu0 0
      %1247 = vmatpush.bf16.msra.mxu0 0
      %1248 = vmatpush.bf16.msra.mxu0 0
      %1249 = vmatpush.bf16.msra.mxu0 0
      %1250 = vmatpush.bf16.msra.mxu0 0
      %1251 = vmatpush.bf16.msra.mxu0 0
      %1252 = vmatpush.bf16.msra.mxu0 %v1240
      %1253 = vmatpush.bf16.msra.mxu0 %v1239
      %1254 = vmatmul.bf16.gmra.mxu0 %v1244
      %v1255 = vpop.f32.mrf.mxu0
      %v1256 = vadd.f32 0.0, %v1255
      %v1257 = vpop.f32.mrf.mxu0
      %1258 = vdwg.mxu0
      %v1259 = vadd.f32 %v850, %v1256
      %v1260 = vld [vmem:[%s656] sm:$0x1]
      %v1262 = vperm.slane %v1260, 0
      %v1264 = vadd.f32 %v1259, %v1262
      %v1265 = vld [vmem:[%s659] sm:$0x1]
      %v1266 = vld [vmem:[%s662] sm:$0x1]
      %v1267 = vsel %vm853, %v1264, 0.0
      %1268 = vadd.xlane.f32.xlu0 %v1267
      %v1269 = vpop.xlane.xlu0 %1268
      %v1270 = vmul.f32 %v1269, %v863
      %v1271 = vsub.f32 %v1264, %v1270
      %v1272 = vmul.f32 %v1271, %v1271
      %v1273 = vsel %vm853, %v1272, 0.0
      %1274 = vadd.xlane.f32.xlu0 %v1273
      %v1275 = vpop.xlane.xlu0 %1274
      %v1276 = vmul.f32 %v1275, %v863
      %v1277 = vadd.f32 %v1276, 1e-05
      %v1278 = vrsqrt.pop %v1277
      %v1279 = vmul.f32 %v1278, %v1277
      %v1280 = vmul.f32 %v1279, %v1278
      %v1281 = vmul.f32 0.5, %v1280
      %v1282 = vsub.f32 1.5, %v1281
      %v1283 = vmul.f32 %v1278, %v1282
      %vm1284 = vweird.f32 %v1277
      %vm1285 = vweird.f32 %v1278
      %vm1286 = vmor %vm1284, %vm1285
      %v1287 = vsel %vm1286, %v1278, %v1283
      %v1288 = vmul.f32 %v1271, %v1287
      %v1290 = vperm.slane %v1265, 0
      %v1292 = vmul.f32 %v1288, %v1290
      %v1294 = vperm.slane %v1266, 0
      %v1296 = vadd.f32 %v1292, %v1294
      %v1297 = vpack.c.bf16 %v1296, %v1296
      %v1298 = vld [vmem:[%s667] sm:$0xf]
      %v1299 = vld [vmem:[%s667 + $0x4] sm:$0xf]
      %v1300 = vld [vmem:[%s667 + $0x8] sm:$0xf]
      %v1301 = vld [vmem:[%s667 + $0xc] sm:$0xf]
      %v1302 = vld [vmem:[%s670] sm:$0x1]
      %v1304 = vperm.slane %v1302, 0
      %v1310 = vunpack.c.l.b16 %v1298
      %v1311 = vunpack.c.l.b16 %v1299
      %v1312 = vunpack.c.l.b16 %v1300
      %v1313 = vunpack.c.l.b16 %v1301
      %v1314 = vpack.c.b16 %v1311, %v1310
      %v1315 = vpack.c.b16 %v1313, %v1312
      %v1319 = vsel %vm853, %v1297, 0
      %1321 = vmatpush.bf16.msra.mxu0 0
      %1322 = vmatpush.bf16.msra.mxu0 0
      %1323 = vmatpush.bf16.msra.mxu0 0
      %1324 = vmatpush.bf16.msra.mxu0 0
      %1325 = vmatpush.bf16.msra.mxu0 0
      %1326 = vmatpush.bf16.msra.mxu0 0
      %1327 = vmatpush.bf16.msra.mxu0 %v1315
      %1328 = vmatpush.bf16.msra.mxu0 %v1314
      %1329 = vmatmul.bf16.gmra.mxu0 %v1319
      %v1330 = vpop.f32.mrf.mxu0
      %v1331 = vadd.f32 %v1304, %v1330
      %v1332 = vpop.f32.mrf.mxu0
      %1333 = vdwg.mxu0
      %v1334 = vmul.f32 %v1331, %v1331
      %v1335 = vmul.f32 %v1331, %v1334
      %v1336 = vmul.f32 %v1335, 0.044715
      %v1337 = vadd.f32 %v1331, %v1336
      %v1338 = vmul.f32 %v1337, 0.7978846
      %v1339 = vtanh.pop %v1338
      %v1340 = vadd.f32 %v1339, 1.0
      %v1341 = vmul.f32 %v1340, 0.5
      %v1342 = vmul.f32 %v1331, %v1341
      %v1343 = vpack.c.bf16 %v1342, %v1342
      %v1344 = vld [vmem:[%s675] sm:$0xf]
      %v1345 = vld [vmem:[%s675 + $0x4] sm:$0xf]
      %v1346 = vld [vmem:[%s675 + $0x8] sm:$0xf]
      %v1347 = vld [vmem:[%s675 + $0xc] sm:$0xf]
      %v1348 = vld [vmem:[%s675 + $0x10] sm:$0xf]
      %v1349 = vld [vmem:[%s675 + $0x14] sm:$0xf]
      %v1350 = vld [vmem:[%s675 + $0x18] sm:$0xf]
      %v1351 = vld [vmem:[%s675 + $0x1c] sm:$0xf]
      %v1352 = vld [vmem:[%s678] sm:$0x1]
      %v1354 = vperm.slane %v1352, 0
      %v1364 = vunpack.c.l.b16 %v1344
      %v1365 = vunpack.c.l.b16 %v1345
      %v1366 = vunpack.c.l.b16 %v1346
      %v1367 = vunpack.c.l.b16 %v1347
      %v1368 = vunpack.c.l.b16 %v1348
      %v1369 = vunpack.c.l.b16 %v1349
      %v1370 = vunpack.c.l.b16 %v1350
      %v1371 = vunpack.c.l.b16 %v1351
      %v1372 = vpack.c.b16 %v1365, %v1364
      %v1373 = vpack.c.b16 %v1367, %v1366
      %v1374 = vpack.c.b16 %v1369, %v1368
      %v1375 = vpack.c.b16 %v1371, %v1370
      %vm1380 = vcmask 523264
      %v1382 = vsel %vm1380, %v1343, 0
      %1384 = vmatpush.bf16.msra.mxu0 0
      %1385 = vmatpush.bf16.msra.mxu0 0
      %1386 = vmatpush.bf16.msra.mxu0 0
      %1387 = vmatpush.bf16.msra.mxu0 0
      %1388 = vmatpush.bf16.msra.mxu0 %v1375
      %1389 = vmatpush.bf16.msra.mxu0 %v1374
      %1390 = vmatpush.bf16.msra.mxu0 %v1373
      %1391 = vmatpush.bf16.msra.mxu0 %v1372
      %1392 = vmatmul.bf16.gmra.mxu0 %v1382
      %v1393 = vpop.f32.mrf.mxu0
      %v1394 = vadd.f32 %v1354, %v1393
      %v1395 = vpop.f32.mrf.mxu0
      %1396 = vdwg.mxu0
      %v1397 = vadd.f32 %v1264, %v1394
      %1398 = vst.msk [vmem:[%s16] sm:$0xff] %vm853, %v1397
      // Predicated region
      $region89: #{setr_dsformer_forward.2} parent=83 // pred_check
        %p1399 = pneg %p436
      $region90: #{setr_dsformer_forward.2} parent=83 // pred_check_branch
        %1401 = sbr.rel (%p1399) target = $region92
      $region91: #{setr_dsformer_forward.2} parent=83 // pred_region
        _
      $region92: #{setr_dsformer_forward.2} parent=83 // pred_fallthru
        _
      // Predicated region
      $region93: #{setr_dsformer_forward.2} parent=83 // pred_check
        %p1402 = pneg %p436
      $region94: #{setr_dsformer_forward.2} parent=83 // pred_check_branch
        %1404 = sbr.rel (%p1402) target = $region96
      $region95: #{setr_dsformer_forward.2} parent=83 // pred_region
        _
      $region96: #{setr_dsformer_forward.2} parent=83 // pred_fallthru
        _
    $region84: #{setr_dsformer_forward.2} parent=5 // pred_fallthru
      _
    %p1405 = scmp.le.s32.totalorder 2, %s22
    // Predicated region
    $region97: #{setr_dsformer_forward.2} parent=5 // pred_check
      %p1406 = pneg %p1405
    $region98: #{setr_dsformer_forward.2} parent=5 // pred_check_branch
      %1408 = sbr.rel (%p1406) target = $region100
    $region99: #{setr_dsformer_forward.2} parent=5 // pred_region
      %s1409 = ssub.s32 %s22, 2
    $region100: #{setr_dsformer_forward.2} parent=5 // pred_fallthru
      _
  $region6: #{setr_dsformer_forward.2} parent=0 // loop_footer
    %s26 = sadd.s32 1, %s22
  $region7: #{setr_dsformer_forward.2} parent=0 // loop_footer_branch
    %21 = sbr.rel target = $region3
  $region8: #{setr_dsformer_forward.2} parent=0 // loop_exit
    _

// kernel: setr_dsformer_forward.3
$region0: #{setr_dsformer_forward.3}
  #allocation0 [shape = 'u32[]', space=smem, size = 0x4, offset = 0x4, fixed_abs, tag = 'smem constant byte address 0x4 - core index']
  #allocation1 [shape = 'u32[72,128]{1,0:T(1,128)}', space=vmem, size = 0x9000, scoped, tag = 'internal scratch']
  %s0 = inlined_call_operand.vmem [shape: f32[8,32], index: 0, kind: input, shape index: {}]
  %s1 = inlined_call_operand.vmem [shape: bf16[32,32], index: 1, kind: input, shape index: {}]
  %s2 = inlined_call_operand.vmem [shape: bf16[9,8,8], index: 2, kind: input, shape index: {}]
  %s3 = inlined_call_operand.vmem [shape: bf16[8,288], index: 3, kind: input, shape index: {}]
  %s4 = inlined_call_operand.vmem [shape: f32[8,1], index: 4, kind: input, shape index: {}]
  %s5 = inlined_call_operand.vmem [shape: f32[8,1], index: 5, kind: input, shape index: {}]
  %s6 = inlined_call_operand.vmem [shape: bf16[8,32], index: 6, kind: input, shape index: {}]
  %s7 = inlined_call_operand.vmem [shape: bf16[9,32,32], index: 7, kind: input, shape index: {}]
  %s8 = inlined_call_operand.vmem [shape: bf16[8,72], index: 8, kind: input, shape index: {}]
  %s9 = inlined_call_operand.vmem [shape: f32[8,1], index: 9, kind: input, shape index: {}]
  %s10 = inlined_call_operand.vmem [shape: f32[8,1], index: 10, kind: input, shape index: {}]
  %s11 = inlined_call_operand.vmem [shape: bf16[2,8], index: 11, kind: input, shape index: {}]
  %s12 = inlined_call_operand.vmem [shape: f32[2,1], index: 12, kind: input, shape index: {}]
  %s13 = inlined_call_operand.vmem [shape: bf16[32,512], index: 13, kind: input, shape index: {}]
  %s14 = inlined_call_operand.vmem [shape: f32[2,2,256], index: 14, kind: output, shape index: {}]
  %s15 = sld [smem:[#allocation0]]
  $region66: #{setr_dsformer_forward.3} parent=0
    _
  %s17 = ssub.s32 1, %s15
  %s18 = scalar_select 0, %s17, %s15
  // Predicated region
  $region2: #{setr_dsformer_forward.3} parent=0 // pred_check
    _
  $region3: #{setr_dsformer_forward.3} parent=0 // pred_check_branch
    %20 = sbr.rel (0) target = $region5
  $region4: #{setr_dsformer_forward.3} parent=0 // pred_region
    _
  $region5: #{setr_dsformer_forward.3} parent=0 // pred_fallthru
    _
  // Predicated region
  $region6: #{setr_dsformer_forward.3} parent=0 // pred_check
    _
  $region7: #{setr_dsformer_forward.3} parent=0 // pred_check_branch
    %22 = sbr.rel (0) target = $region9
  $region8: #{setr_dsformer_forward.3} parent=0 // pred_region
    _
  $region9: #{setr_dsformer_forward.3} parent=0 // pred_fallthru
    _
  // Predicated region
  $region10: #{setr_dsformer_forward.3} parent=0 // pred_check
    _
  $region11: #{setr_dsformer_forward.3} parent=0 // pred_check_branch
    %24 = sbr.rel (0) target = $region13
  $region12: #{setr_dsformer_forward.3} parent=0 // pred_region
    _
  $region13: #{setr_dsformer_forward.3} parent=0 // pred_fallthru
    _
  // Predicated region
  $region14: #{setr_dsformer_forward.3} parent=0 // pred_check
    _
  $region15: #{setr_dsformer_forward.3} parent=0 // pred_check_branch
    %26 = sbr.rel (0) target = $region17
  $region16: #{setr_dsformer_forward.3} parent=0 // pred_region
    _
  $region17: #{setr_dsformer_forward.3} parent=0 // pred_fallthru
    _
  // Predicated region
  $region18: #{setr_dsformer_forward.3} parent=0 // pred_check
    _
  $region19: #{setr_dsformer_forward.3} parent=0 // pred_check_branch
    %28 = sbr.rel (0) target = $region21
  $region20: #{setr_dsformer_forward.3} parent=0 // pred_region
    _
  $region21: #{setr_dsformer_forward.3} parent=0 // pred_fallthru
    _
  // Predicated region
  $region22: #{setr_dsformer_forward.3} parent=0 // pred_check
    _
  $region23: #{setr_dsformer_forward.3} parent=0 // pred_check_branch
    %30 = sbr.rel (0) target = $region25
  $region24: #{setr_dsformer_forward.3} parent=0 // pred_region
    _
  $region25: #{setr_dsformer_forward.3} parent=0 // pred_fallthru
    _
  // Predicated region
  $region26: #{setr_dsformer_forward.3} parent=0 // pred_check
    _
  $region27: #{setr_dsformer_forward.3} parent=0 // pred_check_branch
    %32 = sbr.rel (0) target = $region29
  $region28: #{setr_dsformer_forward.3} parent=0 // pred_region
    _
  $region29: #{setr_dsformer_forward.3} parent=0 // pred_fallthru
    _
  // Predicated region
  $region30: #{setr_dsformer_forward.3} parent=0 // pred_check
    _
  $region31: #{setr_dsformer_forward.3} parent=0 // pred_check_branch
    %34 = sbr.rel (0) target = $region33
  $region32: #{setr_dsformer_forward.3} parent=0 // pred_region
    _
  $region33: #{setr_dsformer_forward.3} parent=0 // pred_fallthru
    _
  // Predicated region
  $region34: #{setr_dsformer_forward.3} parent=0 // pred_check
    _
  $region35: #{setr_dsformer_forward.3} parent=0 // pred_check_branch
    %36 = sbr.rel (0) target = $region37
  $region36: #{setr_dsformer_forward.3} parent=0 // pred_region
    _
  $region37: #{setr_dsformer_forward.3} parent=0 // pred_fallthru
    _
  // Predicated region
  $region38: #{setr_dsformer_forward.3} parent=0 // pred_check
    _
  $region39: #{setr_dsformer_forward.3} parent=0 // pred_check_branch
    %38 = sbr.rel (0) target = $region41
  $region40: #{setr_dsformer_forward.3} parent=0 // pred_region
    _
  $region41: #{setr_dsformer_forward.3} parent=0 // pred_fallthru
    _
  // Predicated region
  $region42: #{setr_dsformer_forward.3} parent=0 // pred_check
    _
  $region43: #{setr_dsformer_forward.3} parent=0 // pred_check_branch
    %40 = sbr.rel (0) target = $region45
  $region44: #{setr_dsformer_forward.3} parent=0 // pred_region
    _
  $region45: #{setr_dsformer_forward.3} parent=0 // pred_fallthru
    _
  // Predicated region
  $region46: #{setr_dsformer_forward.3} parent=0 // pred_check
    _
  $region47: #{setr_dsformer_forward.3} parent=0 // pred_check_branch
    %42 = sbr.rel (0) target = $region49
  $region48: #{setr_dsformer_forward.3} parent=0 // pred_region
    _
  $region49: #{setr_dsformer_forward.3} parent=0 // pred_fallthru
    _
  // Predicated region
  $region50: #{setr_dsformer_forward.3} parent=0 // pred_check
    _
  $region51: #{setr_dsformer_forward.3} parent=0 // pred_check_branch
    %44 = sbr.rel (0) target = $region53
  $region52: #{setr_dsformer_forward.3} parent=0 // pred_region
    _
  $region53: #{setr_dsformer_forward.3} parent=0 // pred_fallthru
    _
  // Predicated region
  $region54: #{setr_dsformer_forward.3} parent=0 // pred_check
    _
  $region55: #{setr_dsformer_forward.3} parent=0 // pred_check_branch
    %46 = sbr.rel (0) target = $region57
  $region56: #{setr_dsformer_forward.3} parent=0 // pred_region
    _
  $region57: #{setr_dsformer_forward.3} parent=0 // pred_fallthru
    _
  %v48 = vld [vmem:[%s1] sm:$0xf]
  %v49 = vld [vmem:[%s1 + $0x4] sm:$0xf]
  %v50 = vld [vmem:[%s1 + $0x8] sm:$0xf]
  %v51 = vld [vmem:[%s1 + $0xc] sm:$0xf]
  %v52 = vld [vmem:[%s0] sm:$0xf]
  %v53 = vpack.c.bf16 %v52, %v52
  %v58 = vunpack.c.l.b16 %v48
  %v59 = vunpack.c.l.b16 %v49
  %v60 = vunpack.c.l.b16 %v50
  %v61 = vunpack.c.l.b16 %v51
  %v62 = vpack.c.b16 %v59, %v58
  %v63 = vpack.c.b16 %v61, %v60
  %vm64 = vcmask 261120
  %v66 = vsel %vm64, %v62, 0
  %v69 = vsel %vm64, %v63, 0
  %v72 = vsel %vm64, %v53, 0
  %74 = vmatpush.bf16.xpose.msra.mxu0 0
  %75 = vmatpush.bf16.xpose.msra.mxu0 0
  %76 = vmatpush.bf16.xpose.msra.mxu0 0
  %77 = vmatpush.bf16.xpose.msra.mxu0 0
  %78 = vmatpush.bf16.xpose.msra.mxu0 0
  %79 = vmatpush.bf16.xpose.msra.mxu0 0
  %80 = vmatpush.bf16.xpose.msra.mxu0 0
  %81 = vmatpush.bf16.xpose.msra.mxu0 %v72
  %82 = vmatmul.bf16.gmra.mxu0 %v66
  %v83 = vpop.f32.mrf.mxu0
  %v84 = vadd.f32 0.0, %v83
  %v85 = vpop.f32.mrf.mxu0
  %v86 = vadd.f32 0.0, %v85
  %87 = vmatmul.bf16.gmra.mxu0 %v69
  %v88 = vpop.f32.mrf.mxu0
  %v89 = vadd.f32 0.0, %v88
  %v90 = vpop.f32.mrf.mxu0
  %v91 = vadd.f32 0.0, %v90
  %92 = vdwg.mxu0
  %v93 = vld [vmem:[%s0 + $0x4] sm:$0xf]
  %v94 = vpack.c.bf16 %v93, %v93
  %v96 = vsel %vm64, %v94, 0
  %98 = vmatpush.bf16.xpose.msra.mxu0 0
  %99 = vmatpush.bf16.xpose.msra.mxu0 0
  %100 = vmatpush.bf16.xpose.msra.mxu0 0
  %101 = vmatpush.bf16.xpose.msra.mxu0 0
  %102 = vmatpush.bf16.xpose.msra.mxu0 0
  %103 = vmatpush.bf16.xpose.msra.mxu0 0
  %104 = vmatpush.bf16.xpose.msra.mxu0 0
  %105 = vmatpush.bf16.xpose.msra.mxu0 %v96
  %106 = vmatmul.bf16.gmra.mxu0 %v66
  %v107 = vpop.f32.mrf.mxu0
  %v108 = vadd.f32 0.0, %v107
  %v109 = vpop.f32.mrf.mxu0
  %v110 = vadd.f32 0.0, %v109
  %111 = vmatmul.bf16.gmra.mxu0 %v69
  %v112 = vpop.f32.mrf.mxu0
  %v113 = vadd.f32 0.0, %v112
  %v114 = vpop.f32.mrf.mxu0
  %v115 = vadd.f32 0.0, %v114
  %116 = vdwg.mxu0
  %121 = vrot.lane.b32.xlu0 %v108, 4
  %v122 = vpop.permute.xlu0 %121
  %123 = vrot.lane.b32.xlu0 %v110, 4
  %v124 = vpop.permute.xlu0 %123
  %125 = vrot.lane.b32.xlu0 %v113, 4
  %v126 = vpop.permute.xlu0 %125
  %127 = vrot.lane.b32.xlu0 %v115, 4
  %v128 = vpop.permute.xlu0 %127
  %vm133 = vcmask 31744
  %v134 = vsel %vm133, %v84, %v122
  %v135 = vsel %vm133, %v86, %v124
  %v136 = vsel %vm133, %v89, %v126
  %v137 = vsel %vm133, %v91, %v128
  %v138 = vpack.c.bf16 %v135, %v134
  %v139 = vpack.c.bf16 %v137, %v136
  %v140 = vld [vmem:[%s2] sm:$0xf]
  %vm141 = vcmask 64512
  %v143 = vsel %vm141, %v138, 0
  %v146 = vsel %vm141, %v139, 0
  %vm148 = vcmask 1043456
  %v150 = vsel %vm148, %v140, 0
  %152 = vmatpush.bf16.msra.mxu0 0
  %153 = vmatpush.bf16.msra.mxu0 0
  %154 = vmatpush.bf16.msra.mxu0 0
  %155 = vmatpush.bf16.msra.mxu0 0
  %156 = vmatpush.bf16.msra.mxu0 0
  %157 = vmatpush.bf16.msra.mxu0 0
  %158 = vmatpush.bf16.msra.mxu0 0
  %159 = vmatpush.bf16.msra.mxu0 %v150
  %160 = vmatmul.bf16.gmra.mxu0 %v143
  %v161 = vpop.f32.mrf.mxu0
  %v162 = vadd.f32 0.0, %v161
  %v163 = vpop.f32.mrf.mxu0
  %v164 = vadd.f32 0.0, %v163
  %165 = vmatmul.bf16.gmra.mxu0 %v146
  %v166 = vpop.f32.mrf.mxu0
  %v167 = vadd.f32 0.0, %v166
  %v168 = vpop.f32.mrf.mxu0
  %v169 = vadd.f32 0.0, %v168
  %170 = vdwg.mxu0
  %s171 = scalar_lea.vmem %s2, 4
  %v172 = vld [vmem:[%s171] sm:$0xf]
  %v174 = vsel %vm148, %v172, 0
  %176 = vmatpush.bf16.msra.mxu0 0
  %177 = vmatpush.bf16.msra.mxu0 0
  %178 = vmatpush.bf16.msra.mxu0 0
  %179 = vmatpush.bf16.msra.mxu0 0
  %180 = vmatpush.bf16.msra.mxu0 0
  %181 = vmatpush.bf16.msra.mxu0 0
  %182 = vmatpush.bf16.msra.mxu0 0
  %183 = vmatpush.bf16.msra.mxu0 %v174
  %184 = vmatmul.bf16.gmra.mxu0 %v143
  %v185 = vpop.f32.mrf.mxu0
  %v186 = vadd.f32 0.0, %v185
  %v187 = vpop.f32.mrf.mxu0
  %v188 = vadd.f32 0.0, %v187
  %189 = vmatmul.bf16.gmra.mxu0 %v146
  %v190 = vpop.f32.mrf.mxu0
  %v191 = vadd.f32 0.0, %v190
  %v192 = vpop.f32.mrf.mxu0
  %v193 = vadd.f32 0.0, %v192
  %194 = vdwg.mxu0
  %s195 = scalar_lea.vmem %s2, 8
  %v196 = vld [vmem:[%s195] sm:$0xf]
  %v198 = vsel %vm148, %v196, 0
  %200 = vmatpush.bf16.msra.mxu0 0
  %201 = vmatpush.bf16.msra.mxu0 0
  %202 = vmatpush.bf16.msra.mxu0 0
  %203 = vmatpush.bf16.msra.mxu0 0
  %204 = vmatpush.bf16.msra.mxu0 0
  %205 = vmatpush.bf16.msra.mxu0 0
  %206 = vmatpush.bf16.msra.mxu0 0
  %207 = vmatpush.bf16.msra.mxu0 %v198
  %208 = vmatmul.bf16.gmra.mxu0 %v143
  %v209 = vpop.f32.mrf.mxu0
  %v210 = vadd.f32 0.0, %v209
  %v211 = vpop.f32.mrf.mxu0
  %v212 = vadd.f32 0.0, %v211
  %213 = vmatmul.bf16.gmra.mxu0 %v146
  %v214 = vpop.f32.mrf.mxu0
  %v215 = vadd.f32 0.0, %v214
  %v216 = vpop.f32.mrf.mxu0
  %v217 = vadd.f32 0.0, %v216
  %218 = vdwg.mxu0
  %s219 = scalar_lea.vmem %s2, 12
  %v220 = vld [vmem:[%s219] sm:$0xf]
  %v222 = vsel %vm148, %v220, 0
  %224 = vmatpush.bf16.msra.mxu0 0
  %225 = vmatpush.bf16.msra.mxu0 0
  %226 = vmatpush.bf16.msra.mxu0 0
  %227 = vmatpush.bf16.msra.mxu0 0
  %228 = vmatpush.bf16.msra.mxu0 0
  %229 = vmatpush.bf16.msra.mxu0 0
  %230 = vmatpush.bf16.msra.mxu0 0
  %231 = vmatpush.bf16.msra.mxu0 %v222
  %232 = vmatmul.bf16.gmra.mxu0 %v143
  %v233 = vpop.f32.mrf.mxu0
  %v234 = vadd.f32 0.0, %v233
  %v235 = vpop.f32.mrf.mxu0
  %v236 = vadd.f32 0.0, %v235
  %237 = vmatmul.bf16.gmra.mxu0 %v146
  %v238 = vpop.f32.mrf.mxu0
  %v239 = vadd.f32 0.0, %v238
  %v240 = vpop.f32.mrf.mxu0
  %v241 = vadd.f32 0.0, %v240
  %242 = vdwg.mxu0
  %s243 = scalar_lea.vmem %s2, 16
  %v244 = vld [vmem:[%s243] sm:$0xf]
  %v246 = vsel %vm148, %v244, 0
  %248 = vmatpush.bf16.msra.mxu0 0
  %249 = vmatpush.bf16.msra.mxu0 0
  %250 = vmatpush.bf16.msra.mxu0 0
  %251 = vmatpush.bf16.msra.mxu0 0
  %252 = vmatpush.bf16.msra.mxu0 0
  %253 = vmatpush.bf16.msra.mxu0 0
  %254 = vmatpush.bf16.msra.mxu0 0
  %255 = vmatpush.bf16.msra.mxu0 %v246
  %256 = vmatmul.bf16.gmra.mxu0 %v143
  %v257 = vpop.f32.mrf.mxu0
  %v258 = vadd.f32 0.0, %v257
  %v259 = vpop.f32.mrf.mxu0
  %v260 = vadd.f32 0.0, %v259
  %261 = vmatmul.bf16.gmra.mxu0 %v146
  %v262 = vpop.f32.mrf.mxu0
  %v263 = vadd.f32 0.0, %v262
  %v264 = vpop.f32.mrf.mxu0
  %v265 = vadd.f32 0.0, %v264
  %266 = vdwg.mxu0
  %s267 = scalar_lea.vmem %s2, 20
  %v268 = vld [vmem:[%s267] sm:$0xf]
  %v270 = vsel %vm148, %v268, 0
  %272 = vmatpush.bf16.msra.mxu0 0
  %273 = vmatpush.bf16.msra.mxu0 0
  %274 = vmatpush.bf16.msra.mxu0 0
  %275 = vmatpush.bf16.msra.mxu0 0
  %276 = vmatpush.bf16.msra.mxu0 0
  %277 = vmatpush.bf16.msra.mxu0 0
  %278 = vmatpush.bf16.msra.mxu0 0
  %279 = vmatpush.bf16.msra.mxu0 %v270
  %280 = vmatmul.bf16.gmra.mxu0 %v143
  %v281 = vpop.f32.mrf.mxu0
  %v282 = vadd.f32 0.0, %v281
  %v283 = vpop.f32.mrf.mxu0
  %v284 = vadd.f32 0.0, %v283
  %285 = vmatmul.bf16.gmra.mxu0 %v146
  %v286 = vpop.f32.mrf.mxu0
  %v287 = vadd.f32 0.0, %v286
  %v288 = vpop.f32.mrf.mxu0
  %v289 = vadd.f32 0.0, %v288
  %290 = vdwg.mxu0
  %s291 = scalar_lea.vmem %s2, 24
  %v292 = vld [vmem:[%s291] sm:$0xf]
  %v294 = vsel %vm148, %v292, 0
  %296 = vmatpush.bf16.msra.mxu0 0
  %297 = vmatpush.bf16.msra.mxu0 0
  %298 = vmatpush.bf16.msra.mxu0 0
  %299 = vmatpush.bf16.msra.mxu0 0
  %300 = vmatpush.bf16.msra.mxu0 0
  %301 = vmatpush.bf16.msra.mxu0 0
  %302 = vmatpush.bf16.msra.mxu0 0
  %303 = vmatpush.bf16.msra.mxu0 %v294
  %304 = vmatmul.bf16.gmra.mxu0 %v143
  %v305 = vpop.f32.mrf.mxu0
  %v306 = vadd.f32 0.0, %v305
  %v307 = vpop.f32.mrf.mxu0
  %v308 = vadd.f32 0.0, %v307
  %309 = vmatmul.bf16.gmra.mxu0 %v146
  %v310 = vpop.f32.mrf.mxu0
  %v311 = vadd.f32 0.0, %v310
  %v312 = vpop.f32.mrf.mxu0
  %v313 = vadd.f32 0.0, %v312
  %314 = vdwg.mxu0
  %s315 = scalar_lea.vmem %s2, 28
  %v316 = vld [vmem:[%s315] sm:$0xf]
  %v318 = vsel %vm148, %v316, 0
  %320 = vmatpush.bf16.msra.mxu0 0
  %321 = vmatpush.bf16.msra.mxu0 0
  %322 = vmatpush.bf16.msra.mxu0 0
  %323 = vmatpush.bf16.msra.mxu0 0
  %324 = vmatpush.bf16.msra.mxu0 0
  %325 = vmatpush.bf16.msra.mxu0 0
  %326 = vmatpush.bf16.msra.mxu0 0
  %327 = vmatpush.bf16.msra.mxu0 %v318
  %328 = vmatmul.bf16.gmra.mxu0 %v143
  %v329 = vpop.f32.mrf.mxu0
  %v330 = vadd.f32 0.0, %v329
  %v331 = vpop.f32.mrf.mxu0
  %v332 = vadd.f32 0.0, %v331
  %333 = vmatmul.bf16.gmra.mxu0 %v146
  %v334 = vpop.f32.mrf.mxu0
  %v335 = vadd.f32 0.0, %v334
  %v336 = vpop.f32.mrf.mxu0
  %v337 = vadd.f32 0.0, %v336
  %338 = vdwg.mxu0
  %s339 = scalar_lea.vmem %s2, 32
  %v340 = vld [vmem:[%s339] sm:$0xf]
  %v342 = vsel %vm148, %v340, 0
  %344 = vmatpush.bf16.msra.mxu0 0
  %345 = vmatpush.bf16.msra.mxu0 0
  %346 = vmatpush.bf16.msra.mxu0 0
  %347 = vmatpush.bf16.msra.mxu0 0
  %348 = vmatpush.bf16.msra.mxu0 0
  %349 = vmatpush.bf16.msra.mxu0 0
  %350 = vmatpush.bf16.msra.mxu0 0
  %351 = vmatpush.bf16.msra.mxu0 %v342
  %352 = vmatmul.bf16.gmra.mxu0 %v143
  %v353 = vpop.f32.mrf.mxu0
  %v354 = vadd.f32 0.0, %v353
  %v355 = vpop.f32.mrf.mxu0
  %v356 = vadd.f32 0.0, %v355
  %357 = vmatmul.bf16.gmra.mxu0 %v146
  %v358 = vpop.f32.mrf.mxu0
  %v359 = vadd.f32 0.0, %v358
  %v360 = vpop.f32.mrf.mxu0
  %v361 = vadd.f32 0.0, %v360
  %362 = vdwg.mxu0
  %v363 = vld [vmem:[%s3] sm:$0xff]
  %v364 = vld [vmem:[%s3 + $0x8] sm:$0xf]
  %v365 = vpack.c.bf16 %v164, %v162
  %v366 = vpack.c.bf16 %v169, %v167
  %v367 = vpack.c.bf16 %v188, %v186
  %v368 = vpack.c.bf16 %v193, %v191
  %v369 = vpack.c.bf16 %v212, %v210
  %v370 = vpack.c.bf16 %v217, %v215
  %v371 = vpack.c.bf16 %v236, %v234
  %v372 = vpack.c.bf16 %v241, %v239
  %v373 = vpack.c.bf16 %v260, %v258
  %v374 = vpack.c.bf16 %v265, %v263
  %v375 = vpack.c.bf16 %v284, %v282
  %v376 = vpack.c.bf16 %v289, %v287
  %v377 = vpack.c.bf16 %v308, %v306
  %v378 = vpack.c.bf16 %v313, %v311
  %v379 = vpack.c.bf16 %v332, %v330
  %v380 = vpack.c.bf16 %v337, %v335
  %v381 = vpack.c.bf16 %v356, %v354
  %v382 = vpack.c.bf16 %v361, %v359
  %v385 = vunpack.c.l.b16 %v363
  %v386 = vunpack.c.h.b16 %v363
  %v387 = vunpack.c.l.b16 %v364
  %v388 = vpack.c.b16 %v385, %v385
  %v389 = vpack.c.b16 %v386, %v386
  %v390 = vpack.c.b16 %v387, %v387
  %v394 = vsel %vm64, %v390, 0
  %396 = vmatpush.bf16.msra.mxu0 %v372
  %397 = vmatpush.bf16.msra.mxu0 %v371
  %398 = vmatpush.bf16.msra.mxu0 %v370
  %399 = vmatpush.bf16.msra.mxu0 %v369
  %400 = vmatpush.bf16.msra.mxu0 %v368
  %401 = vmatpush.bf16.msra.mxu0 %v367
  %402 = vmatpush.bf16.msra.mxu0 %v366
  %403 = vmatpush.bf16.msra.mxu0 %v365
  %404 = vmatmul.bf16.gmra.mxu0 %v388
  %v405 = vpop.f32.mrf.mxu0
  %v406 = vadd.f32 0.0, %v405
  %v407 = vpop.f32.mrf.mxu0
  %408 = vdwg.mxu0
  %409 = vmatpush.bf16.msra.mxu0 %v380
  %410 = vmatpush.bf16.msra.mxu0 %v379
  %411 = vmatpush.bf16.msra.mxu0 %v378
  %412 = vmatpush.bf16.msra.mxu0 %v377
  %413 = vmatpush.bf16.msra.mxu0 %v376
  %414 = vmatpush.bf16.msra.mxu0 %v375
  %415 = vmatpush.bf16.msra.mxu0 %v374
  %416 = vmatpush.bf16.msra.mxu0 %v373
  %417 = vmatmul.bf16.gmra.mxu0 %v389
  %v418 = vpop.f32.mrf.mxu0
  %v419 = vadd.f32 %v406, %v418
  %v420 = vpop.f32.mrf.mxu0
  %421 = vdwg.mxu0
  %422 = vmatpush.bf16.msra.mxu0 0
  %423 = vmatpush.bf16.msra.mxu0 0
  %424 = vmatpush.bf16.msra.mxu0 0
  %425 = vmatpush.bf16.msra.mxu0 0
  %426 = vmatpush.bf16.msra.mxu0 0
  %427 = vmatpush.bf16.msra.mxu0 0
  %428 = vmatpush.bf16.msra.mxu0 %v382
  %429 = vmatpush.bf16.msra.mxu0 %v381
  %430 = vmatmul.bf16.gmra.mxu0 %v394
  %v431 = vpop.f32.mrf.mxu0
  %v432 = vadd.f32 %v419, %v431
  %v433 = vpop.f32.mrf.mxu0
  %434 = vdwg.mxu0
  %v435 = vld [vmem:[%s4] sm:$0xff]
  %437 = vset.pattern.permute.xlu0 0
  %438 = vperm.xlu0 %437, %v435
  %v439 = vpop.permute.xlu0 %438
  %v441 = vmul.f32 %v432, %v439
  %v442 = vld [vmem:[%s5] sm:$0xff]
  %444 = vset.pattern.permute.xlu0 0
  %445 = vperm.xlu0 %444, %v442
  %v446 = vpop.permute.xlu0 %445
  %v448 = vadd.f32 %v441, %v446
  %v449 = vmax.f32 %v448, 0.0
  %v450 = vpack.c.bf16 %v449, %v449
  %v451 = vld [vmem:[%s6] sm:$0xf]
  %v453 = vsel %vm141, %v450, 0
  %v456 = vsel %vm148, %v451, 0
  %458 = vmatpush.bf16.msra.mxu0 0
  %459 = vmatpush.bf16.msra.mxu0 0
  %460 = vmatpush.bf16.msra.mxu0 0
  %461 = vmatpush.bf16.msra.mxu0 0
  %462 = vmatpush.bf16.msra.mxu0 0
  %463 = vmatpush.bf16.msra.mxu0 0
  %464 = vmatpush.bf16.msra.mxu0 0
  %465 = vmatpush.bf16.msra.mxu0 %v456
  %466 = vmatmul.bf16.gmra.mxu0 %v453
  %v467 = vpop.f32.mrf.mxu0
  %v468 = vadd.f32 0.0, %v467
  %v469 = vpop.f32.mrf.mxu0
  %470 = vdwg.mxu0
  %v471 = vpack.c.bf16 %v468, %v468
  %v472 = vld [vmem:[%s7] sm:$0xf]
  %v473 = vld [vmem:[%s7 + $0x4] sm:$0xf]
  %v474 = vld [vmem:[%s7 + $0x8] sm:$0xf]
  %v475 = vld [vmem:[%s7 + $0xc] sm:$0xf]
  %v480 = vunpack.c.l.b16 %v472
  %v481 = vunpack.c.l.b16 %v473
  %v482 = vunpack.c.l.b16 %v474
  %v483 = vunpack.c.l.b16 %v475
  %v484 = vpack.c.b16 %v481, %v480
  %v485 = vpack.c.b16 %v483, %v482
  %v489 = vsel %vm64, %v471, 0
  %491 = vmatpush.bf16.msra.mxu0 0
  %492 = vmatpush.bf16.msra.mxu0 0
  %493 = vmatpush.bf16.msra.mxu0 0
  %494 = vmatpush.bf16.msra.mxu0 0
  %495 = vmatpush.bf16.msra.mxu0 0
  %496 = vmatpush.bf16.msra.mxu0 0
  %497 = vmatpush.bf16.msra.mxu0 %v485
  %498 = vmatpush.bf16.msra.mxu0 %v484
  %499 = vmatmul.bf16.gmra.mxu0 %v489
  %v500 = vpop.f32.mrf.mxu0
  %v501 = vadd.f32 0.0, %v500
  %v502 = vpop.f32.mrf.mxu0
  %503 = vdwg.mxu0
  %s504 = scalar_lea.vmem %s7, 16
  %v505 = vld [vmem:[%s504] sm:$0xf]
  %v506 = vld [vmem:[%s504 + $0x4] sm:$0xf]
  %v507 = vld [vmem:[%s504 + $0x8] sm:$0xf]
  %v508 = vld [vmem:[%s504 + $0xc] sm:$0xf]
  %v513 = vunpack.c.l.b16 %v505
  %v514 = vunpack.c.l.b16 %v506
  %v515 = vunpack.c.l.b16 %v507
  %v516 = vunpack.c.l.b16 %v508
  %v517 = vpack.c.b16 %v514, %v513
  %v518 = vpack.c.b16 %v516, %v515
  %521 = vmatpush.bf16.msra.mxu0 0
  %522 = vmatpush.bf16.msra.mxu0 0
  %523 = vmatpush.bf16.msra.mxu0 0
  %524 = vmatpush.bf16.msra.mxu0 0
  %525 = vmatpush.bf16.msra.mxu0 0
  %526 = vmatpush.bf16.msra.mxu0 0
  %527 = vmatpush.bf16.msra.mxu0 %v518
  %528 = vmatpush.bf16.msra.mxu0 %v517
  %529 = vmatmul.bf16.gmra.mxu0 %v489
  %v530 = vpop.f32.mrf.mxu0
  %v531 = vadd.f32 0.0, %v530
  %v532 = vpop.f32.mrf.mxu0
  %533 = vdwg.mxu0
  %s534 = scalar_lea.vmem %s7, 32
  %v535 = vld [vmem:[%s534] sm:$0xf]
  %v536 = vld [vmem:[%s534 + $0x4] sm:$0xf]
  %v537 = vld [vmem:[%s534 + $0x8] sm:$0xf]
  %v538 = vld [vmem:[%s534 + $0xc] sm:$0xf]
  %v543 = vunpack.c.l.b16 %v535
  %v544 = vunpack.c.l.b16 %v536
  %v545 = vunpack.c.l.b16 %v537
  %v546 = vunpack.c.l.b16 %v538
  %v547 = vpack.c.b16 %v544, %v543
  %v548 = vpack.c.b16 %v546, %v545
  %551 = vmatpush.bf16.msra.mxu0 0
  %552 = vmatpush.bf16.msra.mxu0 0
  %553 = vmatpush.bf16.msra.mxu0 0
  %554 = vmatpush.bf16.msra.mxu0 0
  %555 = vmatpush.bf16.msra.mxu0 0
  %556 = vmatpush.bf16.msra.mxu0 0
  %557 = vmatpush.bf16.msra.mxu0 %v548
  %558 = vmatpush.bf16.msra.mxu0 %v547
  %559 = vmatmul.bf16.gmra.mxu0 %v489
  %v560 = vpop.f32.mrf.mxu0
  %v561 = vadd.f32 0.0, %v560
  %v562 = vpop.f32.mrf.mxu0
  %563 = vdwg.mxu0
  %s564 = scalar_lea.vmem %s7, 48
  %v565 = vld [vmem:[%s564] sm:$0xf]
  %v566 = vld [vmem:[%s564 + $0x4] sm:$0xf]
  %v567 = vld [vmem:[%s564 + $0x8] sm:$0xf]
  %v568 = vld [vmem:[%s564 + $0xc] sm:$0xf]
  %v573 = vunpack.c.l.b16 %v565
  %v574 = vunpack.c.l.b16 %v566
  %v575 = vunpack.c.l.b16 %v567
  %v576 = vunpack.c.l.b16 %v568
  %v577 = vpack.c.b16 %v574, %v573
  %v578 = vpack.c.b16 %v576, %v575
  %581 = vmatpush.bf16.msra.mxu0 0
  %582 = vmatpush.bf16.msra.mxu0 0
  %583 = vmatpush.bf16.msra.mxu0 0
  %584 = vmatpush.bf16.msra.mxu0 0
  %585 = vmatpush.bf16.msra.mxu0 0
  %586 = vmatpush.bf16.msra.mxu0 0
  %587 = vmatpush.bf16.msra.mxu0 %v578
  %588 = vmatpush.bf16.msra.mxu0 %v577
  %589 = vmatmul.bf16.gmra.mxu0 %v489
  %v590 = vpop.f32.mrf.mxu0
  %v591 = vadd.f32 0.0, %v590
  %v592 = vpop.f32.mrf.mxu0
  %593 = vdwg.mxu0
  %s594 = scalar_lea.vmem %s7, 64
  %v595 = vld [vmem:[%s594] sm:$0xf]
  %v596 = vld [vmem:[%s594 + $0x4] sm:$0xf]
  %v597 = vld [vmem:[%s594 + $0x8] sm:$0xf]
  %v598 = vld [vmem:[%s594 + $0xc] sm:$0xf]
  %v603 = vunpack.c.l.b16 %v595
  %v604 = vunpack.c.l.b16 %v596
  %v605 = vunpack.c.l.b16 %v597
  %v606 = vunpack.c.l.b16 %v598
  %v607 = vpack.c.b16 %v604, %v603
  %v608 = vpack.c.b16 %v606, %v605
  %611 = vmatpush.bf16.msra.mxu0 0
  %612 = vmatpush.bf16.msra.mxu0 0
  %613 = vmatpush.bf16.msra.mxu0 0
  %614 = vmatpush.bf16.msra.mxu0 0
  %615 = vmatpush.bf16.msra.mxu0 0
  %616 = vmatpush.bf16.msra.mxu0 0
  %617 = vmatpush.bf16.msra.mxu0 %v608
  %618 = vmatpush.bf16.msra.mxu0 %v607
  %619 = vmatmul.bf16.gmra.mxu0 %v489
  %v620 = vpop.f32.mrf.mxu0
  %v621 = vadd.f32 0.0, %v620
  %v622 = vpop.f32.mrf.mxu0
  %623 = vdwg.mxu0
  %s624 = scalar_lea.vmem %s7, 80
  %v625 = vld [vmem:[%s624] sm:$0xf]
  %v626 = vld [vmem:[%s624 + $0x4] sm:$0xf]
  %v627 = vld [vmem:[%s624 + $0x8] sm:$0xf]
  %v628 = vld [vmem:[%s624 + $0xc] sm:$0xf]
  %v633 = vunpack.c.l.b16 %v625
  %v634 = vunpack.c.l.b16 %v626
  %v635 = vunpack.c.l.b16 %v627
  %v636 = vunpack.c.l.b16 %v628
  %v637 = vpack.c.b16 %v634, %v633
  %v638 = vpack.c.b16 %v636, %v635
  %641 = vmatpush.bf16.msra.mxu0 0
  %642 = vmatpush.bf16.msra.mxu0 0
  %643 = vmatpush.bf16.msra.mxu0 0
  %644 = vmatpush.bf16.msra.mxu0 0
  %645 = vmatpush.bf16.msra.mxu0 0
  %646 = vmatpush.bf16.msra.mxu0 0
  %647 = vmatpush.bf16.msra.mxu0 %v638
  %648 = vmatpush.bf16.msra.mxu0 %v637
  %649 = vmatmul.bf16.gmra.mxu0 %v489
  %v650 = vpop.f32.mrf.mxu0
  %v651 = vadd.f32 0.0, %v650
  %v652 = vpop.f32.mrf.mxu0
  %653 = vdwg.mxu0
  %s654 = scalar_lea.vmem %s7, 96
  %v655 = vld [vmem:[%s654] sm:$0xf]
  %v656 = vld [vmem:[%s654 + $0x4] sm:$0xf]
  %v657 = vld [vmem:[%s654 + $0x8] sm:$0xf]
  %v658 = vld [vmem:[%s654 + $0xc] sm:$0xf]
  %v663 = vunpack.c.l.b16 %v655
  %v664 = vunpack.c.l.b16 %v656
  %v665 = vunpack.c.l.b16 %v657
  %v666 = vunpack.c.l.b16 %v658
  %v667 = vpack.c.b16 %v664, %v663
  %v668 = vpack.c.b16 %v666, %v665
  %671 = vmatpush.bf16.msra.mxu0 0
  %672 = vmatpush.bf16.msra.mxu0 0
  %673 = vmatpush.bf16.msra.mxu0 0
  %674 = vmatpush.bf16.msra.mxu0 0
  %675 = vmatpush.bf16.msra.mxu0 0
  %676 = vmatpush.bf16.msra.mxu0 0
  %677 = vmatpush.bf16.msra.mxu0 %v668
  %678 = vmatpush.bf16.msra.mxu0 %v667
  %679 = vmatmul.bf16.gmra.mxu0 %v489
  %v680 = vpop.f32.mrf.mxu0
  %v681 = vadd.f32 0.0, %v680
  %v682 = vpop.f32.mrf.mxu0
  %683 = vdwg.mxu0
  %s684 = scalar_lea.vmem %s7, 112
  %v685 = vld [vmem:[%s684] sm:$0xf]
  %v686 = vld [vmem:[%s684 + $0x4] sm:$0xf]
  %v687 = vld [vmem:[%s684 + $0x8] sm:$0xf]
  %v688 = vld [vmem:[%s684 + $0xc] sm:$0xf]
  %v693 = vunpack.c.l.b16 %v685
  %v694 = vunpack.c.l.b16 %v686
  %v695 = vunpack.c.l.b16 %v687
  %v696 = vunpack.c.l.b16 %v688
  %v697 = vpack.c.b16 %v694, %v693
  %v698 = vpack.c.b16 %v696, %v695
  %701 = vmatpush.bf16.msra.mxu0 0
  %702 = vmatpush.bf16.msra.mxu0 0
  %703 = vmatpush.bf16.msra.mxu0 0
  %704 = vmatpush.bf16.msra.mxu0 0
  %705 = vmatpush.bf16.msra.mxu0 0
  %706 = vmatpush.bf16.msra.mxu0 0
  %707 = vmatpush.bf16.msra.mxu0 %v698
  %708 = vmatpush.bf16.msra.mxu0 %v697
  %709 = vmatmul.bf16.gmra.mxu0 %v489
  %v710 = vpop.f32.mrf.mxu0
  %v711 = vadd.f32 0.0, %v710
  %v712 = vpop.f32.mrf.mxu0
  %713 = vdwg.mxu0
  %s714 = scalar_lea.vmem %s7, 128
  %v715 = vld [vmem:[%s714] sm:$0xf]
  %v716 = vld [vmem:[%s714 + $0x4] sm:$0xf]
  %v717 = vld [vmem:[%s714 + $0x8] sm:$0xf]
  %v718 = vld [vmem:[%s714 + $0xc] sm:$0xf]
  %v723 = vunpack.c.l.b16 %v715
  %v724 = vunpack.c.l.b16 %v716
  %v725 = vunpack.c.l.b16 %v717
  %v726 = vunpack.c.l.b16 %v718
  %v727 = vpack.c.b16 %v724, %v723
  %v728 = vpack.c.b16 %v726, %v725
  %731 = vmatpush.bf16.msra.mxu0 0
  %732 = vmatpush.bf16.msra.mxu0 0
  %733 = vmatpush.bf16.msra.mxu0 0
  %734 = vmatpush.bf16.msra.mxu0 0
  %735 = vmatpush.bf16.msra.mxu0 0
  %736 = vmatpush.bf16.msra.mxu0 0
  %737 = vmatpush.bf16.msra.mxu0 %v728
  %738 = vmatpush.bf16.msra.mxu0 %v727
  %739 = vmatmul.bf16.gmra.mxu0 %v489
  %v740 = vpop.f32.mrf.mxu0
  %v741 = vadd.f32 0.0, %v740
  %v742 = vpop.f32.mrf.mxu0
  %743 = vdwg.mxu0
  %v744 = vld [vmem:[%s8] sm:$0xf]
  %v745 = vpack.c.bf16 %v531, %v501
  %v746 = vpack.c.bf16 %v591, %v561
  %v747 = vpack.c.bf16 %v651, %v621
  %v748 = vpack.c.bf16 %v711, %v681
  %v749 = vpack.c.bf16 %v741, %v741
  %vm750 = vcmask 588800
  %v752 = vsel %vm750, %v744, 0
  %v755 = vsel %vm148, %v749, 0
  %757 = vmatpush.bf16.msra.mxu0 0
  %758 = vmatpush.bf16.msra.mxu0 0
  %759 = vmatpush.bf16.msra.mxu0 0
  %760 = vmatpush.bf16.msra.mxu0 %v755
  %761 = vmatpush.bf16.msra.mxu0 %v748
  %762 = vmatpush.bf16.msra.mxu0 %v747
  %763 = vmatpush.bf16.msra.mxu0 %v746
  %764 = vmatpush.bf16.msra.mxu0 %v745
  %765 = vmatmul.bf16.gmra.mxu0 %v752
  %v766 = vpop.f32.mrf.mxu0
  %v767 = vadd.f32 0.0, %v766
  %v768 = vpop.f32.mrf.mxu0
  %769 = vdwg.mxu0
  %v770 = vld [vmem:[%s9] sm:$0xff]
  %772 = vset.pattern.permute.xlu0 0
  %773 = vperm.xlu0 %772, %v770
  %v774 = vpop.permute.xlu0 %773
  %v776 = vmul.f32 %v767, %v774
  %v777 = vld [vmem:[%s10] sm:$0xff]
  %779 = vset.pattern.permute.xlu0 0
  %780 = vperm.xlu0 %779, %v777
  %v781 = vpop.permute.xlu0 %780
  %v783 = vadd.f32 %v776, %v781
  %v784 = vmax.f32 %v783, 0.0
  %v785 = vld [vmem:[%s11] sm:$0x1]
  %v786 = vpack.c.bf16 %v784, %v784
  %v787 = vld [vmem:[%s12] sm:$0x3]
  %789 = vset.pattern.permute.xlu0 0
  %790 = vperm.xlu0 %789, %v787
  %v791 = vpop.permute.xlu0 %790
  %v794 = vsel %vm141, %v785, 0
  %v797 = vsel %vm148, %v786, 0
  %799 = vmatpush.bf16.msra.mxu0 0
  %800 = vmatpush.bf16.msra.mxu0 0
  %801 = vmatpush.bf16.msra.mxu0 0
  %802 = vmatpush.bf16.msra.mxu0 0
  %803 = vmatpush.bf16.msra.mxu0 0
  %804 = vmatpush.bf16.msra.mxu0 0
  %805 = vmatpush.bf16.msra.mxu0 0
  %806 = vmatpush.bf16.msra.mxu0 %v797
  %807 = vmatmul.bf16.gmra.mxu0 %v794
  %v808 = vpop.f32.mrf.mxu0
  %v809 = vadd.f32 %v791, %v808
  %v810 = vpop.f32.mrf.mxu0
  %811 = vdwg.mxu0
  %v812 = vpack.c.bf16 %v809, %v809
  %v813 = vld [vmem:[%s13] sm:$0xff]
  %v814 = vld [vmem:[%s13 + $0x8] sm:$0xff]
  %v815 = vld [vmem:[%s13 + $0x10] sm:$0xff]
  %v816 = vld [vmem:[%s13 + $0x18] sm:$0xff]
  %v817 = vld [vmem:[%s13 + $0x20] sm:$0xff]
  %v818 = vld [vmem:[%s13 + $0x28] sm:$0xff]
  %v819 = vld [vmem:[%s13 + $0x30] sm:$0xff]
  %v820 = vld [vmem:[%s13 + $0x38] sm:$0xff]
  %v829 = vunpack.c.l.b16 %v813
  %v830 = vunpack.c.h.b16 %v813
  %v831 = vunpack.c.l.b16 %v814
  %v832 = vunpack.c.h.b16 %v814
  %v833 = vunpack.c.l.b16 %v815
  %v834 = vunpack.c.h.b16 %v815
  %v835 = vunpack.c.l.b16 %v816
  %v836 = vunpack.c.h.b16 %v816
  %v837 = vunpack.c.l.b16 %v817
  %v838 = vunpack.c.h.b16 %v817
  %v839 = vunpack.c.l.b16 %v818
  %v840 = vunpack.c.h.b16 %v818
  %v841 = vunpack.c.l.b16 %v819
  %v842 = vunpack.c.h.b16 %v819
  %v843 = vunpack.c.l.b16 %v820
  %v844 = vunpack.c.h.b16 %v820
  %v845 = vpack.c.b16 %v833, %v829
  %v846 = vpack.c.b16 %v834, %v830
  %v847 = vpack.c.b16 %v835, %v831
  %v848 = vpack.c.b16 %v836, %v832
  %v849 = vpack.c.b16 %v841, %v837
  %v850 = vpack.c.b16 %v842, %v838
  %v851 = vpack.c.b16 %v843, %v839
  %v852 = vpack.c.b16 %v844, %v840
  %v862 = vsel %vm64, %v812, 0
  %864 = vmatpush.bf16.msra.mxu0 0
  %865 = vmatpush.bf16.msra.mxu0 0
  %866 = vmatpush.bf16.msra.mxu0 0
  %867 = vmatpush.bf16.msra.mxu0 0
  %868 = vmatpush.bf16.msra.mxu0 0
  %869 = vmatpush.bf16.msra.mxu0 0
  %870 = vmatpush.bf16.msra.mxu0 %v849
  %871 = vmatpush.bf16.msra.mxu0 %v845
  %872 = vmatmul.bf16.gmra.mxu0 %v862
  %v873 = vpop.f32.mrf.mxu0
  %v874 = vadd.f32 0.0, %v873
  %v875 = vpop.f32.mrf.mxu0
  %876 = vdwg.mxu0
  %877 = vmatpush.bf16.msra.mxu0 0
  %878 = vmatpush.bf16.msra.mxu0 0
  %879 = vmatpush.bf16.msra.mxu0 0
  %880 = vmatpush.bf16.msra.mxu0 0
  %881 = vmatpush.bf16.msra.mxu0 0
  %882 = vmatpush.bf16.msra.mxu0 0
  %883 = vmatpush.bf16.msra.mxu0 %v850
  %884 = vmatpush.bf16.msra.mxu0 %v846
  %885 = vmatmul.bf16.gmra.mxu0 %v862
  %v886 = vpop.f32.mrf.mxu0
  %v887 = vadd.f32 0.0, %v886
  %v888 = vpop.f32.mrf.mxu0
  %889 = vdwg.mxu0
  %890 = vmatpush.bf16.msra.mxu0 0
  %891 = vmatpush.bf16.msra.mxu0 0
  %892 = vmatpush.bf16.msra.mxu0 0
  %893 = vmatpush.bf16.msra.mxu0 0
  %894 = vmatpush.bf16.msra.mxu0 0
  %895 = vmatpush.bf16.msra.mxu0 0
  %896 = vmatpush.bf16.msra.mxu0 %v851
  %897 = vmatpush.bf16.msra.mxu0 %v847
  %898 = vmatmul.bf16.gmra.mxu0 %v862
  %v899 = vpop.f32.mrf.mxu0
  %v900 = vadd.f32 0.0, %v899
  %v901 = vpop.f32.mrf.mxu0
  %902 = vdwg.mxu0
  %903 = vmatpush.bf16.msra.mxu0 0
  %904 = vmatpush.bf16.msra.mxu0 0
  %905 = vmatpush.bf16.msra.mxu0 0
  %906 = vmatpush.bf16.msra.mxu0 0
  %907 = vmatpush.bf16.msra.mxu0 0
  %908 = vmatpush.bf16.msra.mxu0 0
  %909 = vmatpush.bf16.msra.mxu0 %v852
  %910 = vmatpush.bf16.msra.mxu0 %v848
  %911 = vmatmul.bf16.gmra.mxu0 %v862
  %v912 = vpop.f32.mrf.mxu0
  %v913 = vadd.f32 0.0, %v912
  %v914 = vpop.f32.mrf.mxu0
  %915 = vdwg.mxu0
  %v918 = vrot.slane %v887, 6
  %vm919 = vcmask 1041408
  %v920 = vsel %vm919, %v874, %v918
  %922 = vst [vmem:[%s14] sm:$0xf] %v920
  %v925 = vrot.slane %v913, 6
  %v926 = vsel %vm919, %v900, %v925
  %s928 = scalar_lea.vmem %s14, 4
  %929 = vst [vmem:[%s928] sm:$0xf] %v926
  // Predicated region
  $region58: #{setr_dsformer_forward.3} parent=0 // pred_check
    _
  $region59: #{setr_dsformer_forward.3} parent=0 // pred_check_branch
    %931 = sbr.rel (0) target = $region61
  $region60: #{setr_dsformer_forward.3} parent=0 // pred_region
    _
  $region61: #{setr_dsformer_forward.3} parent=0 // pred_fallthru
    _
  // Predicated region
  $region62: #{setr_dsformer_forward.3} parent=0 // pred_check
    _
  $region63: #{setr_dsformer_forward.3} parent=0 // pred_check_branch
    %933 = sbr.rel (0) target = $region65
  $region64: #{setr_dsformer_forward.3} parent=0 // pred_region
    _
  $region65: #{setr_dsformer_forward.3} parent=0 // pred_fallthru
    _

</llo_original>
